<compile_context>
chip_gen: v7x
topology: tpu7x:2x2x1
jax: 0.10.0
libtpu: 0.0.40
codegen_flags: <defaults>
</compile_context>

<pallas_src>
import jax
import jax.numpy as jnp
from jax import lax
from jax.experimental import pallas as pl
from jax.experimental.pallas import tpu as pltpu


def _silu(x):
    # x * sigmoid(x).  exp and the approximate reciprocal both run on the EUP,
    # keeping the VALU free; vrcp's ~2^-12 relative error is far below the
    # bf16-matmul noise floor covered by the test tolerance.
    return x * pl.reciprocal(1.0 + jnp.exp(-x), approx=True)


def csp_layer_kernel(x_ref, xu_ref, xd_ref,
                     w12_ref, b12_ref, bw1p_ref, bb1_ref,
                     bw2_ref, bb2_ref, w3_ref, w3a_ref, b3_ref,
                     o_ref):
    i = pl.program_id(1)
    n_row_tiles = pl.num_programs(1)

    _, tH, W, Cin = x_ref.shape
    Hc = bb1_ref.shape[-1]
    Cout = o_ref.shape[-1]
    M = tH * W                      # spatial positions in this row tile
    Mext = (tH + 2) * W             # + 1 halo row above / below

    bf16 = jnp.bfloat16

    # ---- extended input slab: [row above ; tile rows ; row below] -----------
    # (all sublane boundaries are multiples of 8 since W % 8 == 0)
    x_ext = jnp.concatenate(
        [xu_ref[0, 0], x_ref[0].reshape(M, Cin), xd_ref[0, 0]], axis=0)

    # ---- CSP conv1 & conv2 fused into one 1x1 matmul (folded BN) + SiLU -----
    a_ext = _silu(jnp.dot(x_ext.astype(bf16), w12_ref[...],
                          preferred_element_type=jnp.float32)
                  + b12_ref[...])                       # (Mext, 2*Hc) = [x1|x2]
    # tile-row slice feeds the fused conv3 at the end (8-row aligned slice)
    a12 = a_ext[W:W + M, :]                             # (M, 2*Hc) f32

    # ---- Bottleneck conv1 (1x1, folded BN) + SiLU over the whole slab -------
    # bw1p is bw1 zero-padded to (2*Hc, Hc): a_ext @ bw1p == x1 @ bw1 (no slice)
    h_ext = _silu(jnp.dot(a_ext.astype(bf16), bw1p_ref[...],
                          preferred_element_type=jnp.float32)
                  + bb1_ref[...])                       # (Mext, Hc)

    # zero the halo rows that fall outside the image (conv zero padding)
    row = lax.broadcasted_iota(jnp.int32, (Mext, 1), 0)
    valid = jnp.logical_and(jnp.logical_or(row >= W, i > 0),
                            jnp.logical_or(row < W + M, i < n_row_tiles - 1))
    h_ext = jnp.where(valid, h_ext, 0.0)

    # ---- 3x3 conv (folded BN): 9 rolled matmuls on the flat slab ------------
    col = row % W
    mask_l = col >= 1                                   # valid when dx == -1
    mask_r = col <= W - 2                               # valid when dx == +1

    # center tap first: defines the accumulator and folds in the bias.
    acc = jnp.dot(h_ext.astype(bf16), bw2_ref[4],
                  preferred_element_type=jnp.float32) + bb2_ref[...]
    for dy in (-1, 0, 1):
        for dx in (-1, 0, 1):
            if dy == 0 and dx == 0:
                continue
            shift = (-(dy * W + dx)) % Mext
            src = pltpu.roll(h_ext, shift=shift, axis=0)   # f32 roll (XLU)
            if dx == -1:
                src = jnp.where(mask_l, src, 0.0)
            elif dx == 1:
                src = jnp.where(mask_r, src, 0.0)
            # mask applied to the LHS operand, accumulation kept as a clean
            # chain of dot-adds (MRB-friendly on v7x).
            acc = acc + jnp.dot(src.astype(bf16),
                                bw2_ref[(dy + 1) * 3 + (dx + 1)],
                                preferred_element_type=jnp.float32)

    y3 = _silu(acc[W:W + M, :])                         # drop halo rows

    # ---- residual + channel concat + conv3, fused algebraically -------------
    # silu(cat(y3 + x1, x2) @ w3 + b3) == silu(y3 @ w3[:Hc] + a12 @ w3 + b3)
    out = _silu(jnp.dot(y3.astype(bf16), w3a_ref[...],
                        preferred_element_type=jnp.float32)
                + jnp.dot(a12.astype(bf16), w3_ref[...],
                          preferred_element_type=jnp.float32)
                + b3_ref[...])
    o_ref[...] = out.reshape(1, tH, W, Cout)


def _choose_tile_h(H, W, N):
    """Largest multiple-of-8 divisor of H with M = tH*W <= ~2048, keeping the
    grid at >= 2 steps when possible (v7x megacore)."""
    cands = [t for t in range(8, H + 1, 8) if H % t == 0]
    if not cands:
        raise ValueError("H must be a multiple of 8")
    good = [t for t in cands if t * W <= 2048] or cands[:1]
    t = good[-1]
    if N * (H // t) < 2:
        smaller = [c for c in cands if c < t]
        if smaller:
            t = smaller[-1]
    return t


def csp_layer(x_nchw, params, tile_h=None):
    (w1, b1, w2, b2, bw1, bb1, bw2, bb2, w3, b3) = params
    x = jnp.transpose(x_nchw, (0, 2, 3, 1)).astype(jnp.float32)    # NCHW->NHWC
    N, H, W, Cin = x.shape
    Hc = bw1.shape[1]
    Cout = w3.shape[1]
    assert W % 8 == 0, "W assumed multiple of 8 for aligned sublane layout"
    tH = _choose_tile_h(H, W, N) if tile_h is None else tile_h
    assert H % tH == 0, "row tile must divide H"

    # ---- wrapper-side weight packing (removes all in-kernel concats).
    #      Matmul operands are bf16; biases / elementwise stay f32. -----------
    bf = jnp.bfloat16
    w12 = jnp.concatenate([w1, w2], axis=1).astype(bf)             # (Cin, 2*Hc)
    b12 = jnp.concatenate([b1, b2], axis=1)                        # (1, 2*Hc)
    bw1p = jnp.concatenate([bw1, jnp.zeros((Hc, Hc), bw1.dtype)],
                           axis=0).astype(bf)                      # (2*Hc, Hc)
    bw2b = bw2.astype(bf)                                          # (9, Hc, Hc)
    w3a = w3[:Hc, :].astype(bf)                                    # (Hc, Cout)
    w3b = w3.astype(bf)                                            # (2*Hc, Cout)

    n_row_tiles = H // tH

    def full_spec(a):
        nd = a.ndim
        return pl.BlockSpec(a.shape, lambda n, i, nd=nd: (0,) * nd)

    in_specs = [
        # main row tile of the input
        pl.BlockSpec((1, tH, W, Cin), lambda n, i: (n, i, 0, 0)),
        # single row just above the tile (clamped at the top edge)
        pl.BlockSpec((1, 1, W, Cin),
                     lambda n, i: (n, jnp.maximum(i * tH - 1, 0), 0, 0)),
        # single row just below the tile (clamped at the bottom edge)
        pl.BlockSpec((1, 1, W, Cin),
                     lambda n, i: (n, jnp.minimum((i + 1) * tH, H - 1), 0, 0)),
        full_spec(w12), full_spec(b12),
        full_spec(bw1p), full_spec(bb1),
        full_spec(bw2b), full_spec(bb2),
        full_spec(w3b), full_spec(w3a), full_spec(b3),
    ]

    # Scoped-VMEM budget: double-buffered in/out tiles + weights, with slack;
    # cap at 48 MiB to leave headroom on v7x's 64 MiB physical VMEM.
    tile_bytes = (tH * W * Cin + 2 * W * Cin + tH * W * Cout) * 4
    weight_bytes = sum(int(a.size) * a.dtype.itemsize for a in
                       (w12, b12, bw1p, bb1, bw2b, bb2, w3b, w3a, b3))
    vmem_limit = int(min(max(4 * tile_bytes + 4 * weight_bytes + (16 << 20),
                             32 << 20), 48 << 20))

    out_nhwc = pl.pallas_call(
        csp_layer_kernel,
        out_shape=jax.ShapeDtypeStruct((N, H, W, Cout), jnp.float32),
        grid=(N, n_row_tiles),
        in_specs=in_specs,
        out_specs=pl.BlockSpec((1, tH, W, Cout), lambda n, i: (n, i, 0, 0)),
        compiler_params=pltpu.CompilerParams(
            dimension_semantics=("parallel", "parallel"),
            vmem_limit_bytes=vmem_limit),
    )(x, x, x, w12, b12, bw1p, bb1, bw2b, bb2, w3b, w3a, b3)
    return jnp.transpose(out_nhwc, (0, 3, 1, 2))                   # NHWC->NCHW


# ----------------------- deterministic parameter setup -----------------------

def make_folded_conv(key, cin, cout, ksize, eps=1e-3):
    """Conv (no bias) followed by BatchNorm(eps=0.001), folded for inference."""
    kw, kg, kb, km, kv = jax.random.split(key, 5)
    w = jax.random.normal(kw, (ksize * ksize, cin, cout), jnp.float32) * 0.1
    gamma = jax.random.uniform(kg, (cout,), jnp.float32, 0.5, 1.5)
    beta = jax.random.normal(kb, (cout,), jnp.float32) * 0.1
    mean = jax.random.normal(km, (cout,), jnp.float32) * 0.1
    var = jax.random.uniform(kv, (cout,), jnp.float32, 0.5, 1.5)
    scale = gamma / jnp.sqrt(var + eps)
    w_f = w * scale[None, None, :]
    b_f = (beta - mean * scale).reshape(1, cout)
    if ksize == 1:
        w_f = w_f.reshape(cin, cout)
    return w_f, b_f


def init_params(key, in_channels, out_channels):
    hidden = out_channels // 2          # expansion = 0.5
    ks = jax.random.split(key, 5)
    w1, b1 = make_folded_conv(ks[0], in_channels, hidden, 1)        # CSP conv1
    w2, b2 = make_folded_conv(ks[1], in_channels, hidden, 1)        # CSP conv2
    bw1, bb1 = make_folded_conv(ks[2], hidden, hidden, 1)           # bottleneck conv1
    bw2, bb2 = make_folded_conv(ks[3], hidden, hidden, 3)           # bottleneck conv2
    w3, b3 = make_folded_conv(ks[4], 2 * hidden, out_channels, 1)   # CSP conv3
    return (w1, b1, w2, b2, bw1, bb1, bw2, bb2, w3, b3)


# --------------------------- pure-JAX reference ------------------------------

def _base_conv_ref(x, w_folded, b_folded, ksize):
    if ksize == 1:
        w = w_folded.reshape(1, 1, *w_folded.shape)
    else:
        w = w_folded.reshape(ksize, ksize, w_folded.shape[-2], w_folded.shape[-1])
    y = lax.conv_general_dilated(x, w, (1, 1), 'SAME',
                                 dimension_numbers=('NHWC', 'HWIO', 'NHWC'))
    y = y + b_folded
    return y * (1.0 / (1.0 + jnp.exp(-y)))


def csp_layer_ref(x_nchw, params):
    (w1, b1, w2, b2, bw1, bb1, bw2, bb2, w3, b3) = params
    x = jnp.transpose(x_nchw, (0, 2, 3, 1)).astype(jnp.float32)
    x1 = _base_conv_ref(x, w1, b1, 1)
    x2 = _base_conv_ref(x, w2, b2, 1)
    y = _base_conv_ref(x1, bw1, bb1, 1)
    y = _base_conv_ref(y, bw2, bb2, 3)
    y = y + x1
    cat = jnp.concatenate([y, x2], axis=-1)
    out = _base_conv_ref(cat, w3, b3, 1)
    return jnp.transpose(out, (0, 3, 1, 2))


if __name__ == "__main__":
    key = jax.random.PRNGKey(0)
    kx, kp = jax.random.split(key)

    N, Cin, Cout, H, W = 2, 16, 16, 16, 16
    x = jax.random.normal(kx, (N, Cin, H, W), jnp.float32)
    params = init_params(kp, Cin, Cout)

    out = jax.block_until_ready(csp_layer(x, params))
    ref = csp_layer_ref(x, params)

    assert out.shape == (N, Cout, H, W), out.shape
    err = float(jnp.max(jnp.abs(out - ref)))
    # bf16 matmul operands + approx-reciprocal SiLU => relaxed tolerance vs the
    # pure-f32 reference (errors observed at the ~1e-2 level).
    assert jnp.allclose(out, ref, atol=5e-2, rtol=5e-2), f"max abs err {err}"

    print("KERNEL_OK")
</pallas_src>

<mosaic_0001>
module attributes {stable_mosaic.version = 11 : i64} {
  func.func @csp_layer_kernel(%arg0: i32, %arg1: i32, %arg2: memref<1x16x16x16xf32, #tpu.memory_space<vmem>>, %arg3: memref<1x1x16x16xf32, #tpu.memory_space<vmem>>, %arg4: memref<1x1x16x16xf32, #tpu.memory_space<vmem>>, %arg5: memref<16x16xbf16, #tpu.memory_space<vmem>>, %arg6: memref<1x16xf32, #tpu.memory_space<vmem>>, %arg7: memref<16x8xbf16, #tpu.memory_space<vmem>>, %arg8: memref<1x8xf32, #tpu.memory_space<vmem>>, %arg9: memref<9x8x8xbf16, #tpu.memory_space<vmem>>, %arg10: memref<1x8xf32, #tpu.memory_space<vmem>>, %arg11: memref<16x16xbf16, #tpu.memory_space<vmem>>, %arg12: memref<8x16xbf16, #tpu.memory_space<vmem>>, %arg13: memref<1x16xf32, #tpu.memory_space<vmem>>, %arg14: memref<1x16x16x16xf32, #tpu.memory_space<vmem>>) attributes {dimension_semantics = [#tpu.dimension_semantics<parallel>, #tpu.dimension_semantics<parallel>], iteration_bounds = array<i64: 2, 1>, scalar_prefetch = 0 : i64, scratch_operands = 0 : i64, tpu.core_type = #tpu.core_type<tc>, window_params = [{transform_indices = @transform_0, window_bounds = array<i64: 1, 16, 16, 16>}, {transform_indices = @transform_1, window_bounds = array<i64: 1, 1, 16, 16>}, {transform_indices = @transform_2, window_bounds = array<i64: 1, 1, 16, 16>}, {pipeline_mode = #tpu.pipeline_mode<synchronous>, transform_indices = @transform_3, window_bounds = array<i64: 16, 16>}, {pipeline_mode = #tpu.pipeline_mode<synchronous>, transform_indices = @transform_4, window_bounds = array<i64: 1, 16>}, {pipeline_mode = #tpu.pipeline_mode<synchronous>, transform_indices = @transform_5, window_bounds = array<i64: 16, 8>}, {pipeline_mode = #tpu.pipeline_mode<synchronous>, transform_indices = @transform_6, window_bounds = array<i64: 1, 8>}, {pipeline_mode = #tpu.pipeline_mode<synchronous>, transform_indices = @transform_7, window_bounds = array<i64: 9, 8, 8>}, {pipeline_mode = #tpu.pipeline_mode<synchronous>, transform_indices = @transform_8, window_bounds = array<i64: 1, 8>}, {pipeline_mode = #tpu.pipeline_mode<synchronous>, transform_indices = @transform_9, window_bounds = array<i64: 16, 16>}, {pipeline_mode = #tpu.pipeline_mode<synchronous>, transform_indices = @transform_10, window_bounds = array<i64: 8, 16>}, {pipeline_mode = #tpu.pipeline_mode<synchronous>, transform_indices = @transform_11, window_bounds = array<i64: 1, 16>}, {transform_indices = @transform_12, window_bounds = array<i64: 1, 16, 16, 16>}]} {
    %c0 = arith.constant 0 : index
    %c0_0 = arith.constant 0 : index
    %c0_1 = arith.constant 0 : index
    %c0_2 = arith.constant 0 : index
    %0 = vector.load %arg3[%c0, %c0_0, %c0_1, %c0_2] : memref<1x1x16x16xf32, #tpu.memory_space<vmem>>, vector<1x1x16x16xf32>
    %1 = vector.shape_cast %0 : vector<1x1x16x16xf32> to vector<16x16xf32>
    %c0_3 = arith.constant 0 : index
    %c0_4 = arith.constant 0 : index
    %c0_5 = arith.constant 0 : index
    %c0_6 = arith.constant 0 : index
    %2 = vector.load %arg2[%c0_3, %c0_4, %c0_5, %c0_6] : memref<1x16x16x16xf32, #tpu.memory_space<vmem>>, vector<1x16x16x16xf32>
    %3 = vector.shape_cast %2 : vector<1x16x16x16xf32> to vector<16x16x16xf32>
    %4 = vector.shape_cast %3 : vector<16x16x16xf32> to vector<256x16xf32>
    %c0_7 = arith.constant 0 : index
    %c0_8 = arith.constant 0 : index
    %c0_9 = arith.constant 0 : index
    %c0_10 = arith.constant 0 : index
    %5 = vector.load %arg4[%c0_7, %c0_8, %c0_9, %c0_10] : memref<1x1x16x16xf32, #tpu.memory_space<vmem>>, vector<1x1x16x16xf32>
    %6 = vector.shape_cast %5 : vector<1x1x16x16xf32> to vector<16x16xf32>
    %7 = tpu.concatenate %1, %4, %6 in 0 : vector<16x16xf32>, vector<256x16xf32>, vector<16x16xf32> -> vector<288x16xf32>
    %8 = arith.truncf %7 : vector<288x16xf32> to vector<288x16xbf16>
    %c0_11 = arith.constant 0 : index
    %c0_12 = arith.constant 0 : index
    %9 = vector.load %arg5[%c0_11, %c0_12] : memref<16x16xbf16, #tpu.memory_space<vmem>>, vector<16x16xbf16>
    %cst = arith.constant dense<0.000000e+00> : vector<288x16xf32>
    %10 = tpu.matmul %8, %9, %cst {dimension_numbers = #tpu.dot_dimension_numbers<[1], [0], [0], [1], [0, 0, 1, 1], [], []>} : vector<288x16xbf16>, vector<16x16xbf16>, vector<288x16xf32> -> vector<288x16xf32>
    %c0_13 = arith.constant 0 : index
    %c0_14 = arith.constant 0 : index
    %11 = vector.load %arg6[%c0_13, %c0_14] : memref<1x16xf32, #tpu.memory_space<vmem>>, vector<1x16xf32>
    %12 = vector.broadcast %11 : vector<1x16xf32> to vector<288x16xf32>
    %13 = arith.addf %10, %12 : vector<288x16xf32>
    %cst_15 = arith.constant 0.000000e+00 : f32
    %14 = vector.broadcast %cst_15 : f32 to vector<288x16xf32>
    %15 = arith.subf %14, %13 : vector<288x16xf32>
    %16 = math.exp %15 : vector<288x16xf32>
    %cst_16 = arith.constant 1.000000e+00 : f32
    %17 = vector.broadcast %cst_16 : f32 to vector<288x16xf32>
    %18 = arith.addf %17, %16 : vector<288x16xf32>
    %19 = tpu.reciprocal %18 {approx = true} : vector<288x16xf32> -> vector<288x16xf32>
    %20 = arith.mulf %13, %19 : vector<288x16xf32>
    %21 = vector.extract_strided_slice %20 {offsets = [16, 0], sizes = [256, 16], strides = [1, 1]} : vector<288x16xf32> to vector<256x16xf32>
    %22 = arith.truncf %20 : vector<288x16xf32> to vector<288x16xbf16>
    %c0_17 = arith.constant 0 : index
    %c0_18 = arith.constant 0 : index
    %23 = vector.load %arg7[%c0_17, %c0_18] : memref<16x8xbf16, #tpu.memory_space<vmem>>, vector<16x8xbf16>
    %cst_19 = arith.constant dense<0.000000e+00> : vector<288x8xf32>
    %24 = tpu.matmul %22, %23, %cst_19 {dimension_numbers = #tpu.dot_dimension_numbers<[1], [0], [0], [1], [0, 0, 1, 1], [], []>} : vector<288x16xbf16>, vector<16x8xbf16>, vector<288x8xf32> -> vector<288x8xf32>
    %c0_20 = arith.constant 0 : index
    %c0_21 = arith.constant 0 : index
    %25 = vector.load %arg8[%c0_20, %c0_21] : memref<1x8xf32, #tpu.memory_space<vmem>>, vector<1x8xf32>
    %26 = vector.broadcast %25 : vector<1x8xf32> to vector<288x8xf32>
    %27 = arith.addf %24, %26 : vector<288x8xf32>
    %cst_22 = arith.constant 0.000000e+00 : f32
    %28 = vector.broadcast %cst_22 : f32 to vector<288x8xf32>
    %29 = arith.subf %28, %27 : vector<288x8xf32>
    %30 = math.exp %29 : vector<288x8xf32>
    %cst_23 = arith.constant 1.000000e+00 : f32
    %31 = vector.broadcast %cst_23 : f32 to vector<288x8xf32>
    %32 = arith.addf %31, %30 : vector<288x8xf32>
    %33 = tpu.reciprocal %32 {approx = true} : vector<288x8xf32> -> vector<288x8xf32>
    %34 = arith.mulf %27, %33 : vector<288x8xf32>
    %35 = tpu.iota {dimensions = array<i32: 0>} : vector<288x1xi32>
    %c16_i32 = arith.constant 16 : i32
    %36 = vector.broadcast %c16_i32 : i32 to vector<288x1xi32>
    %37 = arith.cmpi sge, %35, %36 : vector<288x1xi32>
    %c0_i32 = arith.constant 0 : i32
    %38 = arith.cmpi sgt, %arg1, %c0_i32 : i32
    %39 = vector.broadcast %38 : i1 to vector<288x1xi1>
    %40 = arith.ori %37, %39 : vector<288x1xi1>
    %c272_i32 = arith.constant 272 : i32
    %41 = vector.broadcast %c272_i32 : i32 to vector<288x1xi32>
    %42 = arith.cmpi slt, %35, %41 : vector<288x1xi32>
    %c0_i32_24 = arith.constant 0 : i32
    %43 = arith.cmpi slt, %arg1, %c0_i32_24 : i32
    %44 = vector.broadcast %43 : i1 to vector<288x1xi1>
    %45 = arith.ori %42, %44 : vector<288x1xi1>
    %46 = arith.andi %40, %45 : vector<288x1xi1>
    %cst_25 = arith.constant 0.000000e+00 : f32
    %47 = vector.shape_cast %46 : vector<288x1xi1> to vector<288x1xi1>
    %48 = vector.broadcast %47 : vector<288x1xi1> to vector<288x8xi1>
    %49 = vector.broadcast %cst_25 : f32 to vector<288x8xf32>
    %50 = arith.select %48, %34, %49 : vector<288x8xi1>, vector<288x8xf32>
    %c16_i32_26 = arith.constant 16 : i32
    %c0_i32_27 = arith.constant 0 : i32
    %51 = arith.cmpi eq, %c16_i32_26, %c0_i32_27 : i32
    %c1_i32 = arith.constant 1 : i32
    %52 = arith.select %51, %c1_i32, %c16_i32_26 : i32
    %53 = vector.broadcast %52 : i32 to vector<288x1xi32>
    %54 = arith.remsi %35, %53 : vector<288x1xi32>
    %c0_i32_28 = arith.constant 0 : i32
    %55 = vector.broadcast %c0_i32_28 : i32 to vector<288x1xi32>
    %56 = arith.cmpi ne, %54, %55 : vector<288x1xi32>
    %c0_i32_29 = arith.constant 0 : i32
    %57 = vector.broadcast %c0_i32_29 : i32 to vector<288x1xi32>
    %58 = arith.cmpi slt, %54, %57 : vector<288x1xi32>
    %c0_i32_30 = arith.constant 0 : i32
    %59 = arith.cmpi slt, %52, %c0_i32_30 : i32
    %60 = vector.broadcast %59 : i1 to vector<288x1xi1>
    %61 = vector.broadcast %60 : vector<288x1xi1> to vector<288x1xi1>
    %62 = arith.xori %58, %61 : vector<288x1xi1>
    %63 = arith.andi %62, %56 : vector<288x1xi1>
    %64 = vector.broadcast %52 : i32 to vector<288x1xi32>
    %65 = arith.addi %54, %64 : vector<288x1xi32>
    %66 = arith.select %63, %65, %54 : vector<288x1xi1>, vector<288x1xi32>
    %c1_i32_31 = arith.constant 1 : i32
    %67 = vector.broadcast %c1_i32_31 : i32 to vector<288x1xi32>
    %68 = arith.cmpi sge, %66, %67 : vector<288x1xi32>
    %c14_i32 = arith.constant 14 : i32
    %69 = vector.broadcast %c14_i32 : i32 to vector<288x1xi32>
    %70 = arith.cmpi sle, %66, %69 : vector<288x1xi32>
    %71 = arith.truncf %50 : vector<288x8xf32> to vector<288x8xbf16>
    %c4 = arith.constant 4 : index
    %c0_32 = arith.constant 0 : index
    %c0_33 = arith.constant 0 : index
    %72 = vector.load %arg9[%c4, %c0_32, %c0_33] : memref<9x8x8xbf16, #tpu.memory_space<vmem>>, vector<1x8x8xbf16>
    %73 = vector.shape_cast %72 : vector<1x8x8xbf16> to vector<8x8xbf16>
    %cst_34 = arith.constant dense<0.000000e+00> : vector<288x8xf32>
    %74 = tpu.matmul %71, %73, %cst_34 {dimension_numbers = #tpu.dot_dimension_numbers<[1], [0], [0], [1], [0, 0, 1, 1], [], []>} : vector<288x8xbf16>, vector<8x8xbf16>, vector<288x8xf32> -> vector<288x8xf32>
    %c0_35 = arith.constant 0 : index
    %c0_36 = arith.constant 0 : index
    %75 = vector.load %arg10[%c0_35, %c0_36] : memref<1x8xf32, #tpu.memory_space<vmem>>, vector<1x8xf32>
    %76 = vector.broadcast %75 : vector<1x8xf32> to vector<288x8xf32>
    %77 = arith.addf %74, %76 : vector<288x8xf32>
    %c17_i32 = arith.constant 17 : i32
    %78 = tpu.dynamic_rotate %50 by %c17_i32 dim 0 : vector<288x8xf32>, i32 -> vector<288x8xf32>
    %cst_37 = arith.constant 0.000000e+00 : f32
    %79 = vector.shape_cast %68 : vector<288x1xi1> to vector<288x1xi1>
    %80 = vector.broadcast %79 : vector<288x1xi1> to vector<288x8xi1>
    %81 = vector.broadcast %cst_37 : f32 to vector<288x8xf32>
    %82 = arith.select %80, %78, %81 : vector<288x8xi1>, vector<288x8xf32>
    %83 = arith.truncf %82 : vector<288x8xf32> to vector<288x8xbf16>
    %c0_38 = arith.constant 0 : index
    %c0_39 = arith.constant 0 : index
    %c0_40 = arith.constant 0 : index
    %84 = vector.load %arg9[%c0_38, %c0_39, %c0_40] : memref<9x8x8xbf16, #tpu.memory_space<vmem>>, vector<1x8x8xbf16>
    %85 = vector.shape_cast %84 : vector<1x8x8xbf16> to vector<8x8xbf16>
    %cst_41 = arith.constant dense<0.000000e+00> : vector<288x8xf32>
    %86 = tpu.matmul %83, %85, %cst_41 {dimension_numbers = #tpu.dot_dimension_numbers<[1], [0], [0], [1], [0, 0, 1, 1], [], []>} : vector<288x8xbf16>, vector<8x8xbf16>, vector<288x8xf32> -> vector<288x8xf32>
    %87 = arith.addf %77, %86 : vector<288x8xf32>
    %c16_i32_42 = arith.constant 16 : i32
    %88 = tpu.dynamic_rotate %50 by %c16_i32_42 dim 0 : vector<288x8xf32>, i32 -> vector<288x8xf32>
    %89 = arith.truncf %88 : vector<288x8xf32> to vector<288x8xbf16>
    %c1 = arith.constant 1 : index
    %c0_43 = arith.constant 0 : index
    %c0_44 = arith.constant 0 : index
    %90 = vector.load %arg9[%c1, %c0_43, %c0_44] : memref<9x8x8xbf16, #tpu.memory_space<vmem>>, vector<1x8x8xbf16>
    %91 = vector.shape_cast %90 : vector<1x8x8xbf16> to vector<8x8xbf16>
    %cst_45 = arith.constant dense<0.000000e+00> : vector<288x8xf32>
    %92 = tpu.matmul %89, %91, %cst_45 {dimension_numbers = #tpu.dot_dimension_numbers<[1], [0], [0], [1], [0, 0, 1, 1], [], []>} : vector<288x8xbf16>, vector<8x8xbf16>, vector<288x8xf32> -> vector<288x8xf32>
    %93 = arith.addf %87, %92 : vector<288x8xf32>
    %c15_i32 = arith.constant 15 : i32
    %94 = tpu.dynamic_rotate %50 by %c15_i32 dim 0 : vector<288x8xf32>, i32 -> vector<288x8xf32>
    %cst_46 = arith.constant 0.000000e+00 : f32
    %95 = vector.shape_cast %70 : vector<288x1xi1> to vector<288x1xi1>
    %96 = vector.broadcast %95 : vector<288x1xi1> to vector<288x8xi1>
    %97 = vector.broadcast %cst_46 : f32 to vector<288x8xf32>
    %98 = arith.select %96, %94, %97 : vector<288x8xi1>, vector<288x8xf32>
    %99 = arith.truncf %98 : vector<288x8xf32> to vector<288x8xbf16>
    %c2 = arith.constant 2 : index
    %c0_47 = arith.constant 0 : index
    %c0_48 = arith.constant 0 : index
    %100 = vector.load %arg9[%c2, %c0_47, %c0_48] : memref<9x8x8xbf16, #tpu.memory_space<vmem>>, vector<1x8x8xbf16>
    %101 = vector.shape_cast %100 : vector<1x8x8xbf16> to vector<8x8xbf16>
    %cst_49 = arith.constant dense<0.000000e+00> : vector<288x8xf32>
    %102 = tpu.matmul %99, %101, %cst_49 {dimension_numbers = #tpu.dot_dimension_numbers<[1], [0], [0], [1], [0, 0, 1, 1], [], []>} : vector<288x8xbf16>, vector<8x8xbf16>, vector<288x8xf32> -> vector<288x8xf32>
    %103 = arith.addf %93, %102 : vector<288x8xf32>
    %c1_i32_50 = arith.constant 1 : i32
    %104 = tpu.dynamic_rotate %50 by %c1_i32_50 dim 0 : vector<288x8xf32>, i32 -> vector<288x8xf32>
    %cst_51 = arith.constant 0.000000e+00 : f32
    %105 = vector.shape_cast %68 : vector<288x1xi1> to vector<288x1xi1>
    %106 = vector.broadcast %105 : vector<288x1xi1> to vector<288x8xi1>
    %107 = vector.broadcast %cst_51 : f32 to vector<288x8xf32>
    %108 = arith.select %106, %104, %107 : vector<288x8xi1>, vector<288x8xf32>
    %109 = arith.truncf %108 : vector<288x8xf32> to vector<288x8xbf16>
    %c3 = arith.constant 3 : index
    %c0_52 = arith.constant 0 : index
    %c0_53 = arith.constant 0 : index
    %110 = vector.load %arg9[%c3, %c0_52, %c0_53] : memref<9x8x8xbf16, #tpu.memory_space<vmem>>, vector<1x8x8xbf16>
    %111 = vector.shape_cast %110 : vector<1x8x8xbf16> to vector<8x8xbf16>
    %cst_54 = arith.constant dense<0.000000e+00> : vector<288x8xf32>
    %112 = tpu.matmul %109, %111, %cst_54 {dimension_numbers = #tpu.dot_dimension_numbers<[1], [0], [0], [1], [0, 0, 1, 1], [], []>} : vector<288x8xbf16>, vector<8x8xbf16>, vector<288x8xf32> -> vector<288x8xf32>
    %113 = arith.addf %103, %112 : vector<288x8xf32>
    %c287_i32 = arith.constant 287 : i32
    %114 = tpu.dynamic_rotate %50 by %c287_i32 dim 0 : vector<288x8xf32>, i32 -> vector<288x8xf32>
    %cst_55 = arith.constant 0.000000e+00 : f32
    %115 = vector.shape_cast %70 : vector<288x1xi1> to vector<288x1xi1>
    %116 = vector.broadcast %115 : vector<288x1xi1> to vector<288x8xi1>
    %117 = vector.broadcast %cst_55 : f32 to vector<288x8xf32>
    %118 = arith.select %116, %114, %117 : vector<288x8xi1>, vector<288x8xf32>
    %119 = arith.truncf %118 : vector<288x8xf32> to vector<288x8xbf16>
    %c5 = arith.constant 5 : index
    %c0_56 = arith.constant 0 : index
    %c0_57 = arith.constant 0 : index
    %120 = vector.load %arg9[%c5, %c0_56, %c0_57] : memref<9x8x8xbf16, #tpu.memory_space<vmem>>, vector<1x8x8xbf16>
    %121 = vector.shape_cast %120 : vector<1x8x8xbf16> to vector<8x8xbf16>
    %cst_58 = arith.constant dense<0.000000e+00> : vector<288x8xf32>
    %122 = tpu.matmul %119, %121, %cst_58 {dimension_numbers = #tpu.dot_dimension_numbers<[1], [0], [0], [1], [0, 0, 1, 1], [], []>} : vector<288x8xbf16>, vector<8x8xbf16>, vector<288x8xf32> -> vector<288x8xf32>
    %123 = arith.addf %113, %122 : vector<288x8xf32>
    %c273_i32 = arith.constant 273 : i32
    %124 = tpu.dynamic_rotate %50 by %c273_i32 dim 0 : vector<288x8xf32>, i32 -> vector<288x8xf32>
    %cst_59 = arith.constant 0.000000e+00 : f32
    %125 = vector.shape_cast %68 : vector<288x1xi1> to vector<288x1xi1>
    %126 = vector.broadcast %125 : vector<288x1xi1> to vector<288x8xi1>
    %127 = vector.broadcast %cst_59 : f32 to vector<288x8xf32>
    %128 = arith.select %126, %124, %127 : vector<288x8xi1>, vector<288x8xf32>
    %129 = arith.truncf %128 : vector<288x8xf32> to vector<288x8xbf16>
    %c6 = arith.constant 6 : index
    %c0_60 = arith.constant 0 : index
    %c0_61 = arith.constant 0 : index
    %130 = vector.load %arg9[%c6, %c0_60, %c0_61] : memref<9x8x8xbf16, #tpu.memory_space<vmem>>, vector<1x8x8xbf16>
    %131 = vector.shape_cast %130 : vector<1x8x8xbf16> to vector<8x8xbf16>
    %cst_62 = arith.constant dense<0.000000e+00> : vector<288x8xf32>
    %132 = tpu.matmul %129, %131, %cst_62 {dimension_numbers = #tpu.dot_dimension_numbers<[1], [0], [0], [1], [0, 0, 1, 1], [], []>} : vector<288x8xbf16>, vector<8x8xbf16>, vector<288x8xf32> -> vector<288x8xf32>
    %133 = arith.addf %123, %132 : vector<288x8xf32>
    %c272_i32_63 = arith.constant 272 : i32
    %134 = tpu.dynamic_rotate %50 by %c272_i32_63 dim 0 : vector<288x8xf32>, i32 -> vector<288x8xf32>
    %135 = arith.truncf %134 : vector<288x8xf32> to vector<288x8xbf16>
    %c7 = arith.constant 7 : index
    %c0_64 = arith.constant 0 : index
    %c0_65 = arith.constant 0 : index
    %136 = vector.load %arg9[%c7, %c0_64, %c0_65] : memref<9x8x8xbf16, #tpu.memory_space<vmem>>, vector<1x8x8xbf16>
    %137 = vector.shape_cast %136 : vector<1x8x8xbf16> to vector<8x8xbf16>
    %cst_66 = arith.constant dense<0.000000e+00> : vector<288x8xf32>
    %138 = tpu.matmul %135, %137, %cst_66 {dimension_numbers = #tpu.dot_dimension_numbers<[1], [0], [0], [1], [0, 0, 1, 1], [], []>} : vector<288x8xbf16>, vector<8x8xbf16>, vector<288x8xf32> -> vector<288x8xf32>
    %139 = arith.addf %133, %138 : vector<288x8xf32>
    %c271_i32 = arith.constant 271 : i32
    %140 = tpu.dynamic_rotate %50 by %c271_i32 dim 0 : vector<288x8xf32>, i32 -> vector<288x8xf32>
    %cst_67 = arith.constant 0.000000e+00 : f32
    %141 = vector.shape_cast %70 : vector<288x1xi1> to vector<288x1xi1>
    %142 = vector.broadcast %141 : vector<288x1xi1> to vector<288x8xi1>
    %143 = vector.broadcast %cst_67 : f32 to vector<288x8xf32>
    %144 = arith.select %142, %140, %143 : vector<288x8xi1>, vector<288x8xf32>
    %145 = arith.truncf %144 : vector<288x8xf32> to vector<288x8xbf16>
    %c8 = arith.constant 8 : index
    %c0_68 = arith.constant 0 : index
    %c0_69 = arith.constant 0 : index
    %146 = vector.load %arg9[%c8, %c0_68, %c0_69] : memref<9x8x8xbf16, #tpu.memory_space<vmem>>, vector<1x8x8xbf16>
    %147 = vector.shape_cast %146 : vector<1x8x8xbf16> to vector<8x8xbf16>
    %cst_70 = arith.constant dense<0.000000e+00> : vector<288x8xf32>
    %148 = tpu.matmul %145, %147, %cst_70 {dimension_numbers = #tpu.dot_dimension_numbers<[1], [0], [0], [1], [0, 0, 1, 1], [], []>} : vector<288x8xbf16>, vector<8x8xbf16>, vector<288x8xf32> -> vector<288x8xf32>
    %149 = arith.addf %139, %148 : vector<288x8xf32>
    %150 = vector.extract_strided_slice %149 {offsets = [16, 0], sizes = [256, 8], strides = [1, 1]} : vector<288x8xf32> to vector<256x8xf32>
    %cst_71 = arith.constant 0.000000e+00 : f32
    %151 = vector.broadcast %cst_71 : f32 to vector<256x8xf32>
    %152 = arith.subf %151, %150 : vector<256x8xf32>
    %153 = math.exp %152 : vector<256x8xf32>
    %cst_72 = arith.constant 1.000000e+00 : f32
    %154 = vector.broadcast %cst_72 : f32 to vector<256x8xf32>
    %155 = arith.addf %154, %153 : vector<256x8xf32>
    %156 = tpu.reciprocal %155 {approx = true} : vector<256x8xf32> -> vector<256x8xf32>
    %157 = arith.mulf %150, %156 : vector<256x8xf32>
    %158 = arith.truncf %157 : vector<256x8xf32> to vector<256x8xbf16>
    %c0_73 = arith.constant 0 : index
    %c0_74 = arith.constant 0 : index
    %159 = vector.load %arg12[%c0_73, %c0_74] : memref<8x16xbf16, #tpu.memory_space<vmem>>, vector<8x16xbf16>
    %cst_75 = arith.constant dense<0.000000e+00> : vector<256x16xf32>
    %160 = tpu.matmul %158, %159, %cst_75 {dimension_numbers = #tpu.dot_dimension_numbers<[1], [0], [0], [1], [0, 0, 1, 1], [], []>} : vector<256x8xbf16>, vector<8x16xbf16>, vector<256x16xf32> -> vector<256x16xf32>
    %161 = arith.truncf %21 : vector<256x16xf32> to vector<256x16xbf16>
    %c0_76 = arith.constant 0 : index
    %c0_77 = arith.constant 0 : index
    %162 = vector.load %arg11[%c0_76, %c0_77] : memref<16x16xbf16, #tpu.memory_space<vmem>>, vector<16x16xbf16>
    %cst_78 = arith.constant dense<0.000000e+00> : vector<256x16xf32>
    %163 = tpu.matmul %161, %162, %cst_78 {dimension_numbers = #tpu.dot_dimension_numbers<[1], [0], [0], [1], [0, 0, 1, 1], [], []>} : vector<256x16xbf16>, vector<16x16xbf16>, vector<256x16xf32> -> vector<256x16xf32>
    %164 = arith.addf %160, %163 : vector<256x16xf32>
    %c0_79 = arith.constant 0 : index
    %c0_80 = arith.constant 0 : index
    %165 = vector.load %arg13[%c0_79, %c0_80] : memref<1x16xf32, #tpu.memory_space<vmem>>, vector<1x16xf32>
    %166 = vector.broadcast %165 : vector<1x16xf32> to vector<256x16xf32>
    %167 = arith.addf %164, %166 : vector<256x16xf32>
    %cst_81 = arith.constant 0.000000e+00 : f32
    %168 = vector.broadcast %cst_81 : f32 to vector<256x16xf32>
    %169 = arith.subf %168, %167 : vector<256x16xf32>
    %170 = math.exp %169 : vector<256x16xf32>
    %cst_82 = arith.constant 1.000000e+00 : f32
    %171 = vector.broadcast %cst_82 : f32 to vector<256x16xf32>
    %172 = arith.addf %171, %170 : vector<256x16xf32>
    %173 = tpu.reciprocal %172 {approx = true} : vector<256x16xf32> -> vector<256x16xf32>
    %174 = arith.mulf %167, %173 : vector<256x16xf32>
    %175 = vector.shape_cast %174 : vector<256x16xf32> to vector<1x16x16x16xf32>
    %c0_83 = arith.constant 0 : index
    %c0_84 = arith.constant 0 : index
    %c0_85 = arith.constant 0 : index
    %c0_86 = arith.constant 0 : index
    %176 = vector.load %arg14[%c0_83, %c0_84, %c0_85, %c0_86] : memref<1x16x16x16xf32, #tpu.memory_space<vmem>>, vector<1x16x16x16xf32>
    tpu.vector_store %arg14[%c0_83, %c0_84, %c0_85, %c0_86], %175 {strides = array<i32>} : memref<1x16x16x16xf32, #tpu.memory_space<vmem>>, vector<1x16x16x16xf32>,
    return
  }
  func.func @transform_0(%arg0: i32, %arg1: i32) -> (i32, i32, i32, i32) {
    %c0_i32 = arith.constant 0 : i32
    %c0_i32_0 = arith.constant 0 : i32
    %c0_i32_1 = arith.constant 0 : i32
    return %arg0, %arg1, %c0_i32, %c0_i32_0 : i32, i32, i32, i32
  }
  func.func @transform_1(%arg0: i32, %arg1: i32) -> (i32, i32, i32, i32) {
    %c16_i32 = arith.constant 16 : i32
    %0 = arith.muli %arg1, %c16_i32 : i32
    %c1_i32 = arith.constant 1 : i32
    %1 = arith.subi %0, %c1_i32 : i32
    %c0_i32 = arith.constant 0 : i32
    %2 = arith.maxsi %1, %c0_i32 : i32
    %c0_i32_0 = arith.constant 0 : i32
    %c0_i32_1 = arith.constant 0 : i32
    %c0_i32_2 = arith.constant 0 : i32
    return %arg0, %2, %c0_i32_0, %c0_i32_1 : i32, i32, i32, i32
  }
  func.func @transform_2(%arg0: i32, %arg1: i32) -> (i32, i32, i32, i32) {
    %c1_i32 = arith.constant 1 : i32
    %0 = arith.addi %arg1, %c1_i32 : i32
    %c16_i32 = arith.constant 16 : i32
    %1 = arith.muli %0, %c16_i32 : i32
    %c15_i32 = arith.constant 15 : i32
    %2 = arith.minsi %1, %c15_i32 : i32
    %c0_i32 = arith.constant 0 : i32
    %c0_i32_0 = arith.constant 0 : i32
    %c0_i32_1 = arith.constant 0 : i32
    return %arg0, %2, %c0_i32, %c0_i32_0 : i32, i32, i32, i32
  }
  func.func @transform_3(%arg0: i32, %arg1: i32) -> (i32, i32) {
    %c0_i32 = arith.constant 0 : i32
    %c0_i32_0 = arith.constant 0 : i32
    %c0_i32_1 = arith.constant 0 : i32
    return %c0_i32, %c0_i32_0 : i32, i32
  }
  func.func @transform_4(%arg0: i32, %arg1: i32) -> (i32, i32) {
    %c0_i32 = arith.constant 0 : i32
    %c0_i32_0 = arith.constant 0 : i32
    %c0_i32_1 = arith.constant 0 : i32
    return %c0_i32, %c0_i32_0 : i32, i32
  }
  func.func @transform_5(%arg0: i32, %arg1: i32) -> (i32, i32) {
    %c0_i32 = arith.constant 0 : i32
    %c0_i32_0 = arith.constant 0 : i32
    %c0_i32_1 = arith.constant 0 : i32
    return %c0_i32, %c0_i32_0 : i32, i32
  }
  func.func @transform_6(%arg0: i32, %arg1: i32) -> (i32, i32) {
    %c0_i32 = arith.constant 0 : i32
    %c0_i32_0 = arith.constant 0 : i32
    %c0_i32_1 = arith.constant 0 : i32
    return %c0_i32, %c0_i32_0 : i32, i32
  }
  func.func @transform_7(%arg0: i32, %arg1: i32) -> (i32, i32, i32) {
    %c0_i32 = arith.constant 0 : i32
    %c0_i32_0 = arith.constant 0 : i32
    %c0_i32_1 = arith.constant 0 : i32
    %c0_i32_2 = arith.constant 0 : i32
    return %c0_i32, %c0_i32_0, %c0_i32_1 : i32, i32, i32
  }
  func.func @transform_8(%arg0: i32, %arg1: i32) -> (i32, i32) {
    %c0_i32 = arith.constant 0 : i32
    %c0_i32_0 = arith.constant 0 : i32
    %c0_i32_1 = arith.constant 0 : i32
    return %c0_i32, %c0_i32_0 : i32, i32
  }
  func.func @transform_9(%arg0: i32, %arg1: i32) -> (i32, i32) {
    %c0_i32 = arith.constant 0 : i32
    %c0_i32_0 = arith.constant 0 : i32
    %c0_i32_1 = arith.constant 0 : i32
    return %c0_i32, %c0_i32_0 : i32, i32
  }
  func.func @transform_10(%arg0: i32, %arg1: i32) -> (i32, i32) {
    %c0_i32 = arith.constant 0 : i32
    %c0_i32_0 = arith.constant 0 : i32
    %c0_i32_1 = arith.constant 0 : i32
    return %c0_i32, %c0_i32_0 : i32, i32
  }
  func.func @transform_11(%arg0: i32, %arg1: i32) -> (i32, i32) {
    %c0_i32 = arith.constant 0 : i32
    %c0_i32_0 = arith.constant 0 : i32
    %c0_i32_1 = arith.constant 0 : i32
    return %c0_i32, %c0_i32_0 : i32, i32
  }
  func.func @transform_12(%arg0: i32, %arg1: i32) -> (i32, i32, i32, i32) {
    %c0_i32 = arith.constant 0 : i32
    %c0_i32_0 = arith.constant 0 : i32
    %c0_i32_1 = arith.constant 0 : i32
    return %arg0, %arg1, %c0_i32, %c0_i32_0 : i32, i32, i32, i32
  }
}

</mosaic_0001>

<llo_original>
// kernel: tpu_custom_call.1
$region0: #{tpu_custom_call.1}
  #allocation0 [shape = 'u32[]', space=smem, size = 0x4, offset = 0x4, fixed_abs, tag = 'smem constant byte address 0x4 - core index']
  #allocation1 [shape = 'u32[144,128]{1,0:T(1,128)}', space=vmem, size = 0x12000, scoped, tag = 'internal scratch']
  %s0 = inlined_call_operand.hbm [shape: f32[2,16,16,16], index: 0, kind: input, shape index: {}]
  %s1 = inlined_call_operand.hbm [shape: f32[2,16,16,16], index: 1, kind: input, shape index: {}]
  %s2 = inlined_call_operand.hbm [shape: f32[2,16,16,16], index: 2, kind: input, shape index: {}]
  %s3 = inlined_call_operand.vmem [shape: bf16[16,16], index: 3, kind: input, shape index: {}]
  %s4 = inlined_call_operand.vmem [shape: f32[1,16], index: 4, kind: input, shape index: {}]
  %s5 = inlined_call_operand.vmem [shape: bf16[16,8], index: 5, kind: input, shape index: {}]
  %s6 = inlined_call_operand.vmem [shape: f32[1,8], index: 6, kind: input, shape index: {}]
  %s7 = inlined_call_operand.vmem [shape: bf16[9,8,8], index: 7, kind: input, shape index: {}]
  %s8 = inlined_call_operand.vmem [shape: f32[1,8], index: 8, kind: input, shape index: {}]
  %s9 = inlined_call_operand.vmem [shape: bf16[16,16], index: 9, kind: input, shape index: {}]
  %s10 = inlined_call_operand.vmem [shape: bf16[8,16], index: 10, kind: input, shape index: {}]
  %s11 = inlined_call_operand.vmem [shape: f32[1,16], index: 11, kind: input, shape index: {}]
  %s12 = inlined_call_operand.hbm [shape: f32[2,16,16,16], index: 12, kind: output, shape index: {}]
  %s13 = sld [smem:[#allocation0]]
  $region93: #{tpu_custom_call.1} parent=0
    _
  %s15 = ssub.s32 1, %s13
  %s16 = scalar_select 0, %s15, %s13
  $region1: #{tpu_custom_call.1} parent=0
    #allocation2 [shape = 'u8[262144]{0}', space=vmem, size = 0x40000, scoped, tag = 'input window, operand 0']
    #allocation3 [shape = 's32[2]{0}', space=sflag, size = 0x8, scoped, tag = 'scoped memory for tpu_custom_call.1']
    #allocation4 [shape = 's32[2]{0}', space=sflag, size = 0x8, scoped, tag = 'scoped memory for tpu_custom_call.1']
    #allocation5 [shape = 'u8[16384]{0}', space=vmem, size = 0x4000, scoped, tag = 'input window, operand 1']
    #allocation6 [shape = 's32[2]{0}', space=sflag, size = 0x8, scoped, tag = 'scoped memory for tpu_custom_call.1']
    #allocation7 [shape = 'u8[16384]{0}', space=vmem, size = 0x4000, scoped, tag = 'input window, operand 2']
    #allocation8 [shape = 'u8[262144]{0}', space=vmem, size = 0x40000, scoped, tag = 'output window, operand 0']
    %17 = vsyncpa [#allocation3], 0
    %s18 = scalar_lea.sflag [#allocation3], 1
    %19 = vsyncpa %s18, 0
    %20 = vsyncpa [#allocation6], 0
    %s21 = scalar_lea.sflag [#allocation6], 1
    %22 = vsyncpa %s21, 0
    %23 = vsyncpa [#allocation4], 0
    %s24 = scalar_lea.sflag [#allocation4], 1
    %25 = vsyncpa %s24, 0
    loop: start=0, step=1, limit=4
    $region2: #{tpu_custom_call.1} parent=1 // loop_pre_header
      _
    $region3: #{tpu_custom_call.1} parent=1 // loop_header
      %s27 = sphi 0, %s31
      %p28 = scmp.ge.s32.totalorder %s27, 4
      %s34 = sphi 0, %s46
      %s35 = sphi 0, %s42
      %s36 = sphi 0, %s34
      %s37 = sphi 0, %s35
      %s38 = sphi 0, %s36
      %s39 = sphi 0, %s37
      %s51 = sphi 0, %s53
      %s54 = sphi 0, %s51
      %s55 = sphi 0, %s54
      %s71 = sphi 0, %s55
      %s87 = sphi 0, %s89
      %s90 = sphi 0, %s87
      %s91 = sphi 0, %s90
      %s107 = sphi 0, %s91
      %s123 = sphi 0, %s125
      %s126 = sphi 0, %s123
      %s127 = sphi 0, %s126
      %s143 = sphi 0, %s127
      %s147 = sphi 0, %s147
      %s149 = sphi 0, %s147
      %s150 = sphi 0, %s149
      %s164 = sphi 0, %s150
      %s168 = sphi 0, %s168
      %s170 = sphi 0, %s168
      %s171 = sphi 0, %s170
      %s185 = sphi 0, %s171
      %s189 = sphi 0, %s189
      %s191 = sphi 0, %s189
      %s192 = sphi 0, %s191
      %s206 = sphi 0, %s192
      %s210 = sphi 0, %s210
      %s212 = sphi 0, %s210
      %s213 = sphi 0, %s212
      %s227 = sphi 0, %s213
      %s231 = sphi 0, %s231
      %s233 = sphi 0, %s231
      %s234 = sphi 0, %s233
      %s248 = sphi 0, %s234
      %s252 = sphi 0, %s252
      %s254 = sphi 0, %s252
      %s255 = sphi 0, %s254
      %s269 = sphi 0, %s255
      %s273 = sphi 0, %s273
      %s275 = sphi 0, %s273
      %s276 = sphi 0, %s275
      %s290 = sphi 0, %s276
      %s294 = sphi 0, %s294
      %s296 = sphi 0, %s294
      %s297 = sphi 0, %s296
      %s311 = sphi 0, %s297
      %s315 = sphi 0, %s315
      %s317 = sphi 0, %s315
      %s318 = sphi 0, %s317
      %s332 = sphi 0, %s318
      %s340 = sphi 0, %s342
      %s343 = sphi 0, %s340
      %s344 = sphi 0, %s343
      %s360 = sphi 0, %s344
    $region4: #{tpu_custom_call.1} parent=1 // loop_header_branch
      %30 = sbr.rel (%p28) target = $region8
    $region5: #{tpu_custom_call.1} parent=1 // loop_body
      %s32 = ssub.s32 %s27, 1
      %s33 = ssub.s32 %s27, 2
      %s40 = sadd.s32 1, %s35
      %p41 = scmp.ge.s32.totalorder %s40, 1
      %s42 = scalar_select %p41, 0, %s40
      %s43 = sadd.s32 1, %s34
      %s44 = scalar_select %p41, %s43, %s34
      %p45 = scmp.ge.s32.totalorder %s44, 2
      %s46 = scalar_select %p45, 0, %s44
      %s47 = ssub.s32 %s34, %s46
      %s48 = ssub.s32 %s35, %s42
      %s49 = sor.u32 %s47, %s48
      %p50 = scmp.eq.s32.totalorder %s49, 0
      %s52 = sadd.s32 %s51, 1
      %s53 = scalar_select %p50, %s51, %s52
      %p56 = pneg %p50
      %p57 = scmp.eq.s32.totalorder %s27, 1
      %p58 = por %p56, %p57
      %p59 = scmp.ne.s32.totalorder %s51, %s54
      %p60 = scmp.eq.s32.totalorder %s27, 0
      %p61 = por %p59, %p60
      %p62 = scmp.ne.s32.totalorder %s51, %s54
      %p63 = scmp.eq.s32.totalorder %s32, 1
      %p64 = por %p62, %p63
      %p65 = scmp.ne.s32.totalorder %s54, %s55
      %p66 = scmp.eq.s32.totalorder %s32, 0
      %p67 = por %p65, %p66
      %p68 = scmp.ne.s32.totalorder %s54, %s55
      %p69 = scmp.eq.s32.totalorder %s33, 1
      %p70 = por %p68, %p69
      %p72 = scmp.ne.s32.totalorder %s55, %s71
      %p73 = scmp.eq.s32.totalorder %s33, 0
      %p74 = por %p72, %p73
      %s75 = smul.u32 %s35, 16
      %s76 = ssub.s32 %s75, 1
      %p77 = scmp.gt.s32.totalorder %s76, 0
      %s78 = scalar_select %p77, %s76, 0
      %s79 = smul.u32 %s42, 16
      %s80 = ssub.s32 %s79, 1
      %p81 = scmp.gt.s32.totalorder %s80, 0
      %s82 = scalar_select %p81, %s80, 0
      %s83 = ssub.s32 %s34, %s46
      %s84 = ssub.s32 %s78, %s82
      %s85 = sor.u32 %s83, %s84
      %p86 = scmp.eq.s32.totalorder %s85, 0
      %s88 = sadd.s32 %s87, 1
      %s89 = scalar_select %p86, %s87, %s88
      %p92 = pneg %p86
      %p93 = scmp.eq.s32.totalorder %s27, 1
      %p94 = por %p92, %p93
      %p95 = scmp.ne.s32.totalorder %s87, %s90
      %p96 = scmp.eq.s32.totalorder %s27, 0
      %p97 = por %p95, %p96
      %p98 = scmp.ne.s32.totalorder %s87, %s90
      %p99 = scmp.eq.s32.totalorder %s32, 1
      %p100 = por %p98, %p99
      %p101 = scmp.ne.s32.totalorder %s90, %s91
      %p102 = scmp.eq.s32.totalorder %s32, 0
      %p103 = por %p101, %p102
      %p104 = scmp.ne.s32.totalorder %s90, %s91
      %p105 = scmp.eq.s32.totalorder %s33, 1
      %p106 = por %p104, %p105
      %p108 = scmp.ne.s32.totalorder %s91, %s107
      %p109 = scmp.eq.s32.totalorder %s33, 0
      %p110 = por %p108, %p109
      %s111 = sadd.s32 %s35, 1
      %s112 = smul.u32 %s111, 16
      %p113 = scmp.lt.s32.totalorder %s112, 15
      %s114 = scalar_select %p113, %s112, 15
      %s115 = sadd.s32 %s42, 1
      %s116 = smul.u32 %s115, 16
      %p117 = scmp.lt.s32.totalorder %s116, 15
      %s118 = scalar_select %p117, %s116, 15
      %s119 = ssub.s32 %s34, %s46
      %s120 = ssub.s32 %s114, %s118
      %s121 = sor.u32 %s119, %s120
      %p122 = scmp.eq.s32.totalorder %s121, 0
      %s124 = sadd.s32 %s123, 1
      %s125 = scalar_select %p122, %s123, %s124
      %p128 = pneg %p122
      %p129 = scmp.eq.s32.totalorder %s27, 1
      %p130 = por %p128, %p129
      %p131 = scmp.ne.s32.totalorder %s123, %s126
      %p132 = scmp.eq.s32.totalorder %s27, 0
      %p133 = por %p131, %p132
      %p134 = scmp.ne.s32.totalorder %s123, %s126
      %p135 = scmp.eq.s32.totalorder %s32, 1
      %p136 = por %p134, %p135
      %p137 = scmp.ne.s32.totalorder %s126, %s127
      %p138 = scmp.eq.s32.totalorder %s32, 0
      %p139 = por %p137, %p138
      %p140 = scmp.ne.s32.totalorder %s126, %s127
      %p141 = scmp.eq.s32.totalorder %s33, 1
      %p142 = por %p140, %p141
      %p144 = scmp.ne.s32.totalorder %s127, %s143
      %p145 = scmp.eq.s32.totalorder %s33, 0
      %p146 = por %p144, %p145
      %s148 = sadd.s32 %s147, 1
      %p151 = scmp.eq.s32.totalorder %s27, 1
      %p152 = scmp.ne.s32.totalorder %s147, %s149
      %p153 = scmp.eq.s32.totalorder %s27, 0
      %p154 = por %p152, %p153
      %p155 = scmp.ne.s32.totalorder %s147, %s149
      %p156 = scmp.eq.s32.totalorder %s32, 1
      %p157 = por %p155, %p156
      %p158 = scmp.ne.s32.totalorder %s149, %s150
      %p159 = scmp.eq.s32.totalorder %s32, 0
      %p160 = por %p158, %p159
      %p161 = scmp.ne.s32.totalorder %s149, %s150
      %p162 = scmp.eq.s32.totalorder %s33, 1
      %p163 = por %p161, %p162
      %p165 = scmp.ne.s32.totalorder %s150, %s164
      %p166 = scmp.eq.s32.totalorder %s33, 0
      %p167 = por %p165, %p166
      %s169 = sadd.s32 %s168, 1
      %p172 = scmp.eq.s32.totalorder %s27, 1
      %p173 = scmp.ne.s32.totalorder %s168, %s170
      %p174 = scmp.eq.s32.totalorder %s27, 0
      %p175 = por %p173, %p174
      %p176 = scmp.ne.s32.totalorder %s168, %s170
      %p177 = scmp.eq.s32.totalorder %s32, 1
      %p178 = por %p176, %p177
      %p179 = scmp.ne.s32.totalorder %s170, %s171
      %p180 = scmp.eq.s32.totalorder %s32, 0
      %p181 = por %p179, %p180
      %p182 = scmp.ne.s32.totalorder %s170, %s171
      %p183 = scmp.eq.s32.totalorder %s33, 1
      %p184 = por %p182, %p183
      %p186 = scmp.ne.s32.totalorder %s171, %s185
      %p187 = scmp.eq.s32.totalorder %s33, 0
      %p188 = por %p186, %p187
      %s190 = sadd.s32 %s189, 1
      %p193 = scmp.eq.s32.totalorder %s27, 1
      %p194 = scmp.ne.s32.totalorder %s189, %s191
      %p195 = scmp.eq.s32.totalorder %s27, 0
      %p196 = por %p194, %p195
      %p197 = scmp.ne.s32.totalorder %s189, %s191
      %p198 = scmp.eq.s32.totalorder %s32, 1
      %p199 = por %p197, %p198
      %p200 = scmp.ne.s32.totalorder %s191, %s192
      %p201 = scmp.eq.s32.totalorder %s32, 0
      %p202 = por %p200, %p201
      %p203 = scmp.ne.s32.totalorder %s191, %s192
      %p204 = scmp.eq.s32.totalorder %s33, 1
      %p205 = por %p203, %p204
      %p207 = scmp.ne.s32.totalorder %s192, %s206
      %p208 = scmp.eq.s32.totalorder %s33, 0
      %p209 = por %p207, %p208
      %s211 = sadd.s32 %s210, 1
      %p214 = scmp.eq.s32.totalorder %s27, 1
      %p215 = scmp.ne.s32.totalorder %s210, %s212
      %p216 = scmp.eq.s32.totalorder %s27, 0
      %p217 = por %p215, %p216
      %p218 = scmp.ne.s32.totalorder %s210, %s212
      %p219 = scmp.eq.s32.totalorder %s32, 1
      %p220 = por %p218, %p219
      %p221 = scmp.ne.s32.totalorder %s212, %s213
      %p222 = scmp.eq.s32.totalorder %s32, 0
      %p223 = por %p221, %p222
      %p224 = scmp.ne.s32.totalorder %s212, %s213
      %p225 = scmp.eq.s32.totalorder %s33, 1
      %p226 = por %p224, %p225
      %p228 = scmp.ne.s32.totalorder %s213, %s227
      %p229 = scmp.eq.s32.totalorder %s33, 0
      %p230 = por %p228, %p229
      %s232 = sadd.s32 %s231, 1
      %p235 = scmp.eq.s32.totalorder %s27, 1
      %p236 = scmp.ne.s32.totalorder %s231, %s233
      %p237 = scmp.eq.s32.totalorder %s27, 0
      %p238 = por %p236, %p237
      %p239 = scmp.ne.s32.totalorder %s231, %s233
      %p240 = scmp.eq.s32.totalorder %s32, 1
      %p241 = por %p239, %p240
      %p242 = scmp.ne.s32.totalorder %s233, %s234
      %p243 = scmp.eq.s32.totalorder %s32, 0
      %p244 = por %p242, %p243
      %p245 = scmp.ne.s32.totalorder %s233, %s234
      %p246 = scmp.eq.s32.totalorder %s33, 1
      %p247 = por %p245, %p246
      %p249 = scmp.ne.s32.totalorder %s234, %s248
      %p250 = scmp.eq.s32.totalorder %s33, 0
      %p251 = por %p249, %p250
      %s253 = sadd.s32 %s252, 1
      %p256 = scmp.eq.s32.totalorder %s27, 1
      %p257 = scmp.ne.s32.totalorder %s252, %s254
      %p258 = scmp.eq.s32.totalorder %s27, 0
      %p259 = por %p257, %p258
      %p260 = scmp.ne.s32.totalorder %s252, %s254
      %p261 = scmp.eq.s32.totalorder %s32, 1
      %p262 = por %p260, %p261
      %p263 = scmp.ne.s32.totalorder %s254, %s255
      %p264 = scmp.eq.s32.totalorder %s32, 0
      %p265 = por %p263, %p264
      %p266 = scmp.ne.s32.totalorder %s254, %s255
      %p267 = scmp.eq.s32.totalorder %s33, 1
      %p268 = por %p266, %p267
      %p270 = scmp.ne.s32.totalorder %s255, %s269
      %p271 = scmp.eq.s32.totalorder %s33, 0
      %p272 = por %p270, %p271
      %s274 = sadd.s32 %s273, 1
      %p277 = scmp.eq.s32.totalorder %s27, 1
      %p278 = scmp.ne.s32.totalorder %s273, %s275
      %p279 = scmp.eq.s32.totalorder %s27, 0
      %p280 = por %p278, %p279
      %p281 = scmp.ne.s32.totalorder %s273, %s275
      %p282 = scmp.eq.s32.totalorder %s32, 1
      %p283 = por %p281, %p282
      %p284 = scmp.ne.s32.totalorder %s275, %s276
      %p285 = scmp.eq.s32.totalorder %s32, 0
      %p286 = por %p284, %p285
      %p287 = scmp.ne.s32.totalorder %s275, %s276
      %p288 = scmp.eq.s32.totalorder %s33, 1
      %p289 = por %p287, %p288
      %p291 = scmp.ne.s32.totalorder %s276, %s290
      %p292 = scmp.eq.s32.totalorder %s33, 0
      %p293 = por %p291, %p292
      %s295 = sadd.s32 %s294, 1
      %p298 = scmp.eq.s32.totalorder %s27, 1
      %p299 = scmp.ne.s32.totalorder %s294, %s296
      %p300 = scmp.eq.s32.totalorder %s27, 0
      %p301 = por %p299, %p300
      %p302 = scmp.ne.s32.totalorder %s294, %s296
      %p303 = scmp.eq.s32.totalorder %s32, 1
      %p304 = por %p302, %p303
      %p305 = scmp.ne.s32.totalorder %s296, %s297
      %p306 = scmp.eq.s32.totalorder %s32, 0
      %p307 = por %p305, %p306
      %p308 = scmp.ne.s32.totalorder %s296, %s297
      %p309 = scmp.eq.s32.totalorder %s33, 1
      %p310 = por %p308, %p309
      %p312 = scmp.ne.s32.totalorder %s297, %s311
      %p313 = scmp.eq.s32.totalorder %s33, 0
      %p314 = por %p312, %p313
      %s316 = sadd.s32 %s315, 1
      %p319 = scmp.eq.s32.totalorder %s27, 1
      %p320 = scmp.ne.s32.totalorder %s315, %s317
      %p321 = scmp.eq.s32.totalorder %s27, 0
      %p322 = por %p320, %p321
      %p323 = scmp.ne.s32.totalorder %s315, %s317
      %p324 = scmp.eq.s32.totalorder %s32, 1
      %p325 = por %p323, %p324
      %p326 = scmp.ne.s32.totalorder %s317, %s318
      %p327 = scmp.eq.s32.totalorder %s32, 0
      %p328 = por %p326, %p327
      %p329 = scmp.ne.s32.totalorder %s317, %s318
      %p330 = scmp.eq.s32.totalorder %s33, 1
      %p331 = por %p329, %p330
      %p333 = scmp.ne.s32.totalorder %s318, %s332
      %p334 = scmp.eq.s32.totalorder %s33, 0
      %p335 = por %p333, %p334
      %s336 = ssub.s32 %s34, %s46
      %s337 = ssub.s32 %s35, %s42
      %s338 = sor.u32 %s336, %s337
      %p339 = scmp.eq.s32.totalorder %s338, 0
      %s341 = sadd.s32 %s340, 1
      %s342 = scalar_select %p339, %s340, %s341
      %p345 = pneg %p339
      %p346 = scmp.eq.s32.totalorder %s27, 1
      %p347 = por %p345, %p346
      %p348 = scmp.ne.s32.totalorder %s340, %s343
      %p349 = scmp.eq.s32.totalorder %s27, 0
      %p350 = por %p348, %p349
      %p351 = scmp.ne.s32.totalorder %s340, %s343
      %p352 = scmp.eq.s32.totalorder %s32, 1
      %p353 = por %p351, %p352
      %p354 = scmp.ne.s32.totalorder %s343, %s344
      %p355 = scmp.eq.s32.totalorder %s32, 0
      %p356 = por %p354, %p355
      %p357 = scmp.ne.s32.totalorder %s343, %s344
      %p358 = scmp.eq.s32.totalorder %s33, 1
      %p359 = por %p357, %p358
      %p361 = scmp.ne.s32.totalorder %s344, %s360
      %p362 = scmp.eq.s32.totalorder %s33, 0
      %p363 = por %p361, %p362
      %p364 = scmp.le.s32.totalorder 1, %s27
      %p365 = scmp.lt.s32.totalorder %s27, 3
      %p366 = pnand %p364, %p365
      %p367 = pneg %p366
      // Predicated region
      $region9: #{tpu_custom_call.1} parent=5 // pred_check
        _
      $region10: #{tpu_custom_call.1} parent=5 // pred_check_branch
        %369 = sbr.rel (%p366) target = $region12
      $region11: #{tpu_custom_call.1} parent=5 // pred_region
        %s370 = ssub.s32 %s27, 1
        // Predicated region
        $region13: #{tpu_custom_call.1} parent=11 // pred_check
          %p371 = pneg %p160
        $region14: #{tpu_custom_call.1} parent=11 // pred_check_branch
          %373 = sbr.rel (%p371) target = $region16
        $region15: #{tpu_custom_call.1} parent=11 // pred_region
          _
        $region16: #{tpu_custom_call.1} parent=11 // pred_fallthru
          _
        // Predicated region
        $region17: #{tpu_custom_call.1} parent=11 // pred_check
          %p374 = pneg %p181
        $region18: #{tpu_custom_call.1} parent=11 // pred_check_branch
          %376 = sbr.rel (%p374) target = $region20
        $region19: #{tpu_custom_call.1} parent=11 // pred_region
          _
        $region20: #{tpu_custom_call.1} parent=11 // pred_fallthru
          _
        // Predicated region
        $region21: #{tpu_custom_call.1} parent=11 // pred_check
          %p377 = pneg %p202
        $region22: #{tpu_custom_call.1} parent=11 // pred_check_branch
          %379 = sbr.rel (%p377) target = $region24
        $region23: #{tpu_custom_call.1} parent=11 // pred_region
          _
        $region24: #{tpu_custom_call.1} parent=11 // pred_fallthru
          _
        // Predicated region
        $region25: #{tpu_custom_call.1} parent=11 // pred_check
          %p380 = pneg %p223
        $region26: #{tpu_custom_call.1} parent=11 // pred_check_branch
          %382 = sbr.rel (%p380) target = $region28
        $region27: #{tpu_custom_call.1} parent=11 // pred_region
          _
        $region28: #{tpu_custom_call.1} parent=11 // pred_fallthru
          _
        // Predicated region
        $region29: #{tpu_custom_call.1} parent=11 // pred_check
          %p383 = pneg %p244
        $region30: #{tpu_custom_call.1} parent=11 // pred_check_branch
          %385 = sbr.rel (%p383) target = $region32
        $region31: #{tpu_custom_call.1} parent=11 // pred_region
          _
        $region32: #{tpu_custom_call.1} parent=11 // pred_fallthru
          _
        // Predicated region
        $region33: #{tpu_custom_call.1} parent=11 // pred_check
          %p386 = pneg %p265
        $region34: #{tpu_custom_call.1} parent=11 // pred_check_branch
          %388 = sbr.rel (%p386) target = $region36
        $region35: #{tpu_custom_call.1} parent=11 // pred_region
          _
        $region36: #{tpu_custom_call.1} parent=11 // pred_fallthru
          _
        // Predicated region
        $region37: #{tpu_custom_call.1} parent=11 // pred_check
          %p389 = pneg %p286
        $region38: #{tpu_custom_call.1} parent=11 // pred_check_branch
          %391 = sbr.rel (%p389) target = $region40
        $region39: #{tpu_custom_call.1} parent=11 // pred_region
          _
        $region40: #{tpu_custom_call.1} parent=11 // pred_fallthru
          _
        // Predicated region
        $region41: #{tpu_custom_call.1} parent=11 // pred_check
          %p392 = pneg %p307
        $region42: #{tpu_custom_call.1} parent=11 // pred_check_branch
          %394 = sbr.rel (%p392) target = $region44
        $region43: #{tpu_custom_call.1} parent=11 // pred_region
          _
        $region44: #{tpu_custom_call.1} parent=11 // pred_fallthru
          _
        // Predicated region
        $region45: #{tpu_custom_call.1} parent=11 // pred_check
          %p395 = pneg %p328
        $region46: #{tpu_custom_call.1} parent=11 // pred_check_branch
          %397 = sbr.rel (%p395) target = $region48
        $region47: #{tpu_custom_call.1} parent=11 // pred_region
          _
        $region48: #{tpu_custom_call.1} parent=11 // pred_fallthru
          _
      $region12: #{tpu_custom_call.1} parent=5 // pred_fallthru
        _
      %p398 = scmp.lt.s32.totalorder %s27, 2
      // Predicated region
      $region49: #{tpu_custom_call.1} parent=5 // pred_check
        %p399 = pneg %p398
      $region50: #{tpu_custom_call.1} parent=5 // pred_check_branch
        %401 = sbr.rel (%p399) target = $region52
      $region51: #{tpu_custom_call.1} parent=5 // pred_region
        // Predicated region
        $region53: #{tpu_custom_call.1} parent=51 // pred_check
          %p402 = pneg %p61
        $region54: #{tpu_custom_call.1} parent=51 // pred_check_branch
          %404 = sbr.rel (%p402) target = $region56
        $region55: #{tpu_custom_call.1} parent=51 // pred_region
          %s405 = sand.u32 %s51, 1
          %s406 = scalar_lea.sflag [#allocation3], %s405
          %s407 = sand.u32 %s51, 1
          %s408 = smul.addr %s407, 256
          %s409 = scalar_lea.vmem [#allocation2], %s408
          %s410 = smul.u32 16, %s35
          %s412 = ssub.s32 4096, 4096
          %413 = vsyncadd %s406, %s412
          %s414 = smul.addr %s410, 2
          %s415 = smul.addr %s34, 32
          %s416 = sadd.s32 %s414, %s415
          %s417 = smul.addr %s416, 128
          %s418 = scalar_lea.hbm %s0, %s417
          %s419 = sshll.u32 %s409, 4
          %s420 = int_to_ptr.vmem [resolvable:$true] %s419
          %425 = dma.hbm_to_vmem [thread:$0]  %s418, 4096, %s420, %s406, 128, 128, 8
        $region56: #{tpu_custom_call.1} parent=51 // pred_fallthru
          _
        // Predicated region
        $region57: #{tpu_custom_call.1} parent=51 // pred_check
          %p426 = pneg %p97
        $region58: #{tpu_custom_call.1} parent=51 // pred_check_branch
          %428 = sbr.rel (%p426) target = $region60
        $region59: #{tpu_custom_call.1} parent=51 // pred_region
          %s429 = sand.u32 %s27, 1
          %s430 = scalar_lea.sflag [#allocation6], %s429
          %s431 = sand.u32 %s87, 1
          %s432 = smul.addr %s431, 16
          %s433 = scalar_lea.vmem [#allocation5], %s432
          %s434 = smul.u32 %s35, 16
          %s435 = ssub.s32 %s434, 1
          %p436 = scmp.gt.s32.totalorder %s435, 0
          %s437 = scalar_select %p436, %s435, 0
          %s439 = ssub.s32 256, 256
          %440 = vsyncadd %s430, %s439
          %s441 = smul.addr %s437, 2
          %s442 = smul.addr %s34, 32
          %s443 = sadd.s32 %s441, %s442
          %s444 = smul.addr %s443, 128
          %s445 = scalar_lea.hbm %s1, %s444
          %s446 = sshll.u32 %s433, 4
          %s447 = int_to_ptr.vmem [resolvable:$true] %s446
          %452 = dma.hbm_to_vmem [thread:$0]  %s445, 256, %s447, %s430, 128, 128, 8
        $region60: #{tpu_custom_call.1} parent=51 // pred_fallthru
          _
        // Predicated region
        $region61: #{tpu_custom_call.1} parent=51 // pred_check
          %p453 = pneg %p133
        $region62: #{tpu_custom_call.1} parent=51 // pred_check_branch
          %455 = sbr.rel (%p453) target = $region64
        $region63: #{tpu_custom_call.1} parent=51 // pred_region
          %s456 = sand.u32 %s27, 1
          %s457 = scalar_lea.sflag [#allocation6], %s456
          %s458 = sand.u32 %s123, 1
          %s459 = smul.addr %s458, 16
          %s460 = scalar_lea.vmem [#allocation7], %s459
          %s461 = sadd.s32 %s35, 1
          %s462 = smul.u32 %s461, 16
          %p463 = scmp.lt.s32.totalorder %s462, 15
          %s464 = scalar_select %p463, %s462, 15
          %s466 = ssub.s32 256, 256
          %467 = vsyncadd %s457, %s466
          %s468 = smul.addr %s464, 2
          %s469 = smul.addr %s34, 32
          %s470 = sadd.s32 %s468, %s469
          %s471 = smul.addr %s470, 128
          %s472 = scalar_lea.hbm %s2, %s471
          %s473 = sshll.u32 %s460, 4
          %s474 = int_to_ptr.vmem [resolvable:$true] %s473
          %479 = dma.hbm_to_vmem [thread:$0]  %s472, 256, %s474, %s457, 128, 128, 8
        $region64: #{tpu_custom_call.1} parent=51 // pred_fallthru
          _
      $region52: #{tpu_custom_call.1} parent=5 // pred_fallthru
        _
      %p480 = scmp.le.s32.totalorder 1, %s27
      %p481 = scmp.lt.s32.totalorder %s27, 3
      %p482 = pnand %p480, %p481
      %p483 = pneg %p482
      // Predicated region
      $region65: #{tpu_custom_call.1} parent=5 // pred_check
        _
      $region66: #{tpu_custom_call.1} parent=5 // pred_check_branch
        %485 = sbr.rel (%p482) target = $region68
      $region67: #{tpu_custom_call.1} parent=5 // pred_region
        %s486 = ssub.s32 %s27, 1
        %s487 = sand.u32 %s54, 1
        %s488 = scalar_lea.sflag [#allocation3], %s487
        %s489 = sand.u32 %s54, 1
        %s490 = smul.addr %s489, 256
        %s491 = scalar_lea.vmem [#allocation2], %s490
        // Predicated region
        $region69: #{tpu_custom_call.1} parent=67 // pred_check
          %p492 = pneg %p67
        $region70: #{tpu_custom_call.1} parent=67 // pred_check_branch
          %494 = sbr.rel (%p492) target = $region72
        $region71: #{tpu_custom_call.1} parent=67 // pred_region
          %495 = dma.done %s488, 4096
        $region72: #{tpu_custom_call.1} parent=67 // pred_fallthru
          _
        %s496 = sand.u32 %s32, 1
        %s497 = scalar_lea.sflag [#allocation6], %s496
        %s498 = sand.u32 %s90, 1
        %s499 = smul.addr %s498, 16
        %s500 = scalar_lea.vmem [#allocation5], %s499
        // Predicated region
        $region73: #{tpu_custom_call.1} parent=67 // pred_check
          %p501 = pneg %p103
        $region74: #{tpu_custom_call.1} parent=67 // pred_check_branch
          %503 = sbr.rel (%p501) target = $region76
        $region75: #{tpu_custom_call.1} parent=67 // pred_region
          %504 = dma.done %s497, 256
        $region76: #{tpu_custom_call.1} parent=67 // pred_fallthru
          _
        %s505 = sand.u32 %s32, 1
        %s506 = scalar_lea.sflag [#allocation6], %s505
        %s507 = sand.u32 %s126, 1
        %s508 = smul.addr %s507, 16
        %s509 = scalar_lea.vmem [#allocation7], %s508
        // Predicated region
        $region77: #{tpu_custom_call.1} parent=67 // pred_check
          %p510 = pneg %p139
        $region78: #{tpu_custom_call.1} parent=67 // pred_check_branch
          %512 = sbr.rel (%p510) target = $region80
        $region79: #{tpu_custom_call.1} parent=67 // pred_region
          %513 = dma.done %s506, 256
        $region80: #{tpu_custom_call.1} parent=67 // pred_fallthru
          _
        %s514 = sand.u32 %s54, 1
        %s515 = scalar_lea.sflag [#allocation3], %s514
        %s516 = sand.u32 %s54, 1
        %s517 = smul.addr %s516, 256
        %s518 = scalar_lea.vmem [#allocation2], %s517
        %p519 = pneg %p67
        %p520 = pneg %p64
        %s521 = sand.u32 %s32, 1
        %s522 = scalar_lea.sflag [#allocation6], %s521
        %s523 = sand.u32 %s90, 1
        %s524 = smul.addr %s523, 16
        %s525 = scalar_lea.vmem [#allocation5], %s524
        %p526 = pneg %p103
        %p527 = pneg %p100
        %s528 = sand.u32 %s32, 1
        %s529 = scalar_lea.sflag [#allocation6], %s528
        %s530 = sand.u32 %s126, 1
        %s531 = smul.addr %s530, 16
        %s532 = scalar_lea.vmem [#allocation7], %s531
        %p533 = pneg %p139
        %p534 = pneg %p136
        %p535 = pneg %p160
        %p536 = pneg %p157
        %p537 = pneg %p181
        %p538 = pneg %p178
        %p539 = pneg %p202
        %p540 = pneg %p199
        %p541 = pneg %p223
        %p542 = pneg %p220
        %p543 = pneg %p244
        %p544 = pneg %p241
        %p545 = pneg %p265
        %p546 = pneg %p262
        %p547 = pneg %p286
        %p548 = pneg %p283
        %p549 = pneg %p307
        %p550 = pneg %p304
        %p551 = pneg %p328
        %p552 = pneg %p325
        %p553 = pneg %p356
        %p554 = pneg %p353
        %s555 = sand.u32 %s343, 1
        %s556 = scalar_lea.sflag [#allocation4], %s555
        %s557 = sand.u32 %s343, 1
        %s558 = smul.addr %s557, 256
        %s559 = scalar_lea.vmem [#allocation8], %s558
        %s560 = smul.u32 16, %s37
        %s561 = smul.u32 %s37, 16
        %s562 = ssub.s32 %s561, 1
        %p563 = scmp.gt.s32.totalorder %s562, 0
        %s564 = scalar_select %p563, %s562, 0
        %s565 = sadd.s32 %s37, 1
        %s566 = smul.u32 %s565, 16
        %p567 = scmp.lt.s32.totalorder %s566, 15
        %s568 = scalar_select %p567, %s566, 15
        %s569 = smul.u32 16, %s37
        %v571 = vld [vmem:[%s500] sm:$0xff]
        %v572 = vld [vmem:[%s500 + $0x8] sm:$0xff]
        %v573 = vld [vmem:[%s491] sm:$0xff]
        %v574 = vld [vmem:[%s491 + $0x8] sm:$0xff]
        %v575 = vld [vmem:[%s491 + $0x10] sm:$0xff]
        %v576 = vld [vmem:[%s491 + $0x18] sm:$0xff]
        %v577 = vld [vmem:[%s491 + $0x20] sm:$0xff]
        %v578 = vld [vmem:[%s491 + $0x28] sm:$0xff]
        %v579 = vld [vmem:[%s491 + $0x30] sm:$0xff]
        %v580 = vld [vmem:[%s491 + $0x38] sm:$0xff]
        %v581 = vld [vmem:[%s491 + $0x40] sm:$0xff]
        %v582 = vld [vmem:[%s491 + $0x48] sm:$0xff]
        %v583 = vld [vmem:[%s491 + $0x50] sm:$0xff]
        %v584 = vld [vmem:[%s491 + $0x58] sm:$0xff]
        %v585 = vld [vmem:[%s491 + $0x60] sm:$0xff]
        %v586 = vld [vmem:[%s491 + $0x68] sm:$0xff]
        %v587 = vld [vmem:[%s491 + $0x70] sm:$0xff]
        %v588 = vld [vmem:[%s491 + $0x78] sm:$0xff]
        %v589 = vld [vmem:[%s491 + $0x80] sm:$0xff]
        %v590 = vld [vmem:[%s491 + $0x88] sm:$0xff]
        %v591 = vld [vmem:[%s491 + $0x90] sm:$0xff]
        %v592 = vld [vmem:[%s491 + $0x98] sm:$0xff]
        %v593 = vld [vmem:[%s491 + $0xa0] sm:$0xff]
        %v594 = vld [vmem:[%s491 + $0xa8] sm:$0xff]
        %v595 = vld [vmem:[%s491 + $0xb0] sm:$0xff]
        %v596 = vld [vmem:[%s491 + $0xb8] sm:$0xff]
        %v597 = vld [vmem:[%s491 + $0xc0] sm:$0xff]
        %v598 = vld [vmem:[%s491 + $0xc8] sm:$0xff]
        %v599 = vld [vmem:[%s491 + $0xd0] sm:$0xff]
        %v600 = vld [vmem:[%s491 + $0xd8] sm:$0xff]
        %v601 = vld [vmem:[%s491 + $0xe0] sm:$0xff]
        %v602 = vld [vmem:[%s491 + $0xe8] sm:$0xff]
        %v603 = vld [vmem:[%s491 + $0xf0] sm:$0xff]
        %v604 = vld [vmem:[%s491 + $0xf8] sm:$0xff]
        %v605 = vld [vmem:[%s509] sm:$0xff]
        %v606 = vld [vmem:[%s509 + $0x8] sm:$0xff]
        %v607 = vpack.c.bf16 %v572, %v571
        %v608 = vpack.c.bf16 %v574, %v573
        %v609 = vpack.c.bf16 %v576, %v575
        %v610 = vpack.c.bf16 %v578, %v577
        %v611 = vpack.c.bf16 %v580, %v579
        %v612 = vpack.c.bf16 %v582, %v581
        %v613 = vpack.c.bf16 %v584, %v583
        %v614 = vpack.c.bf16 %v586, %v585
        %v615 = vpack.c.bf16 %v588, %v587
        %v616 = vpack.c.bf16 %v590, %v589
        %v617 = vpack.c.bf16 %v592, %v591
        %v618 = vpack.c.bf16 %v594, %v593
        %v619 = vpack.c.bf16 %v596, %v595
        %v620 = vpack.c.bf16 %v598, %v597
        %v621 = vpack.c.bf16 %v600, %v599
        %v622 = vpack.c.bf16 %v602, %v601
        %v623 = vpack.c.bf16 %v604, %v603
        %v624 = vpack.c.bf16 %v606, %v605
        %v625 = vld [vmem:[%s3] sm:$0xf]
        %v626 = vld [vmem:[%s3 + $0x4] sm:$0xf]
        %v627 = vld [vmem:[%s4] sm:$0x1]
        %v629 = vlaneseq
        %v630 = vshrl.u32 %v629, 7
        %v631 = vsub.s32 0, %v630
        %v632 = vrot.slane %v627, %v631
        %v636 = vunpack.c.l.b16 %v625
        %v637 = vunpack.c.l.b16 %v626
        %v638 = vpack.c.b16 %v637, %v636
        %vm640 = vcmask 130048
        %v642 = vsel %vm640, %v607, 0
        %v645 = vsel %vm640, %v608, 0
        %v648 = vsel %vm640, %v609, 0
        %v651 = vsel %vm640, %v610, 0
        %v654 = vsel %vm640, %v611, 0
        %v657 = vsel %vm640, %v612, 0
        %v660 = vsel %vm640, %v613, 0
        %v663 = vsel %vm640, %v614, 0
        %v666 = vsel %vm640, %v615, 0
        %v669 = vsel %vm640, %v616, 0
        %v672 = vsel %vm640, %v617, 0
        %v675 = vsel %vm640, %v618, 0
        %v678 = vsel %vm640, %v619, 0
        %v681 = vsel %vm640, %v620, 0
        %v684 = vsel %vm640, %v621, 0
        %v687 = vsel %vm640, %v622, 0
        %v690 = vsel %vm640, %v623, 0
        %v693 = vsel %vm640, %v624, 0
        %695 = vmatprep.subr.bf16.mxu0 0
        %696 = vmatpush1.bf16.msra.mxu0 %v638
        %697 = vmatprep.subr.bf16.mxu0 0
        %698 = vmatpush1.bf16.msra.mxu0 0
        %699 = vmatprep.subr.bf16.mxu0 0
        %700 = vmatpush1.bf16.msra.mxu0 0
        %701 = vmatprep.subr.bf16.mxu0 0
        %702 = vmatpush1.bf16.msra.mxu0 0
        %703 = vmatprep.subr.bf16.mxu0 0
        %704 = vmatpush1.bf16.msra.mxu0 0
        %705 = vmatprep.subr.bf16.mxu0 0
        %706 = vmatpush1.bf16.msra.mxu0 0
        %707 = vmatprep.subr.bf16.mxu0 0
        %708 = vmatpush1.bf16.msra.mxu0 0
        %709 = vmatprep.subr.bf16.mxu0 0
        %710 = vmatpush1.bf16.msra.mxu0 0
        %711 = vmatprep.subr.bf16.mxu0 0
        %712 = vmatpush1.bf16.msra.mxu0 0
        %713 = vmatprep.subr.bf16.mxu0 0
        %714 = vmatpush1.bf16.msra.mxu0 0
        %715 = vmatprep.subr.bf16.mxu0 0
        %716 = vmatpush1.bf16.msra.mxu0 0
        %717 = vmatprep.subr.bf16.mxu0 0
        %718 = vmatpush1.bf16.msra.mxu0 0
        %719 = vmatprep.subr.bf16.mxu0 0
        %720 = vmatpush1.bf16.msra.mxu0 0
        %721 = vmatprep.subr.bf16.mxu0 0
        %722 = vmatpush1.bf16.msra.mxu0 0
        %723 = vmatprep.subr.bf16.mxu0 0
        %724 = vmatpush1.bf16.msra.mxu0 0
        %725 = vmatprep.subr.bf16.mxu0 0
        %726 = vmatpush1.bf16.msra.mxu0 0
        %727 = vmatprep.mubr.bf16.mxu0 0
        %728 = vmatmul.mubr.bf16.gmra.mrb[0].mxu0 %v642
        %v729 = vpop.f32.mrb[0].mxu0
        %v730 = vadd.f32 %v632, %v729
        %v731 = vpop.f32.mrb[0].mxu0
        %v732 = vpop.f32.mrb[0].mxu0
        %v733 = vadd.f32 %v632, %v732
        %v734 = vpop.f32.mrb[0].mxu0
        %735 = vmatprep.mubr.bf16.mxu0 0
        %736 = vmatmul.mubr.bf16.gmra.mrb[0].mxu0 %v645
        %v737 = vpop.f32.mrb[0].mxu0
        %v738 = vadd.f32 %v632, %v737
        %v739 = vpop.f32.mrb[0].mxu0
        %v740 = vpop.f32.mrb[0].mxu0
        %v741 = vadd.f32 %v632, %v740
        %v742 = vpop.f32.mrb[0].mxu0
        %743 = vmatprep.mubr.bf16.mxu0 0
        %744 = vmatmul.mubr.bf16.gmra.mrb[0].mxu0 %v648
        %v745 = vpop.f32.mrb[0].mxu0
        %v746 = vadd.f32 %v632, %v745
        %v747 = vpop.f32.mrb[0].mxu0
        %v748 = vpop.f32.mrb[0].mxu0
        %v749 = vadd.f32 %v632, %v748
        %v750 = vpop.f32.mrb[0].mxu0
        %751 = vmatprep.mubr.bf16.mxu0 0
        %752 = vmatmul.mubr.bf16.gmra.mrb[0].mxu0 %v651
        %v753 = vpop.f32.mrb[0].mxu0
        %v754 = vadd.f32 %v632, %v753
        %v755 = vpop.f32.mrb[0].mxu0
        %v756 = vpop.f32.mrb[0].mxu0
        %v757 = vadd.f32 %v632, %v756
        %v758 = vpop.f32.mrb[0].mxu0
        %759 = vmatprep.mubr.bf16.mxu0 0
        %760 = vmatmul.mubr.bf16.gmra.mrb[0].mxu0 %v654
        %v761 = vpop.f32.mrb[0].mxu0
        %v762 = vadd.f32 %v632, %v761
        %v763 = vpop.f32.mrb[0].mxu0
        %v764 = vpop.f32.mrb[0].mxu0
        %v765 = vadd.f32 %v632, %v764
        %v766 = vpop.f32.mrb[0].mxu0
        %767 = vmatprep.mubr.bf16.mxu0 0
        %768 = vmatmul.mubr.bf16.gmra.mrb[0].mxu0 %v657
        %v769 = vpop.f32.mrb[0].mxu0
        %v770 = vadd.f32 %v632, %v769
        %v771 = vpop.f32.mrb[0].mxu0
        %v772 = vpop.f32.mrb[0].mxu0
        %v773 = vadd.f32 %v632, %v772
        %v774 = vpop.f32.mrb[0].mxu0
        %775 = vmatprep.mubr.bf16.mxu0 0
        %776 = vmatmul.mubr.bf16.gmra.mrb[0].mxu0 %v660
        %v777 = vpop.f32.mrb[0].mxu0
        %v778 = vadd.f32 %v632, %v777
        %v779 = vpop.f32.mrb[0].mxu0
        %v780 = vpop.f32.mrb[0].mxu0
        %v781 = vadd.f32 %v632, %v780
        %v782 = vpop.f32.mrb[0].mxu0
        %783 = vmatprep.mubr.bf16.mxu0 0
        %784 = vmatmul.mubr.bf16.gmra.mrb[0].mxu0 %v663
        %v785 = vpop.f32.mrb[0].mxu0
        %v786 = vadd.f32 %v632, %v785
        %v787 = vpop.f32.mrb[0].mxu0
        %v788 = vpop.f32.mrb[0].mxu0
        %v789 = vadd.f32 %v632, %v788
        %v790 = vpop.f32.mrb[0].mxu0
        %791 = vmatprep.mubr.bf16.mxu0 0
        %792 = vmatmul.mubr.bf16.gmra.mrb[0].mxu0 %v666
        %v793 = vpop.f32.mrb[0].mxu0
        %v794 = vadd.f32 %v632, %v793
        %v795 = vpop.f32.mrb[0].mxu0
        %v796 = vpop.f32.mrb[0].mxu0
        %v797 = vadd.f32 %v632, %v796
        %v798 = vpop.f32.mrb[0].mxu0
        %799 = vmatprep.mubr.bf16.mxu0 0
        %800 = vmatmul.mubr.bf16.gmra.mrb[0].mxu0 %v669
        %v801 = vpop.f32.mrb[0].mxu0
        %v802 = vadd.f32 %v632, %v801
        %v803 = vpop.f32.mrb[0].mxu0
        %v804 = vpop.f32.mrb[0].mxu0
        %v805 = vadd.f32 %v632, %v804
        %v806 = vpop.f32.mrb[0].mxu0
        %807 = vmatprep.mubr.bf16.mxu0 0
        %808 = vmatmul.mubr.bf16.gmra.mrb[0].mxu0 %v672
        %v809 = vpop.f32.mrb[0].mxu0
        %v810 = vadd.f32 %v632, %v809
        %v811 = vpop.f32.mrb[0].mxu0
        %v812 = vpop.f32.mrb[0].mxu0
        %v813 = vadd.f32 %v632, %v812
        %v814 = vpop.f32.mrb[0].mxu0
        %815 = vmatprep.mubr.bf16.mxu0 0
        %816 = vmatmul.mubr.bf16.gmra.mrb[0].mxu0 %v675
        %v817 = vpop.f32.mrb[0].mxu0
        %v818 = vadd.f32 %v632, %v817
        %v819 = vpop.f32.mrb[0].mxu0
        %v820 = vpop.f32.mrb[0].mxu0
        %v821 = vadd.f32 %v632, %v820
        %v822 = vpop.f32.mrb[0].mxu0
        %823 = vmatprep.mubr.bf16.mxu0 0
        %824 = vmatmul.mubr.bf16.gmra.mrb[0].mxu0 %v678
        %v825 = vpop.f32.mrb[0].mxu0
        %v826 = vadd.f32 %v632, %v825
        %v827 = vpop.f32.mrb[0].mxu0
        %v828 = vpop.f32.mrb[0].mxu0
        %v829 = vadd.f32 %v632, %v828
        %v830 = vpop.f32.mrb[0].mxu0
        %831 = vmatprep.mubr.bf16.mxu0 0
        %832 = vmatmul.mubr.bf16.gmra.mrb[0].mxu0 %v681
        %v833 = vpop.f32.mrb[0].mxu0
        %v834 = vadd.f32 %v632, %v833
        %v835 = vpop.f32.mrb[0].mxu0
        %v836 = vpop.f32.mrb[0].mxu0
        %v837 = vadd.f32 %v632, %v836
        %v838 = vpop.f32.mrb[0].mxu0
        %839 = vmatprep.mubr.bf16.mxu0 0
        %840 = vmatmul.mubr.bf16.gmra.mrb[0].mxu0 %v684
        %v841 = vpop.f32.mrb[0].mxu0
        %v842 = vadd.f32 %v632, %v841
        %v843 = vpop.f32.mrb[0].mxu0
        %v844 = vpop.f32.mrb[0].mxu0
        %v845 = vadd.f32 %v632, %v844
        %v846 = vpop.f32.mrb[0].mxu0
        %847 = vmatprep.mubr.bf16.mxu0 0
        %848 = vmatmul.mubr.bf16.gmra.mrb[0].mxu0 %v687
        %v849 = vpop.f32.mrb[0].mxu0
        %v850 = vadd.f32 %v632, %v849
        %v851 = vpop.f32.mrb[0].mxu0
        %v852 = vpop.f32.mrb[0].mxu0
        %v853 = vadd.f32 %v632, %v852
        %v854 = vpop.f32.mrb[0].mxu0
        %855 = vmatprep.mubr.bf16.mxu0 0
        %856 = vmatmul.mubr.bf16.gmra.mrb[0].mxu0 %v690
        %v857 = vpop.f32.mrb[0].mxu0
        %v858 = vadd.f32 %v632, %v857
        %v859 = vpop.f32.mrb[0].mxu0
        %v860 = vpop.f32.mrb[0].mxu0
        %v861 = vadd.f32 %v632, %v860
        %v862 = vpop.f32.mrb[0].mxu0
        %863 = vmatprep.mubr.bf16.mxu0 0
        %864 = vmatmul.mubr.bf16.gmra.mrb[0].mxu0 %v693
        %v865 = vpop.f32.mrb[0].mxu0
        %v866 = vadd.f32 %v632, %v865
        %v867 = vpop.f32.mrb[0].mxu0
        %v868 = vpop.f32.mrb[0].mxu0
        %v869 = vadd.f32 %v632, %v868
        %v870 = vpop.f32.mrb[0].mxu0
        %871 = vdwg.mxu0
        %v872 = vsub.f32 0.0, %v730
        %v873 = vsub.f32 0.0, %v733
        %v874 = vsub.f32 0.0, %v738
        %v875 = vsub.f32 0.0, %v741
        %v876 = vsub.f32 0.0, %v746
        %v877 = vsub.f32 0.0, %v749
        %v878 = vsub.f32 0.0, %v754
        %v879 = vsub.f32 0.0, %v757
        %v880 = vsub.f32 0.0, %v762
        %v881 = vsub.f32 0.0, %v765
        %v882 = vsub.f32 0.0, %v770
        %v883 = vsub.f32 0.0, %v773
        %v884 = vsub.f32 0.0, %v778
        %v885 = vsub.f32 0.0, %v781
        %v886 = vsub.f32 0.0, %v786
        %v887 = vsub.f32 0.0, %v789
        %v888 = vsub.f32 0.0, %v794
        %v889 = vsub.f32 0.0, %v797
        %v890 = vsub.f32 0.0, %v802
        %v891 = vsub.f32 0.0, %v805
        %v892 = vsub.f32 0.0, %v810
        %v893 = vsub.f32 0.0, %v813
        %v894 = vsub.f32 0.0, %v818
        %v895 = vsub.f32 0.0, %v821
        %v896 = vsub.f32 0.0, %v826
        %v897 = vsub.f32 0.0, %v829
        %v898 = vsub.f32 0.0, %v834
        %v899 = vsub.f32 0.0, %v837
        %v900 = vsub.f32 0.0, %v842
        %v901 = vsub.f32 0.0, %v845
        %v902 = vsub.f32 0.0, %v850
        %v903 = vsub.f32 0.0, %v853
        %v904 = vsub.f32 0.0, %v858
        %v905 = vsub.f32 0.0, %v861
        %v906 = vsub.f32 0.0, %v866
        %v907 = vsub.f32 0.0, %v869
        %v908 = vmul.f32 %v872, 1.442695
        %v909 = vpow.pop %v908
        %v910 = vmul.f32 %v873, 1.442695
        %v911 = vpow.pop %v910
        %v912 = vmul.f32 %v874, 1.442695
        %v913 = vpow.pop %v912
        %v914 = vmul.f32 %v875, 1.442695
        %v915 = vpow.pop %v914
        %v916 = vmul.f32 %v876, 1.442695
        %v917 = vpow.pop %v916
        %v918 = vmul.f32 %v877, 1.442695
        %v919 = vpow.pop %v918
        %v920 = vmul.f32 %v878, 1.442695
        %v921 = vpow.pop %v920
        %v922 = vmul.f32 %v879, 1.442695
        %v923 = vpow.pop %v922
        %v924 = vmul.f32 %v880, 1.442695
        %v925 = vpow.pop %v924
        %v926 = vmul.f32 %v881, 1.442695
        %v927 = vpow.pop %v926
        %v928 = vmul.f32 %v882, 1.442695
        %v929 = vpow.pop %v928
        %v930 = vmul.f32 %v883, 1.442695
        %v931 = vpow.pop %v930
        %v932 = vmul.f32 %v884, 1.442695
        %v933 = vpow.pop %v932
        %v934 = vmul.f32 %v885, 1.442695
        %v935 = vpow.pop %v934
        %v936 = vmul.f32 %v886, 1.442695
        %v937 = vpow.pop %v936
        %v938 = vmul.f32 %v887, 1.442695
        %v939 = vpow.pop %v938
        %v940 = vmul.f32 %v888, 1.442695
        %v941 = vpow.pop %v940
        %v942 = vmul.f32 %v889, 1.442695
        %v943 = vpow.pop %v942
        %v944 = vmul.f32 %v890, 1.442695
        %v945 = vpow.pop %v944
        %v946 = vmul.f32 %v891, 1.442695
        %v947 = vpow.pop %v946
        %v948 = vmul.f32 %v892, 1.442695
        %v949 = vpow.pop %v948
        %v950 = vmul.f32 %v893, 1.442695
        %v951 = vpow.pop %v950
        %v952 = vmul.f32 %v894, 1.442695
        %v953 = vpow.pop %v952
        %v954 = vmul.f32 %v895, 1.442695
        %v955 = vpow.pop %v954
        %v956 = vmul.f32 %v896, 1.442695
        %v957 = vpow.pop %v956
        %v958 = vmul.f32 %v897, 1.442695
        %v959 = vpow.pop %v958
        %v960 = vmul.f32 %v898, 1.442695
        %v961 = vpow.pop %v960
        %v962 = vmul.f32 %v899, 1.442695
        %v963 = vpow.pop %v962
        %v964 = vmul.f32 %v900, 1.442695
        %v965 = vpow.pop %v964
        %v966 = vmul.f32 %v901, 1.442695
        %v967 = vpow.pop %v966
        %v968 = vmul.f32 %v902, 1.442695
        %v969 = vpow.pop %v968
        %v970 = vmul.f32 %v903, 1.442695
        %v971 = vpow.pop %v970
        %v972 = vmul.f32 %v904, 1.442695
        %v973 = vpow.pop %v972
        %v974 = vmul.f32 %v905, 1.442695
        %v975 = vpow.pop %v974
        %v976 = vmul.f32 %v906, 1.442695
        %v977 = vpow.pop %v976
        %v978 = vmul.f32 %v907, 1.442695
        %v979 = vpow.pop %v978
        %v980 = vadd.f32 %v909, 1.0
        %v981 = vadd.f32 %v911, 1.0
        %v982 = vadd.f32 %v913, 1.0
        %v983 = vadd.f32 %v915, 1.0
        %v984 = vadd.f32 %v917, 1.0
        %v985 = vadd.f32 %v919, 1.0
        %v986 = vadd.f32 %v921, 1.0
        %v987 = vadd.f32 %v923, 1.0
        %v988 = vadd.f32 %v925, 1.0
        %v989 = vadd.f32 %v927, 1.0
        %v990 = vadd.f32 %v929, 1.0
        %v991 = vadd.f32 %v931, 1.0
        %v992 = vadd.f32 %v933, 1.0
        %v993 = vadd.f32 %v935, 1.0
        %v994 = vadd.f32 %v937, 1.0
        %v995 = vadd.f32 %v939, 1.0
        %v996 = vadd.f32 %v941, 1.0
        %v997 = vadd.f32 %v943, 1.0
        %v998 = vadd.f32 %v945, 1.0
        %v999 = vadd.f32 %v947, 1.0
        %v1000 = vadd.f32 %v949, 1.0
        %v1001 = vadd.f32 %v951, 1.0
        %v1002 = vadd.f32 %v953, 1.0
        %v1003 = vadd.f32 %v955, 1.0
        %v1004 = vadd.f32 %v957, 1.0
        %v1005 = vadd.f32 %v959, 1.0
        %v1006 = vadd.f32 %v961, 1.0
        %v1007 = vadd.f32 %v963, 1.0
        %v1008 = vadd.f32 %v965, 1.0
        %v1009 = vadd.f32 %v967, 1.0
        %v1010 = vadd.f32 %v969, 1.0
        %v1011 = vadd.f32 %v971, 1.0
        %v1012 = vadd.f32 %v973, 1.0
        %v1013 = vadd.f32 %v975, 1.0
        %v1014 = vadd.f32 %v977, 1.0
        %v1015 = vadd.f32 %v979, 1.0
        %v1016 = vrcp.pop %v980
        %v1017 = vrcp.pop %v981
        %v1018 = vrcp.pop %v982
        %v1019 = vrcp.pop %v983
        %v1020 = vrcp.pop %v984
        %v1021 = vrcp.pop %v985
        %v1022 = vrcp.pop %v986
        %v1023 = vrcp.pop %v987
        %v1024 = vrcp.pop %v988
        %v1025 = vrcp.pop %v989
        %v1026 = vrcp.pop %v990
        %v1027 = vrcp.pop %v991
        %v1028 = vrcp.pop %v992
        %v1029 = vrcp.pop %v993
        %v1030 = vrcp.pop %v994
        %v1031 = vrcp.pop %v995
        %v1032 = vrcp.pop %v996
        %v1033 = vrcp.pop %v997
        %v1034 = vrcp.pop %v998
        %v1035 = vrcp.pop %v999
        %v1036 = vrcp.pop %v1000
        %v1037 = vrcp.pop %v1001
        %v1038 = vrcp.pop %v1002
        %v1039 = vrcp.pop %v1003
        %v1040 = vrcp.pop %v1004
        %v1041 = vrcp.pop %v1005
        %v1042 = vrcp.pop %v1006
        %v1043 = vrcp.pop %v1007
        %v1044 = vrcp.pop %v1008
        %v1045 = vrcp.pop %v1009
        %v1046 = vrcp.pop %v1010
        %v1047 = vrcp.pop %v1011
        %v1048 = vrcp.pop %v1012
        %v1049 = vrcp.pop %v1013
        %v1050 = vrcp.pop %v1014
        %v1051 = vrcp.pop %v1015
        %v1052 = vmul.f32 %v730, %v1016
        %v1053 = vmul.f32 %v733, %v1017
        %v1054 = vmul.f32 %v738, %v1018
        %v1055 = vmul.f32 %v741, %v1019
        %v1056 = vmul.f32 %v746, %v1020
        %v1057 = vmul.f32 %v749, %v1021
        %v1058 = vmul.f32 %v754, %v1022
        %v1059 = vmul.f32 %v757, %v1023
        %v1060 = vmul.f32 %v762, %v1024
        %v1061 = vmul.f32 %v765, %v1025
        %v1062 = vmul.f32 %v770, %v1026
        %v1063 = vmul.f32 %v773, %v1027
        %v1064 = vmul.f32 %v778, %v1028
        %v1065 = vmul.f32 %v781, %v1029
        %v1066 = vmul.f32 %v786, %v1030
        %v1067 = vmul.f32 %v789, %v1031
        %v1068 = vmul.f32 %v794, %v1032
        %v1069 = vmul.f32 %v797, %v1033
        %v1070 = vmul.f32 %v802, %v1034
        %v1071 = vmul.f32 %v805, %v1035
        %v1072 = vmul.f32 %v810, %v1036
        %v1073 = vmul.f32 %v813, %v1037
        %v1074 = vmul.f32 %v818, %v1038
        %v1075 = vmul.f32 %v821, %v1039
        %v1076 = vmul.f32 %v826, %v1040
        %v1077 = vmul.f32 %v829, %v1041
        %v1078 = vmul.f32 %v834, %v1042
        %v1079 = vmul.f32 %v837, %v1043
        %v1080 = vmul.f32 %v842, %v1044
        %v1081 = vmul.f32 %v845, %v1045
        %v1082 = vmul.f32 %v850, %v1046
        %v1083 = vmul.f32 %v853, %v1047
        %v1084 = vmul.f32 %v858, %v1048
        %v1085 = vmul.f32 %v861, %v1049
        %v1086 = vmul.f32 %v866, %v1050
        %v1087 = vmul.f32 %v869, %v1051
        %v1088 = vpack.c.bf16 %v1053, %v1052
        %v1089 = vpack.c.bf16 %v1055, %v1054
        %v1090 = vpack.c.bf16 %v1057, %v1056
        %v1091 = vpack.c.bf16 %v1059, %v1058
        %v1092 = vpack.c.bf16 %v1061, %v1060
        %v1093 = vpack.c.bf16 %v1063, %v1062
        %v1094 = vpack.c.bf16 %v1065, %v1064
        %v1095 = vpack.c.bf16 %v1067, %v1066
        %v1096 = vpack.c.bf16 %v1069, %v1068
        %v1097 = vpack.c.bf16 %v1071, %v1070
        %v1098 = vpack.c.bf16 %v1073, %v1072
        %v1099 = vpack.c.bf16 %v1075, %v1074
        %v1100 = vpack.c.bf16 %v1077, %v1076
        %v1101 = vpack.c.bf16 %v1079, %v1078
        %v1102 = vpack.c.bf16 %v1081, %v1080
        %v1103 = vpack.c.bf16 %v1083, %v1082
        %v1104 = vpack.c.bf16 %v1085, %v1084
        %v1105 = vpack.c.bf16 %v1087, %v1086
        %v1106 = vld [vmem:[%s5] sm:$0xf]
        %v1107 = vld [vmem:[%s5 + $0x4] sm:$0xf]
        %v1108 = vld [vmem:[%s6] sm:$0x1]
        %v1110 = vlaneseq
        %v1111 = vshrl.u32 %v1110, 7
        %v1112 = vsub.s32 0, %v1111
        %v1113 = vrot.slane %v1108, %v1112
        %v1117 = vunpack.c.l.b16 %v1106
        %v1118 = vunpack.c.l.b16 %v1107
        %v1119 = vpack.c.b16 %v1118, %v1117
        %v1122 = vsel %vm640, %v1088, 0
        %v1125 = vsel %vm640, %v1089, 0
        %v1128 = vsel %vm640, %v1090, 0
        %v1131 = vsel %vm640, %v1091, 0
        %v1134 = vsel %vm640, %v1092, 0
        %v1137 = vsel %vm640, %v1093, 0
        %v1140 = vsel %vm640, %v1094, 0
        %v1143 = vsel %vm640, %v1095, 0
        %v1146 = vsel %vm640, %v1096, 0
        %v1149 = vsel %vm640, %v1097, 0
        %v1152 = vsel %vm640, %v1098, 0
        %v1155 = vsel %vm640, %v1099, 0
        %v1158 = vsel %vm640, %v1100, 0
        %v1161 = vsel %vm640, %v1101, 0
        %v1164 = vsel %vm640, %v1102, 0
        %v1167 = vsel %vm640, %v1103, 0
        %v1170 = vsel %vm640, %v1104, 0
        %v1173 = vsel %vm640, %v1105, 0
        %1175 = vmatprep.subr.bf16.mxu0 0
        %1176 = vmatpush1.bf16.msra.mxu0 %v1119
        %1177 = vmatprep.subr.bf16.mxu0 0
        %1178 = vmatpush1.bf16.msra.mxu0 0
        %1179 = vmatprep.subr.bf16.mxu0 0
        %1180 = vmatpush1.bf16.msra.mxu0 0
        %1181 = vmatprep.subr.bf16.mxu0 0
        %1182 = vmatpush1.bf16.msra.mxu0 0
        %1183 = vmatprep.subr.bf16.mxu0 0
        %1184 = vmatpush1.bf16.msra.mxu0 0
        %1185 = vmatprep.subr.bf16.mxu0 0
        %1186 = vmatpush1.bf16.msra.mxu0 0
        %1187 = vmatprep.subr.bf16.mxu0 0
        %1188 = vmatpush1.bf16.msra.mxu0 0
        %1189 = vmatprep.subr.bf16.mxu0 0
        %1190 = vmatpush1.bf16.msra.mxu0 0
        %1191 = vmatprep.subr.bf16.mxu0 0
        %1192 = vmatpush1.bf16.msra.mxu0 0
        %1193 = vmatprep.subr.bf16.mxu0 0
        %1194 = vmatpush1.bf16.msra.mxu0 0
        %1195 = vmatprep.subr.bf16.mxu0 0
        %1196 = vmatpush1.bf16.msra.mxu0 0
        %1197 = vmatprep.subr.bf16.mxu0 0
        %1198 = vmatpush1.bf16.msra.mxu0 0
        %1199 = vmatprep.subr.bf16.mxu0 0
        %1200 = vmatpush1.bf16.msra.mxu0 0
        %1201 = vmatprep.subr.bf16.mxu0 0
        %1202 = vmatpush1.bf16.msra.mxu0 0
        %1203 = vmatprep.subr.bf16.mxu0 0
        %1204 = vmatpush1.bf16.msra.mxu0 0
        %1205 = vmatprep.subr.bf16.mxu0 0
        %1206 = vmatpush1.bf16.msra.mxu0 0
        %1207 = vmatprep.mubr.bf16.mxu0 0
        %1208 = vmatmul.mubr.bf16.gmra.mrb[0].mxu0 %v1122
        %v1209 = vpop.f32.mrb[0].mxu0
        %v1210 = vadd.f32 %v1113, %v1209
        %v1211 = vpop.f32.mrb[0].mxu0
        %v1212 = vpop.f32.mrb[0].mxu0
        %v1213 = vadd.f32 %v1113, %v1212
        %v1214 = vpop.f32.mrb[0].mxu0
        %1215 = vmatprep.mubr.bf16.mxu0 0
        %1216 = vmatmul.mubr.bf16.gmra.mrb[0].mxu0 %v1125
        %v1217 = vpop.f32.mrb[0].mxu0
        %v1218 = vadd.f32 %v1113, %v1217
        %v1219 = vpop.f32.mrb[0].mxu0
        %v1220 = vpop.f32.mrb[0].mxu0
        %v1221 = vadd.f32 %v1113, %v1220
        %v1222 = vpop.f32.mrb[0].mxu0
        %1223 = vmatprep.mubr.bf16.mxu0 0
        %1224 = vmatmul.mubr.bf16.gmra.mrb[0].mxu0 %v1128
        %v1225 = vpop.f32.mrb[0].mxu0
        %v1226 = vadd.f32 %v1113, %v1225
        %v1227 = vpop.f32.mrb[0].mxu0
        %v1228 = vpop.f32.mrb[0].mxu0
        %v1229 = vadd.f32 %v1113, %v1228
        %v1230 = vpop.f32.mrb[0].mxu0
        %1231 = vmatprep.mubr.bf16.mxu0 0
        %1232 = vmatmul.mubr.bf16.gmra.mrb[0].mxu0 %v1131
        %v1233 = vpop.f32.mrb[0].mxu0
        %v1234 = vadd.f32 %v1113, %v1233
        %v1235 = vpop.f32.mrb[0].mxu0
        %v1236 = vpop.f32.mrb[0].mxu0
        %v1237 = vadd.f32 %v1113, %v1236
        %v1238 = vpop.f32.mrb[0].mxu0
        %1239 = vmatprep.mubr.bf16.mxu0 0
        %1240 = vmatmul.mubr.bf16.gmra.mrb[0].mxu0 %v1134
        %v1241 = vpop.f32.mrb[0].mxu0
        %v1242 = vadd.f32 %v1113, %v1241
        %v1243 = vpop.f32.mrb[0].mxu0
        %v1244 = vpop.f32.mrb[0].mxu0
        %v1245 = vadd.f32 %v1113, %v1244
        %v1246 = vpop.f32.mrb[0].mxu0
        %1247 = vmatprep.mubr.bf16.mxu0 0
        %1248 = vmatmul.mubr.bf16.gmra.mrb[0].mxu0 %v1137
        %v1249 = vpop.f32.mrb[0].mxu0
        %v1250 = vadd.f32 %v1113, %v1249
        %v1251 = vpop.f32.mrb[0].mxu0
        %v1252 = vpop.f32.mrb[0].mxu0
        %v1253 = vadd.f32 %v1113, %v1252
        %v1254 = vpop.f32.mrb[0].mxu0
        %1255 = vmatprep.mubr.bf16.mxu0 0
        %1256 = vmatmul.mubr.bf16.gmra.mrb[0].mxu0 %v1140
        %v1257 = vpop.f32.mrb[0].mxu0
        %v1258 = vadd.f32 %v1113, %v1257
        %v1259 = vpop.f32.mrb[0].mxu0
        %v1260 = vpop.f32.mrb[0].mxu0
        %v1261 = vadd.f32 %v1113, %v1260
        %v1262 = vpop.f32.mrb[0].mxu0
        %1263 = vmatprep.mubr.bf16.mxu0 0
        %1264 = vmatmul.mubr.bf16.gmra.mrb[0].mxu0 %v1143
        %v1265 = vpop.f32.mrb[0].mxu0
        %v1266 = vadd.f32 %v1113, %v1265
        %v1267 = vpop.f32.mrb[0].mxu0
        %v1268 = vpop.f32.mrb[0].mxu0
        %v1269 = vadd.f32 %v1113, %v1268
        %v1270 = vpop.f32.mrb[0].mxu0
        %1271 = vmatprep.mubr.bf16.mxu0 0
        %1272 = vmatmul.mubr.bf16.gmra.mrb[0].mxu0 %v1146
        %v1273 = vpop.f32.mrb[0].mxu0
        %v1274 = vadd.f32 %v1113, %v1273
        %v1275 = vpop.f32.mrb[0].mxu0
        %v1276 = vpop.f32.mrb[0].mxu0
        %v1277 = vadd.f32 %v1113, %v1276
        %v1278 = vpop.f32.mrb[0].mxu0
        %1279 = vmatprep.mubr.bf16.mxu0 0
        %1280 = vmatmul.mubr.bf16.gmra.mrb[0].mxu0 %v1149
        %v1281 = vpop.f32.mrb[0].mxu0
        %v1282 = vadd.f32 %v1113, %v1281
        %v1283 = vpop.f32.mrb[0].mxu0
        %v1284 = vpop.f32.mrb[0].mxu0
        %v1285 = vadd.f32 %v1113, %v1284
        %v1286 = vpop.f32.mrb[0].mxu0
        %1287 = vmatprep.mubr.bf16.mxu0 0
        %1288 = vmatmul.mubr.bf16.gmra.mrb[0].mxu0 %v1152
        %v1289 = vpop.f32.mrb[0].mxu0
        %v1290 = vadd.f32 %v1113, %v1289
        %v1291 = vpop.f32.mrb[0].mxu0
        %v1292 = vpop.f32.mrb[0].mxu0
        %v1293 = vadd.f32 %v1113, %v1292
        %v1294 = vpop.f32.mrb[0].mxu0
        %1295 = vmatprep.mubr.bf16.mxu0 0
        %1296 = vmatmul.mubr.bf16.gmra.mrb[0].mxu0 %v1155
        %v1297 = vpop.f32.mrb[0].mxu0
        %v1298 = vadd.f32 %v1113, %v1297
        %v1299 = vpop.f32.mrb[0].mxu0
        %v1300 = vpop.f32.mrb[0].mxu0
        %v1301 = vadd.f32 %v1113, %v1300
        %v1302 = vpop.f32.mrb[0].mxu0
        %1303 = vmatprep.mubr.bf16.mxu0 0
        %1304 = vmatmul.mubr.bf16.gmra.mrb[0].mxu0 %v1158
        %v1305 = vpop.f32.mrb[0].mxu0
        %v1306 = vadd.f32 %v1113, %v1305
        %v1307 = vpop.f32.mrb[0].mxu0
        %v1308 = vpop.f32.mrb[0].mxu0
        %v1309 = vadd.f32 %v1113, %v1308
        %v1310 = vpop.f32.mrb[0].mxu0
        %1311 = vmatprep.mubr.bf16.mxu0 0
        %1312 = vmatmul.mubr.bf16.gmra.mrb[0].mxu0 %v1161
        %v1313 = vpop.f32.mrb[0].mxu0
        %v1314 = vadd.f32 %v1113, %v1313
        %v1315 = vpop.f32.mrb[0].mxu0
        %v1316 = vpop.f32.mrb[0].mxu0
        %v1317 = vadd.f32 %v1113, %v1316
        %v1318 = vpop.f32.mrb[0].mxu0
        %1319 = vmatprep.mubr.bf16.mxu0 0
        %1320 = vmatmul.mubr.bf16.gmra.mrb[0].mxu0 %v1164
        %v1321 = vpop.f32.mrb[0].mxu0
        %v1322 = vadd.f32 %v1113, %v1321
        %v1323 = vpop.f32.mrb[0].mxu0
        %v1324 = vpop.f32.mrb[0].mxu0
        %v1325 = vadd.f32 %v1113, %v1324
        %v1326 = vpop.f32.mrb[0].mxu0
        %1327 = vmatprep.mubr.bf16.mxu0 0
        %1328 = vmatmul.mubr.bf16.gmra.mrb[0].mxu0 %v1167
        %v1329 = vpop.f32.mrb[0].mxu0
        %v1330 = vadd.f32 %v1113, %v1329
        %v1331 = vpop.f32.mrb[0].mxu0
        %v1332 = vpop.f32.mrb[0].mxu0
        %v1333 = vadd.f32 %v1113, %v1332
        %v1334 = vpop.f32.mrb[0].mxu0
        %1335 = vmatprep.mubr.bf16.mxu0 0
        %1336 = vmatmul.mubr.bf16.gmra.mrb[0].mxu0 %v1170
        %v1337 = vpop.f32.mrb[0].mxu0
        %v1338 = vadd.f32 %v1113, %v1337
        %v1339 = vpop.f32.mrb[0].mxu0
        %v1340 = vpop.f32.mrb[0].mxu0
        %v1341 = vadd.f32 %v1113, %v1340
        %v1342 = vpop.f32.mrb[0].mxu0
        %1343 = vmatprep.mubr.bf16.mxu0 0
        %1344 = vmatmul.mubr.bf16.gmra.mrb[0].mxu0 %v1173
        %v1345 = vpop.f32.mrb[0].mxu0
        %v1346 = vadd.f32 %v1113, %v1345
        %v1347 = vpop.f32.mrb[0].mxu0
        %v1348 = vpop.f32.mrb[0].mxu0
        %v1349 = vadd.f32 %v1113, %v1348
        %v1350 = vpop.f32.mrb[0].mxu0
        %1351 = vdwg.mxu0
        %v1352 = vsub.f32 0.0, %v1210
        %v1353 = vsub.f32 0.0, %v1213
        %v1354 = vsub.f32 0.0, %v1218
        %v1355 = vsub.f32 0.0, %v1221
        %v1356 = vsub.f32 0.0, %v1226
        %v1357 = vsub.f32 0.0, %v1229
        %v1358 = vsub.f32 0.0, %v1234
        %v1359 = vsub.f32 0.0, %v1237
        %v1360 = vsub.f32 0.0, %v1242
        %v1361 = vsub.f32 0.0, %v1245
        %v1362 = vsub.f32 0.0, %v1250
        %v1363 = vsub.f32 0.0, %v1253
        %v1364 = vsub.f32 0.0, %v1258
        %v1365 = vsub.f32 0.0, %v1261
        %v1366 = vsub.f32 0.0, %v1266
        %v1367 = vsub.f32 0.0, %v1269
        %v1368 = vsub.f32 0.0, %v1274
        %v1369 = vsub.f32 0.0, %v1277
        %v1370 = vsub.f32 0.0, %v1282
        %v1371 = vsub.f32 0.0, %v1285
        %v1372 = vsub.f32 0.0, %v1290
        %v1373 = vsub.f32 0.0, %v1293
        %v1374 = vsub.f32 0.0, %v1298
        %v1375 = vsub.f32 0.0, %v1301
        %v1376 = vsub.f32 0.0, %v1306
        %v1377 = vsub.f32 0.0, %v1309
        %v1378 = vsub.f32 0.0, %v1314
        %v1379 = vsub.f32 0.0, %v1317
        %v1380 = vsub.f32 0.0, %v1322
        %v1381 = vsub.f32 0.0, %v1325
        %v1382 = vsub.f32 0.0, %v1330
        %v1383 = vsub.f32 0.0, %v1333
        %v1384 = vsub.f32 0.0, %v1338
        %v1385 = vsub.f32 0.0, %v1341
        %v1386 = vsub.f32 0.0, %v1346
        %v1387 = vsub.f32 0.0, %v1349
        %v1388 = vmul.f32 %v1352, 1.442695
        %v1389 = vpow.pop %v1388
        %v1390 = vmul.f32 %v1353, 1.442695
        %v1391 = vpow.pop %v1390
        %v1392 = vmul.f32 %v1354, 1.442695
        %v1393 = vpow.pop %v1392
        %v1394 = vmul.f32 %v1355, 1.442695
        %v1395 = vpow.pop %v1394
        %v1396 = vmul.f32 %v1356, 1.442695
        %v1397 = vpow.pop %v1396
        %v1398 = vmul.f32 %v1357, 1.442695
        %v1399 = vpow.pop %v1398
        %v1400 = vmul.f32 %v1358, 1.442695
        %v1401 = vpow.pop %v1400
        %v1402 = vmul.f32 %v1359, 1.442695
        %v1403 = vpow.pop %v1402
        %v1404 = vmul.f32 %v1360, 1.442695
        %v1405 = vpow.pop %v1404
        %v1406 = vmul.f32 %v1361, 1.442695
        %v1407 = vpow.pop %v1406
        %v1408 = vmul.f32 %v1362, 1.442695
        %v1409 = vpow.pop %v1408
        %v1410 = vmul.f32 %v1363, 1.442695
        %v1411 = vpow.pop %v1410
        %v1412 = vmul.f32 %v1364, 1.442695
        %v1413 = vpow.pop %v1412
        %v1414 = vmul.f32 %v1365, 1.442695
        %v1415 = vpow.pop %v1414
        %v1416 = vmul.f32 %v1366, 1.442695
        %v1417 = vpow.pop %v1416
        %v1418 = vmul.f32 %v1367, 1.442695
        %v1419 = vpow.pop %v1418
        %v1420 = vmul.f32 %v1368, 1.442695
        %v1421 = vpow.pop %v1420
        %v1422 = vmul.f32 %v1369, 1.442695
        %v1423 = vpow.pop %v1422
        %v1424 = vmul.f32 %v1370, 1.442695
        %v1425 = vpow.pop %v1424
        %v1426 = vmul.f32 %v1371, 1.442695
        %v1427 = vpow.pop %v1426
        %v1428 = vmul.f32 %v1372, 1.442695
        %v1429 = vpow.pop %v1428
        %v1430 = vmul.f32 %v1373, 1.442695
        %v1431 = vpow.pop %v1430
        %v1432 = vmul.f32 %v1374, 1.442695
        %v1433 = vpow.pop %v1432
        %v1434 = vmul.f32 %v1375, 1.442695
        %v1435 = vpow.pop %v1434
        %v1436 = vmul.f32 %v1376, 1.442695
        %v1437 = vpow.pop %v1436
        %v1438 = vmul.f32 %v1377, 1.442695
        %v1439 = vpow.pop %v1438
        %v1440 = vmul.f32 %v1378, 1.442695
        %v1441 = vpow.pop %v1440
        %v1442 = vmul.f32 %v1379, 1.442695
        %v1443 = vpow.pop %v1442
        %v1444 = vmul.f32 %v1380, 1.442695
        %v1445 = vpow.pop %v1444
        %v1446 = vmul.f32 %v1381, 1.442695
        %v1447 = vpow.pop %v1446
        %v1448 = vmul.f32 %v1382, 1.442695
        %v1449 = vpow.pop %v1448
        %v1450 = vmul.f32 %v1383, 1.442695
        %v1451 = vpow.pop %v1450
        %v1452 = vmul.f32 %v1384, 1.442695
        %v1453 = vpow.pop %v1452
        %v1454 = vmul.f32 %v1385, 1.442695
        %v1455 = vpow.pop %v1454
        %v1456 = vmul.f32 %v1386, 1.442695
        %v1457 = vpow.pop %v1456
        %v1458 = vmul.f32 %v1387, 1.442695
        %v1459 = vpow.pop %v1458
        %v1460 = vadd.f32 %v1389, 1.0
        %v1461 = vadd.f32 %v1391, 1.0
        %v1462 = vadd.f32 %v1393, 1.0
        %v1463 = vadd.f32 %v1395, 1.0
        %v1464 = vadd.f32 %v1397, 1.0
        %v1465 = vadd.f32 %v1399, 1.0
        %v1466 = vadd.f32 %v1401, 1.0
        %v1467 = vadd.f32 %v1403, 1.0
        %v1468 = vadd.f32 %v1405, 1.0
        %v1469 = vadd.f32 %v1407, 1.0
        %v1470 = vadd.f32 %v1409, 1.0
        %v1471 = vadd.f32 %v1411, 1.0
        %v1472 = vadd.f32 %v1413, 1.0
        %v1473 = vadd.f32 %v1415, 1.0
        %v1474 = vadd.f32 %v1417, 1.0
        %v1475 = vadd.f32 %v1419, 1.0
        %v1476 = vadd.f32 %v1421, 1.0
        %v1477 = vadd.f32 %v1423, 1.0
        %v1478 = vadd.f32 %v1425, 1.0
        %v1479 = vadd.f32 %v1427, 1.0
        %v1480 = vadd.f32 %v1429, 1.0
        %v1481 = vadd.f32 %v1431, 1.0
        %v1482 = vadd.f32 %v1433, 1.0
        %v1483 = vadd.f32 %v1435, 1.0
        %v1484 = vadd.f32 %v1437, 1.0
        %v1485 = vadd.f32 %v1439, 1.0
        %v1486 = vadd.f32 %v1441, 1.0
        %v1487 = vadd.f32 %v1443, 1.0
        %v1488 = vadd.f32 %v1445, 1.0
        %v1489 = vadd.f32 %v1447, 1.0
        %v1490 = vadd.f32 %v1449, 1.0
        %v1491 = vadd.f32 %v1451, 1.0
        %v1492 = vadd.f32 %v1453, 1.0
        %v1493 = vadd.f32 %v1455, 1.0
        %v1494 = vadd.f32 %v1457, 1.0
        %v1495 = vadd.f32 %v1459, 1.0
        %v1496 = vrcp.pop %v1460
        %v1497 = vrcp.pop %v1461
        %v1498 = vrcp.pop %v1462
        %v1499 = vrcp.pop %v1463
        %v1500 = vrcp.pop %v1464
        %v1501 = vrcp.pop %v1465
        %v1502 = vrcp.pop %v1466
        %v1503 = vrcp.pop %v1467
        %v1504 = vrcp.pop %v1468
        %v1505 = vrcp.pop %v1469
        %v1506 = vrcp.pop %v1470
        %v1507 = vrcp.pop %v1471
        %v1508 = vrcp.pop %v1472
        %v1509 = vrcp.pop %v1473
        %v1510 = vrcp.pop %v1474
        %v1511 = vrcp.pop %v1475
        %v1512 = vrcp.pop %v1476
        %v1513 = vrcp.pop %v1477
        %v1514 = vrcp.pop %v1478
        %v1515 = vrcp.pop %v1479
        %v1516 = vrcp.pop %v1480
        %v1517 = vrcp.pop %v1481
        %v1518 = vrcp.pop %v1482
        %v1519 = vrcp.pop %v1483
        %v1520 = vrcp.pop %v1484
        %v1521 = vrcp.pop %v1485
        %v1522 = vrcp.pop %v1486
        %v1523 = vrcp.pop %v1487
        %v1524 = vrcp.pop %v1488
        %v1525 = vrcp.pop %v1489
        %v1526 = vrcp.pop %v1490
        %v1527 = vrcp.pop %v1491
        %v1528 = vrcp.pop %v1492
        %v1529 = vrcp.pop %v1493
        %v1530 = vrcp.pop %v1494
        %v1531 = vrcp.pop %v1495
        %v1532 = vmul.f32 %v1210, %v1496
        %v1533 = vmul.f32 %v1213, %v1497
        %v1534 = vmul.f32 %v1218, %v1498
        %v1535 = vmul.f32 %v1221, %v1499
        %v1536 = vmul.f32 %v1226, %v1500
        %v1537 = vmul.f32 %v1229, %v1501
        %v1538 = vmul.f32 %v1234, %v1502
        %v1539 = vmul.f32 %v1237, %v1503
        %v1540 = vmul.f32 %v1242, %v1504
        %v1541 = vmul.f32 %v1245, %v1505
        %v1542 = vmul.f32 %v1250, %v1506
        %v1543 = vmul.f32 %v1253, %v1507
        %v1544 = vmul.f32 %v1258, %v1508
        %v1545 = vmul.f32 %v1261, %v1509
        %v1546 = vmul.f32 %v1266, %v1510
        %v1547 = vmul.f32 %v1269, %v1511
        %v1548 = vmul.f32 %v1274, %v1512
        %v1549 = vmul.f32 %v1277, %v1513
        %v1550 = vmul.f32 %v1282, %v1514
        %v1551 = vmul.f32 %v1285, %v1515
        %v1552 = vmul.f32 %v1290, %v1516
        %v1553 = vmul.f32 %v1293, %v1517
        %v1554 = vmul.f32 %v1298, %v1518
        %v1555 = vmul.f32 %v1301, %v1519
        %v1556 = vmul.f32 %v1306, %v1520
        %v1557 = vmul.f32 %v1309, %v1521
        %v1558 = vmul.f32 %v1314, %v1522
        %v1559 = vmul.f32 %v1317, %v1523
        %v1560 = vmul.f32 %v1322, %v1524
        %v1561 = vmul.f32 %v1325, %v1525
        %v1562 = vmul.f32 %v1330, %v1526
        %v1563 = vmul.f32 %v1333, %v1527
        %v1564 = vmul.f32 %v1338, %v1528
        %v1565 = vmul.f32 %v1341, %v1529
        %v1566 = vmul.f32 %v1346, %v1530
        %v1567 = vmul.f32 %v1349, %v1531
        %v1568 = vlaneseq
        %v1569 = vshrl.u32 %v1568, 7
        %v1570 = vadd.s32 %v1569, 8
        %v1571 = vadd.s32 %v1569, 16
        %v1572 = vadd.s32 %v1569, 24
        %v1573 = vadd.s32 %v1569, 32
        %v1574 = vadd.s32 %v1569, 40
        %v1575 = vadd.s32 %v1569, 48
        %v1576 = vadd.s32 %v1569, 56
        %v1577 = vadd.s32 %v1569, 64
        %v1578 = vadd.s32 %v1569, 72
        %v1579 = vadd.s32 %v1569, 80
        %v1580 = vadd.s32 %v1569, 88
        %v1581 = vadd.s32 %v1569, 96
        %v1582 = vadd.s32 %v1569, 104
        %v1583 = vadd.s32 %v1569, 112
        %v1584 = vadd.s32 %v1569, 120
        %v1585 = vadd.s32 %v1569, 128
        %v1586 = vadd.s32 %v1569, 136
        %v1587 = vadd.s32 %v1569, 144
        %v1588 = vadd.s32 %v1569, 152
        %v1589 = vadd.s32 %v1569, 160
        %v1590 = vadd.s32 %v1569, 168
        %v1591 = vadd.s32 %v1569, 176
        %v1592 = vadd.s32 %v1569, 184
        %v1593 = vadd.s32 %v1569, 192
        %v1594 = vadd.s32 %v1569, 200
        %v1595 = vadd.s32 %v1569, 208
        %v1596 = vadd.s32 %v1569, 216
        %v1597 = vadd.s32 %v1569, 224
        %v1598 = vadd.s32 %v1569, 232
        %v1599 = vadd.s32 %v1569, 240
        %v1600 = vadd.s32 %v1569, 248
        %v1601 = vadd.s32 %v1569, 256
        %v1602 = vadd.s32 %v1569, 264
        %v1603 = vadd.s32 %v1569, 272
        %v1604 = vadd.s32 %v1569, 280
        %vm1605 = vcmp.ge.s32.totalorder %v1569, 16
        %vm1606 = vcmp.ge.s32.totalorder %v1570, 16
        %vm1607 = vcmp.ge.s32.totalorder %v1571, 16
        %vm1608 = vcmp.ge.s32.totalorder %v1572, 16
        %vm1609 = vcmp.ge.s32.totalorder %v1573, 16
        %vm1610 = vcmp.ge.s32.totalorder %v1574, 16
        %vm1611 = vcmp.ge.s32.totalorder %v1575, 16
        %vm1612 = vcmp.ge.s32.totalorder %v1576, 16
        %vm1613 = vcmp.ge.s32.totalorder %v1577, 16
        %vm1614 = vcmp.ge.s32.totalorder %v1578, 16
        %vm1615 = vcmp.ge.s32.totalorder %v1579, 16
        %vm1616 = vcmp.ge.s32.totalorder %v1580, 16
        %vm1617 = vcmp.ge.s32.totalorder %v1581, 16
        %vm1618 = vcmp.ge.s32.totalorder %v1582, 16
        %vm1619 = vcmp.ge.s32.totalorder %v1583, 16
        %vm1620 = vcmp.ge.s32.totalorder %v1584, 16
        %vm1621 = vcmp.ge.s32.totalorder %v1585, 16
        %vm1622 = vcmp.ge.s32.totalorder %v1586, 16
        %vm1623 = vcmp.ge.s32.totalorder %v1587, 16
        %vm1624 = vcmp.ge.s32.totalorder %v1588, 16
        %vm1625 = vcmp.ge.s32.totalorder %v1589, 16
        %vm1626 = vcmp.ge.s32.totalorder %v1590, 16
        %vm1627 = vcmp.ge.s32.totalorder %v1591, 16
        %vm1628 = vcmp.ge.s32.totalorder %v1592, 16
        %vm1629 = vcmp.ge.s32.totalorder %v1593, 16
        %vm1630 = vcmp.ge.s32.totalorder %v1594, 16
        %vm1631 = vcmp.ge.s32.totalorder %v1595, 16
        %vm1632 = vcmp.ge.s32.totalorder %v1596, 16
        %vm1633 = vcmp.ge.s32.totalorder %v1597, 16
        %vm1634 = vcmp.ge.s32.totalorder %v1598, 16
        %vm1635 = vcmp.ge.s32.totalorder %v1599, 16
        %vm1636 = vcmp.ge.s32.totalorder %v1600, 16
        %vm1637 = vcmp.ge.s32.totalorder %v1601, 16
        %vm1638 = vcmp.ge.s32.totalorder %v1602, 16
        %vm1639 = vcmp.ge.s32.totalorder %v1603, 16
        %vm1640 = vcmp.ge.s32.totalorder %v1604, 16
        %p1641 = scmp.gt.s32.totalorder %s37, 0
        %s1642 = scalar_select %p1641, 1, 0
        %v1643 = vstv %s1642
        %vm1644 = vcmp.eq.s32.totalorder %v1643, 1
        %vm1645 = vmor %vm1605, %vm1644
        %vm1646 = vmor %vm1606, %vm1644
        %vm1647 = vmor %vm1607, %vm1644
        %vm1648 = vmor %vm1608, %vm1644
        %vm1649 = vmor %vm1609, %vm1644
        %vm1650 = vmor %vm1610, %vm1644
        %vm1651 = vmor %vm1611, %vm1644
        %vm1652 = vmor %vm1612, %vm1644
        %vm1653 = vmor %vm1613, %vm1644
        %vm1654 = vmor %vm1614, %vm1644
        %vm1655 = vmor %vm1615, %vm1644
        %vm1656 = vmor %vm1616, %vm1644
        %vm1657 = vmor %vm1617, %vm1644
        %vm1658 = vmor %vm1618, %vm1644
        %vm1659 = vmor %vm1619, %vm1644
        %vm1660 = vmor %vm1620, %vm1644
        %vm1661 = vmor %vm1621, %vm1644
        %vm1662 = vmor %vm1622, %vm1644
        %vm1663 = vmor %vm1623, %vm1644
        %vm1664 = vmor %vm1624, %vm1644
        %vm1665 = vmor %vm1625, %vm1644
        %vm1666 = vmor %vm1626, %vm1644
        %vm1667 = vmor %vm1627, %vm1644
        %vm1668 = vmor %vm1628, %vm1644
        %vm1669 = vmor %vm1629, %vm1644
        %vm1670 = vmor %vm1630, %vm1644
        %vm1671 = vmor %vm1631, %vm1644
        %vm1672 = vmor %vm1632, %vm1644
        %vm1673 = vmor %vm1633, %vm1644
        %vm1674 = vmor %vm1634, %vm1644
        %vm1675 = vmor %vm1635, %vm1644
        %vm1676 = vmor %vm1636, %vm1644
        %vm1677 = vmor %vm1637, %vm1644
        %vm1678 = vmor %vm1638, %vm1644
        %vm1679 = vmor %vm1639, %vm1644
        %vm1680 = vmor %vm1640, %vm1644
        %vm1681 = vcmp.lt.s32.totalorder %v1569, 272
        %vm1682 = vcmp.lt.s32.totalorder %v1570, 272
        %vm1683 = vcmp.lt.s32.totalorder %v1571, 272
        %vm1684 = vcmp.lt.s32.totalorder %v1572, 272
        %vm1685 = vcmp.lt.s32.totalorder %v1573, 272
        %vm1686 = vcmp.lt.s32.totalorder %v1574, 272
        %vm1687 = vcmp.lt.s32.totalorder %v1575, 272
        %vm1688 = vcmp.lt.s32.totalorder %v1576, 272
        %vm1689 = vcmp.lt.s32.totalorder %v1577, 272
        %vm1690 = vcmp.lt.s32.totalorder %v1578, 272
        %vm1691 = vcmp.lt.s32.totalorder %v1579, 272
        %vm1692 = vcmp.lt.s32.totalorder %v1580, 272
        %vm1693 = vcmp.lt.s32.totalorder %v1581, 272
        %vm1694 = vcmp.lt.s32.totalorder %v1582, 272
        %vm1695 = vcmp.lt.s32.totalorder %v1583, 272
        %vm1696 = vcmp.lt.s32.totalorder %v1584, 272
        %vm1697 = vcmp.lt.s32.totalorder %v1585, 272
        %vm1698 = vcmp.lt.s32.totalorder %v1586, 272
        %vm1699 = vcmp.lt.s32.totalorder %v1587, 272
        %vm1700 = vcmp.lt.s32.totalorder %v1588, 272
        %vm1701 = vcmp.lt.s32.totalorder %v1589, 272
        %vm1702 = vcmp.lt.s32.totalorder %v1590, 272
        %vm1703 = vcmp.lt.s32.totalorder %v1591, 272
        %vm1704 = vcmp.lt.s32.totalorder %v1592, 272
        %vm1705 = vcmp.lt.s32.totalorder %v1593, 272
        %vm1706 = vcmp.lt.s32.totalorder %v1594, 272
        %vm1707 = vcmp.lt.s32.totalorder %v1595, 272
        %vm1708 = vcmp.lt.s32.totalorder %v1596, 272
        %vm1709 = vcmp.lt.s32.totalorder %v1597, 272
        %vm1710 = vcmp.lt.s32.totalorder %v1598, 272
        %vm1711 = vcmp.lt.s32.totalorder %v1599, 272
        %vm1712 = vcmp.lt.s32.totalorder %v1600, 272
        %vm1713 = vcmp.lt.s32.totalorder %v1601, 272
        %vm1714 = vcmp.lt.s32.totalorder %v1602, 272
        %vm1715 = vcmp.lt.s32.totalorder %v1603, 272
        %vm1716 = vcmp.lt.s32.totalorder %v1604, 272
        %p1717 = scmp.lt.s32.totalorder %s37, 0
        %s1718 = scalar_select %p1717, 1, 0
        %v1719 = vstv %s1718
        %vm1720 = vcmp.eq.s32.totalorder %v1719, 1
        %vm1721 = vmor %vm1681, %vm1720
        %vm1722 = vmor %vm1682, %vm1720
        %vm1723 = vmor %vm1683, %vm1720
        %vm1724 = vmor %vm1684, %vm1720
        %vm1725 = vmor %vm1685, %vm1720
        %vm1726 = vmor %vm1686, %vm1720
        %vm1727 = vmor %vm1687, %vm1720
        %vm1728 = vmor %vm1688, %vm1720
        %vm1729 = vmor %vm1689, %vm1720
        %vm1730 = vmor %vm1690, %vm1720
        %vm1731 = vmor %vm1691, %vm1720
        %vm1732 = vmor %vm1692, %vm1720
        %vm1733 = vmor %vm1693, %vm1720
        %vm1734 = vmor %vm1694, %vm1720
        %vm1735 = vmor %vm1695, %vm1720
        %vm1736 = vmor %vm1696, %vm1720
        %vm1737 = vmor %vm1697, %vm1720
        %vm1738 = vmor %vm1698, %vm1720
        %vm1739 = vmor %vm1699, %vm1720
        %vm1740 = vmor %vm1700, %vm1720
        %vm1741 = vmor %vm1701, %vm1720
        %vm1742 = vmor %vm1702, %vm1720
        %vm1743 = vmor %vm1703, %vm1720
        %vm1744 = vmor %vm1704, %vm1720
        %vm1745 = vmor %vm1705, %vm1720
        %vm1746 = vmor %vm1706, %vm1720
        %vm1747 = vmor %vm1707, %vm1720
        %vm1748 = vmor %vm1708, %vm1720
        %vm1749 = vmor %vm1709, %vm1720
        %vm1750 = vmor %vm1710, %vm1720
        %vm1751 = vmor %vm1711, %vm1720
        %vm1752 = vmor %vm1712, %vm1720
        %vm1753 = vmor %vm1713, %vm1720
        %vm1754 = vmor %vm1714, %vm1720
        %vm1755 = vmor %vm1715, %vm1720
        %vm1756 = vmor %vm1716, %vm1720
        %vm1757 = vmand %vm1645, %vm1721
        %vm1758 = vmand %vm1646, %vm1722
        %vm1759 = vmand %vm1647, %vm1723
        %vm1760 = vmand %vm1648, %vm1724
        %vm1761 = vmand %vm1649, %vm1725
        %vm1762 = vmand %vm1650, %vm1726
        %vm1763 = vmand %vm1651, %vm1727
        %vm1764 = vmand %vm1652, %vm1728
        %vm1765 = vmand %vm1653, %vm1729
        %vm1766 = vmand %vm1654, %vm1730
        %vm1767 = vmand %vm1655, %vm1731
        %vm1768 = vmand %vm1656, %vm1732
        %vm1769 = vmand %vm1657, %vm1733
        %vm1770 = vmand %vm1658, %vm1734
        %vm1771 = vmand %vm1659, %vm1735
        %vm1772 = vmand %vm1660, %vm1736
        %vm1773 = vmand %vm1661, %vm1737
        %vm1774 = vmand %vm1662, %vm1738
        %vm1775 = vmand %vm1663, %vm1739
        %vm1776 = vmand %vm1664, %vm1740
        %vm1777 = vmand %vm1665, %vm1741
        %vm1778 = vmand %vm1666, %vm1742
        %vm1779 = vmand %vm1667, %vm1743
        %vm1780 = vmand %vm1668, %vm1744
        %vm1781 = vmand %vm1669, %vm1745
        %vm1782 = vmand %vm1670, %vm1746
        %vm1783 = vmand %vm1671, %vm1747
        %vm1784 = vmand %vm1672, %vm1748
        %vm1785 = vmand %vm1673, %vm1749
        %vm1786 = vmand %vm1674, %vm1750
        %vm1787 = vmand %vm1675, %vm1751
        %vm1788 = vmand %vm1676, %vm1752
        %vm1789 = vmand %vm1677, %vm1753
        %vm1790 = vmand %vm1678, %vm1754
        %vm1791 = vmand %vm1679, %vm1755
        %vm1792 = vmand %vm1680, %vm1756
        %v1793 = vsel %vm1757, 1, 0
        %v1794 = vsel %vm1758, 1, 0
        %v1795 = vsel %vm1759, 1, 0
        %v1796 = vsel %vm1760, 1, 0
        %v1797 = vsel %vm1761, 1, 0
        %v1798 = vsel %vm1762, 1, 0
        %v1799 = vsel %vm1763, 1, 0
        %v1800 = vsel %vm1764, 1, 0
        %v1801 = vsel %vm1765, 1, 0
        %v1802 = vsel %vm1766, 1, 0
        %v1803 = vsel %vm1767, 1, 0
        %v1804 = vsel %vm1768, 1, 0
        %v1805 = vsel %vm1769, 1, 0
        %v1806 = vsel %vm1770, 1, 0
        %v1807 = vsel %vm1771, 1, 0
        %v1808 = vsel %vm1772, 1, 0
        %v1809 = vsel %vm1773, 1, 0
        %v1810 = vsel %vm1774, 1, 0
        %v1811 = vsel %vm1775, 1, 0
        %v1812 = vsel %vm1776, 1, 0
        %v1813 = vsel %vm1777, 1, 0
        %v1814 = vsel %vm1778, 1, 0
        %v1815 = vsel %vm1779, 1, 0
        %v1816 = vsel %vm1780, 1, 0
        %v1817 = vsel %vm1781, 1, 0
        %v1818 = vsel %vm1782, 1, 0
        %v1819 = vsel %vm1783, 1, 0
        %v1820 = vsel %vm1784, 1, 0
        %v1821 = vsel %vm1785, 1, 0
        %v1822 = vsel %vm1786, 1, 0
        %v1823 = vsel %vm1787, 1, 0
        %v1824 = vsel %vm1788, 1, 0
        %v1825 = vsel %vm1789, 1, 0
        %v1826 = vsel %vm1790, 1, 0
        %v1827 = vsel %vm1791, 1, 0
        %v1828 = vsel %vm1792, 1, 0
        %vm1829 = vcmp.eq.s32.totalorder %v1793, 1
        %vm1830 = vcmp.eq.s32.totalorder %v1794, 1
        %vm1831 = vcmp.eq.s32.totalorder %v1795, 1
        %vm1832 = vcmp.eq.s32.totalorder %v1796, 1
        %vm1833 = vcmp.eq.s32.totalorder %v1797, 1
        %vm1834 = vcmp.eq.s32.totalorder %v1798, 1
        %vm1835 = vcmp.eq.s32.totalorder %v1799, 1
        %vm1836 = vcmp.eq.s32.totalorder %v1800, 1
        %vm1837 = vcmp.eq.s32.totalorder %v1801, 1
        %vm1838 = vcmp.eq.s32.totalorder %v1802, 1
        %vm1839 = vcmp.eq.s32.totalorder %v1803, 1
        %vm1840 = vcmp.eq.s32.totalorder %v1804, 1
        %vm1841 = vcmp.eq.s32.totalorder %v1805, 1
        %vm1842 = vcmp.eq.s32.totalorder %v1806, 1
        %vm1843 = vcmp.eq.s32.totalorder %v1807, 1
        %vm1844 = vcmp.eq.s32.totalorder %v1808, 1
        %vm1845 = vcmp.eq.s32.totalorder %v1809, 1
        %vm1846 = vcmp.eq.s32.totalorder %v1810, 1
        %vm1847 = vcmp.eq.s32.totalorder %v1811, 1
        %vm1848 = vcmp.eq.s32.totalorder %v1812, 1
        %vm1849 = vcmp.eq.s32.totalorder %v1813, 1
        %vm1850 = vcmp.eq.s32.totalorder %v1814, 1
        %vm1851 = vcmp.eq.s32.totalorder %v1815, 1
        %vm1852 = vcmp.eq.s32.totalorder %v1816, 1
        %vm1853 = vcmp.eq.s32.totalorder %v1817, 1
        %vm1854 = vcmp.eq.s32.totalorder %v1818, 1
        %vm1855 = vcmp.eq.s32.totalorder %v1819, 1
        %vm1856 = vcmp.eq.s32.totalorder %v1820, 1
        %vm1857 = vcmp.eq.s32.totalorder %v1821, 1
        %vm1858 = vcmp.eq.s32.totalorder %v1822, 1
        %vm1859 = vcmp.eq.s32.totalorder %v1823, 1
        %vm1860 = vcmp.eq.s32.totalorder %v1824, 1
        %vm1861 = vcmp.eq.s32.totalorder %v1825, 1
        %vm1862 = vcmp.eq.s32.totalorder %v1826, 1
        %vm1863 = vcmp.eq.s32.totalorder %v1827, 1
        %vm1864 = vcmp.eq.s32.totalorder %v1828, 1
        %v1865 = vsel %vm1829, %v1532, 0.0
        %v1866 = vsel %vm1830, %v1533, 0.0
        %v1867 = vsel %vm1831, %v1534, 0.0
        %v1868 = vsel %vm1832, %v1535, 0.0
        %v1869 = vsel %vm1833, %v1536, 0.0
        %v1870 = vsel %vm1834, %v1537, 0.0
        %v1871 = vsel %vm1835, %v1538, 0.0
        %v1872 = vsel %vm1836, %v1539, 0.0
        %v1873 = vsel %vm1837, %v1540, 0.0
        %v1874 = vsel %vm1838, %v1541, 0.0
        %v1875 = vsel %vm1839, %v1542, 0.0
        %v1876 = vsel %vm1840, %v1543, 0.0
        %v1877 = vsel %vm1841, %v1544, 0.0
        %v1878 = vsel %vm1842, %v1545, 0.0
        %v1879 = vsel %vm1843, %v1546, 0.0
        %v1880 = vsel %vm1844, %v1547, 0.0
        %v1881 = vsel %vm1845, %v1548, 0.0
        %v1882 = vsel %vm1846, %v1549, 0.0
        %v1883 = vsel %vm1847, %v1550, 0.0
        %v1884 = vsel %vm1848, %v1551, 0.0
        %v1885 = vsel %vm1849, %v1552, 0.0
        %v1886 = vsel %vm1850, %v1553, 0.0
        %v1887 = vsel %vm1851, %v1554, 0.0
        %v1888 = vsel %vm1852, %v1555, 0.0
        %v1889 = vsel %vm1853, %v1556, 0.0
        %v1890 = vsel %vm1854, %v1557, 0.0
        %v1891 = vsel %vm1855, %v1558, 0.0
        %v1892 = vsel %vm1856, %v1559, 0.0
        %v1893 = vsel %vm1857, %v1560, 0.0
        %v1894 = vsel %vm1858, %v1561, 0.0
        %v1895 = vsel %vm1859, %v1562, 0.0
        %v1896 = vsel %vm1860, %v1563, 0.0
        %v1897 = vsel %vm1861, %v1564, 0.0
        %v1898 = vsel %vm1862, %v1565, 0.0
        %v1899 = vsel %vm1863, %v1566, 0.0
        %v1900 = vsel %vm1864, %v1567, 0.0
        %vm1901 = vcmp.lt.s32.totalorder %v1569, 0
        %v1902 = vsub.s32 0, %v1569
        %v1903 = vsel %vm1901, %v1902, %v1569
        %v1904 = vshrl.u32 %v1903, 4
        %v1905 = vand.u32 %v1903, 15
        %v1906 = vsub.s32 0, %v1905
        %v1907 = vsel %vm1901, %v1906, %v1905
        %vm1908 = vcmp.lt.s32.totalorder %v1570, 0
        %v1909 = vsub.s32 0, %v1570
        %v1910 = vsel %vm1908, %v1909, %v1570
        %v1911 = vshrl.u32 %v1910, 4
        %v1912 = vand.u32 %v1910, 15
        %v1913 = vsub.s32 0, %v1912
        %v1914 = vsel %vm1908, %v1913, %v1912
        %vm1915 = vcmp.lt.s32.totalorder %v1571, 0
        %v1916 = vsub.s32 0, %v1571
        %v1917 = vsel %vm1915, %v1916, %v1571
        %v1918 = vshrl.u32 %v1917, 4
        %v1919 = vand.u32 %v1917, 15
        %v1920 = vsub.s32 0, %v1919
        %v1921 = vsel %vm1915, %v1920, %v1919
        %vm1922 = vcmp.lt.s32.totalorder %v1572, 0
        %v1923 = vsub.s32 0, %v1572
        %v1924 = vsel %vm1922, %v1923, %v1572
        %v1925 = vshrl.u32 %v1924, 4
        %v1926 = vand.u32 %v1924, 15
        %v1927 = vsub.s32 0, %v1926
        %v1928 = vsel %vm1922, %v1927, %v1926
        %vm1929 = vcmp.lt.s32.totalorder %v1573, 0
        %v1930 = vsub.s32 0, %v1573
        %v1931 = vsel %vm1929, %v1930, %v1573
        %v1932 = vshrl.u32 %v1931, 4
        %v1933 = vand.u32 %v1931, 15
        %v1934 = vsub.s32 0, %v1933
        %v1935 = vsel %vm1929, %v1934, %v1933
        %vm1936 = vcmp.lt.s32.totalorder %v1574, 0
        %v1937 = vsub.s32 0, %v1574
        %v1938 = vsel %vm1936, %v1937, %v1574
        %v1939 = vshrl.u32 %v1938, 4
        %v1940 = vand.u32 %v1938, 15
        %v1941 = vsub.s32 0, %v1940
        %v1942 = vsel %vm1936, %v1941, %v1940
        %vm1943 = vcmp.lt.s32.totalorder %v1575, 0
        %v1944 = vsub.s32 0, %v1575
        %v1945 = vsel %vm1943, %v1944, %v1575
        %v1946 = vshrl.u32 %v1945, 4
        %v1947 = vand.u32 %v1945, 15
        %v1948 = vsub.s32 0, %v1947
        %v1949 = vsel %vm1943, %v1948, %v1947
        %vm1950 = vcmp.lt.s32.totalorder %v1576, 0
        %v1951 = vsub.s32 0, %v1576
        %v1952 = vsel %vm1950, %v1951, %v1576
        %v1953 = vshrl.u32 %v1952, 4
        %v1954 = vand.u32 %v1952, 15
        %v1955 = vsub.s32 0, %v1954
        %v1956 = vsel %vm1950, %v1955, %v1954
        %vm1957 = vcmp.lt.s32.totalorder %v1577, 0
        %v1958 = vsub.s32 0, %v1577
        %v1959 = vsel %vm1957, %v1958, %v1577
        %v1960 = vshrl.u32 %v1959, 4
        %v1961 = vand.u32 %v1959, 15
        %v1962 = vsub.s32 0, %v1961
        %v1963 = vsel %vm1957, %v1962, %v1961
        %vm1964 = vcmp.lt.s32.totalorder %v1578, 0
        %v1965 = vsub.s32 0, %v1578
        %v1966 = vsel %vm1964, %v1965, %v1578
        %v1967 = vshrl.u32 %v1966, 4
        %v1968 = vand.u32 %v1966, 15
        %v1969 = vsub.s32 0, %v1968
        %v1970 = vsel %vm1964, %v1969, %v1968
        %vm1971 = vcmp.lt.s32.totalorder %v1579, 0
        %v1972 = vsub.s32 0, %v1579
        %v1973 = vsel %vm1971, %v1972, %v1579
        %v1974 = vshrl.u32 %v1973, 4
        %v1975 = vand.u32 %v1973, 15
        %v1976 = vsub.s32 0, %v1975
        %v1977 = vsel %vm1971, %v1976, %v1975
        %vm1978 = vcmp.lt.s32.totalorder %v1580, 0
        %v1979 = vsub.s32 0, %v1580
        %v1980 = vsel %vm1978, %v1979, %v1580
        %v1981 = vshrl.u32 %v1980, 4
        %v1982 = vand.u32 %v1980, 15
        %v1983 = vsub.s32 0, %v1982
        %v1984 = vsel %vm1978, %v1983, %v1982
        %vm1985 = vcmp.lt.s32.totalorder %v1581, 0
        %v1986 = vsub.s32 0, %v1581
        %v1987 = vsel %vm1985, %v1986, %v1581
        %v1988 = vshrl.u32 %v1987, 4
        %v1989 = vand.u32 %v1987, 15
        %v1990 = vsub.s32 0, %v1989
        %v1991 = vsel %vm1985, %v1990, %v1989
        %vm1992 = vcmp.lt.s32.totalorder %v1582, 0
        %v1993 = vsub.s32 0, %v1582
        %v1994 = vsel %vm1992, %v1993, %v1582
        %v1995 = vshrl.u32 %v1994, 4
        %v1996 = vand.u32 %v1994, 15
        %v1997 = vsub.s32 0, %v1996
        %v1998 = vsel %vm1992, %v1997, %v1996
        %vm1999 = vcmp.lt.s32.totalorder %v1583, 0
        %v2000 = vsub.s32 0, %v1583
        %v2001 = vsel %vm1999, %v2000, %v1583
        %v2002 = vshrl.u32 %v2001, 4
        %v2003 = vand.u32 %v2001, 15
        %v2004 = vsub.s32 0, %v2003
        %v2005 = vsel %vm1999, %v2004, %v2003
        %vm2006 = vcmp.lt.s32.totalorder %v1584, 0
        %v2007 = vsub.s32 0, %v1584
        %v2008 = vsel %vm2006, %v2007, %v1584
        %v2009 = vshrl.u32 %v2008, 4
        %v2010 = vand.u32 %v2008, 15
        %v2011 = vsub.s32 0, %v2010
        %v2012 = vsel %vm2006, %v2011, %v2010
        %vm2013 = vcmp.lt.s32.totalorder %v1585, 0
        %v2014 = vsub.s32 0, %v1585
        %v2015 = vsel %vm2013, %v2014, %v1585
        %v2016 = vshrl.u32 %v2015, 4
        %v2017 = vand.u32 %v2015, 15
        %v2018 = vsub.s32 0, %v2017
        %v2019 = vsel %vm2013, %v2018, %v2017
        %vm2020 = vcmp.lt.s32.totalorder %v1586, 0
        %v2021 = vsub.s32 0, %v1586
        %v2022 = vsel %vm2020, %v2021, %v1586
        %v2023 = vshrl.u32 %v2022, 4
        %v2024 = vand.u32 %v2022, 15
        %v2025 = vsub.s32 0, %v2024
        %v2026 = vsel %vm2020, %v2025, %v2024
        %vm2027 = vcmp.lt.s32.totalorder %v1587, 0
        %v2028 = vsub.s32 0, %v1587
        %v2029 = vsel %vm2027, %v2028, %v1587
        %v2030 = vshrl.u32 %v2029, 4
        %v2031 = vand.u32 %v2029, 15
        %v2032 = vsub.s32 0, %v2031
        %v2033 = vsel %vm2027, %v2032, %v2031
        %vm2034 = vcmp.lt.s32.totalorder %v1588, 0
        %v2035 = vsub.s32 0, %v1588
        %v2036 = vsel %vm2034, %v2035, %v1588
        %v2037 = vshrl.u32 %v2036, 4
        %v2038 = vand.u32 %v2036, 15
        %v2039 = vsub.s32 0, %v2038
        %v2040 = vsel %vm2034, %v2039, %v2038
        %vm2041 = vcmp.lt.s32.totalorder %v1589, 0
        %v2042 = vsub.s32 0, %v1589
        %v2043 = vsel %vm2041, %v2042, %v1589
        %v2044 = vshrl.u32 %v2043, 4
        %v2045 = vand.u32 %v2043, 15
        %v2046 = vsub.s32 0, %v2045
        %v2047 = vsel %vm2041, %v2046, %v2045
        %vm2048 = vcmp.lt.s32.totalorder %v1590, 0
        %v2049 = vsub.s32 0, %v1590
        %v2050 = vsel %vm2048, %v2049, %v1590
        %v2051 = vshrl.u32 %v2050, 4
        %v2052 = vand.u32 %v2050, 15
        %v2053 = vsub.s32 0, %v2052
        %v2054 = vsel %vm2048, %v2053, %v2052
        %vm2055 = vcmp.lt.s32.totalorder %v1591, 0
        %v2056 = vsub.s32 0, %v1591
        %v2057 = vsel %vm2055, %v2056, %v1591
        %v2058 = vshrl.u32 %v2057, 4
        %v2059 = vand.u32 %v2057, 15
        %v2060 = vsub.s32 0, %v2059
        %v2061 = vsel %vm2055, %v2060, %v2059
        %vm2062 = vcmp.lt.s32.totalorder %v1592, 0
        %v2063 = vsub.s32 0, %v1592
        %v2064 = vsel %vm2062, %v2063, %v1592
        %v2065 = vshrl.u32 %v2064, 4
        %v2066 = vand.u32 %v2064, 15
        %v2067 = vsub.s32 0, %v2066
        %v2068 = vsel %vm2062, %v2067, %v2066
        %vm2069 = vcmp.lt.s32.totalorder %v1593, 0
        %v2070 = vsub.s32 0, %v1593
        %v2071 = vsel %vm2069, %v2070, %v1593
        %v2072 = vshrl.u32 %v2071, 4
        %v2073 = vand.u32 %v2071, 15
        %v2074 = vsub.s32 0, %v2073
        %v2075 = vsel %vm2069, %v2074, %v2073
        %vm2076 = vcmp.lt.s32.totalorder %v1594, 0
        %v2077 = vsub.s32 0, %v1594
        %v2078 = vsel %vm2076, %v2077, %v1594
        %v2079 = vshrl.u32 %v2078, 4
        %v2080 = vand.u32 %v2078, 15
        %v2081 = vsub.s32 0, %v2080
        %v2082 = vsel %vm2076, %v2081, %v2080
        %vm2083 = vcmp.lt.s32.totalorder %v1595, 0
        %v2084 = vsub.s32 0, %v1595
        %v2085 = vsel %vm2083, %v2084, %v1595
        %v2086 = vshrl.u32 %v2085, 4
        %v2087 = vand.u32 %v2085, 15
        %v2088 = vsub.s32 0, %v2087
        %v2089 = vsel %vm2083, %v2088, %v2087
        %vm2090 = vcmp.lt.s32.totalorder %v1596, 0
        %v2091 = vsub.s32 0, %v1596
        %v2092 = vsel %vm2090, %v2091, %v1596
        %v2093 = vshrl.u32 %v2092, 4
        %v2094 = vand.u32 %v2092, 15
        %v2095 = vsub.s32 0, %v2094
        %v2096 = vsel %vm2090, %v2095, %v2094
        %vm2097 = vcmp.lt.s32.totalorder %v1597, 0
        %v2098 = vsub.s32 0, %v1597
        %v2099 = vsel %vm2097, %v2098, %v1597
        %v2100 = vshrl.u32 %v2099, 4
        %v2101 = vand.u32 %v2099, 15
        %v2102 = vsub.s32 0, %v2101
        %v2103 = vsel %vm2097, %v2102, %v2101
        %vm2104 = vcmp.lt.s32.totalorder %v1598, 0
        %v2105 = vsub.s32 0, %v1598
        %v2106 = vsel %vm2104, %v2105, %v1598
        %v2107 = vshrl.u32 %v2106, 4
        %v2108 = vand.u32 %v2106, 15
        %v2109 = vsub.s32 0, %v2108
        %v2110 = vsel %vm2104, %v2109, %v2108
        %vm2111 = vcmp.lt.s32.totalorder %v1599, 0
        %v2112 = vsub.s32 0, %v1599
        %v2113 = vsel %vm2111, %v2112, %v1599
        %v2114 = vshrl.u32 %v2113, 4
        %v2115 = vand.u32 %v2113, 15
        %v2116 = vsub.s32 0, %v2115
        %v2117 = vsel %vm2111, %v2116, %v2115
        %vm2118 = vcmp.lt.s32.totalorder %v1600, 0
        %v2119 = vsub.s32 0, %v1600
        %v2120 = vsel %vm2118, %v2119, %v1600
        %v2121 = vshrl.u32 %v2120, 4
        %v2122 = vand.u32 %v2120, 15
        %v2123 = vsub.s32 0, %v2122
        %v2124 = vsel %vm2118, %v2123, %v2122
        %vm2125 = vcmp.lt.s32.totalorder %v1601, 0
        %v2126 = vsub.s32 0, %v1601
        %v2127 = vsel %vm2125, %v2126, %v1601
        %v2128 = vshrl.u32 %v2127, 4
        %v2129 = vand.u32 %v2127, 15
        %v2130 = vsub.s32 0, %v2129
        %v2131 = vsel %vm2125, %v2130, %v2129
        %vm2132 = vcmp.lt.s32.totalorder %v1602, 0
        %v2133 = vsub.s32 0, %v1602
        %v2134 = vsel %vm2132, %v2133, %v1602
        %v2135 = vshrl.u32 %v2134, 4
        %v2136 = vand.u32 %v2134, 15
        %v2137 = vsub.s32 0, %v2136
        %v2138 = vsel %vm2132, %v2137, %v2136
        %vm2139 = vcmp.lt.s32.totalorder %v1603, 0
        %v2140 = vsub.s32 0, %v1603
        %v2141 = vsel %vm2139, %v2140, %v1603
        %v2142 = vshrl.u32 %v2141, 4
        %v2143 = vand.u32 %v2141, 15
        %v2144 = vsub.s32 0, %v2143
        %v2145 = vsel %vm2139, %v2144, %v2143
        %vm2146 = vcmp.lt.s32.totalorder %v1604, 0
        %v2147 = vsub.s32 0, %v1604
        %v2148 = vsel %vm2146, %v2147, %v1604
        %v2149 = vshrl.u32 %v2148, 4
        %v2150 = vand.u32 %v2148, 15
        %v2151 = vsub.s32 0, %v2150
        %v2152 = vsel %vm2146, %v2151, %v2150
        %vm2153 = vcmp.ne.s32.totalorder %v1907, 0
        %vm2154 = vcmp.ne.s32.totalorder %v1914, 0
        %vm2155 = vcmp.ne.s32.totalorder %v1921, 0
        %vm2156 = vcmp.ne.s32.totalorder %v1928, 0
        %vm2157 = vcmp.ne.s32.totalorder %v1935, 0
        %vm2158 = vcmp.ne.s32.totalorder %v1942, 0
        %vm2159 = vcmp.ne.s32.totalorder %v1949, 0
        %vm2160 = vcmp.ne.s32.totalorder %v1956, 0
        %vm2161 = vcmp.ne.s32.totalorder %v1963, 0
        %vm2162 = vcmp.ne.s32.totalorder %v1970, 0
        %vm2163 = vcmp.ne.s32.totalorder %v1977, 0
        %vm2164 = vcmp.ne.s32.totalorder %v1984, 0
        %vm2165 = vcmp.ne.s32.totalorder %v1991, 0
        %vm2166 = vcmp.ne.s32.totalorder %v1998, 0
        %vm2167 = vcmp.ne.s32.totalorder %v2005, 0
        %vm2168 = vcmp.ne.s32.totalorder %v2012, 0
        %vm2169 = vcmp.ne.s32.totalorder %v2019, 0
        %vm2170 = vcmp.ne.s32.totalorder %v2026, 0
        %vm2171 = vcmp.ne.s32.totalorder %v2033, 0
        %vm2172 = vcmp.ne.s32.totalorder %v2040, 0
        %vm2173 = vcmp.ne.s32.totalorder %v2047, 0
        %vm2174 = vcmp.ne.s32.totalorder %v2054, 0
        %vm2175 = vcmp.ne.s32.totalorder %v2061, 0
        %vm2176 = vcmp.ne.s32.totalorder %v2068, 0
        %vm2177 = vcmp.ne.s32.totalorder %v2075, 0
        %vm2178 = vcmp.ne.s32.totalorder %v2082, 0
        %vm2179 = vcmp.ne.s32.totalorder %v2089, 0
        %vm2180 = vcmp.ne.s32.totalorder %v2096, 0
        %vm2181 = vcmp.ne.s32.totalorder %v2103, 0
        %vm2182 = vcmp.ne.s32.totalorder %v2110, 0
        %vm2183 = vcmp.ne.s32.totalorder %v2117, 0
        %vm2184 = vcmp.ne.s32.totalorder %v2124, 0
        %vm2185 = vcmp.ne.s32.totalorder %v2131, 0
        %vm2186 = vcmp.ne.s32.totalorder %v2138, 0
        %vm2187 = vcmp.ne.s32.totalorder %v2145, 0
        %vm2188 = vcmp.ne.s32.totalorder %v2152, 0
        %vm2189 = vcmp.lt.s32.totalorder %v1907, 0
        %vm2190 = vcmp.lt.s32.totalorder %v1914, 0
        %vm2191 = vcmp.lt.s32.totalorder %v1921, 0
        %vm2192 = vcmp.lt.s32.totalorder %v1928, 0
        %vm2193 = vcmp.lt.s32.totalorder %v1935, 0
        %vm2194 = vcmp.lt.s32.totalorder %v1942, 0
        %vm2195 = vcmp.lt.s32.totalorder %v1949, 0
        %vm2196 = vcmp.lt.s32.totalorder %v1956, 0
        %vm2197 = vcmp.lt.s32.totalorder %v1963, 0
        %vm2198 = vcmp.lt.s32.totalorder %v1970, 0
        %vm2199 = vcmp.lt.s32.totalorder %v1977, 0
        %vm2200 = vcmp.lt.s32.totalorder %v1984, 0
        %vm2201 = vcmp.lt.s32.totalorder %v1991, 0
        %vm2202 = vcmp.lt.s32.totalorder %v1998, 0
        %vm2203 = vcmp.lt.s32.totalorder %v2005, 0
        %vm2204 = vcmp.lt.s32.totalorder %v2012, 0
        %vm2205 = vcmp.lt.s32.totalorder %v2019, 0
        %vm2206 = vcmp.lt.s32.totalorder %v2026, 0
        %vm2207 = vcmp.lt.s32.totalorder %v2033, 0
        %vm2208 = vcmp.lt.s32.totalorder %v2040, 0
        %vm2209 = vcmp.lt.s32.totalorder %v2047, 0
        %vm2210 = vcmp.lt.s32.totalorder %v2054, 0
        %vm2211 = vcmp.lt.s32.totalorder %v2061, 0
        %vm2212 = vcmp.lt.s32.totalorder %v2068, 0
        %vm2213 = vcmp.lt.s32.totalorder %v2075, 0
        %vm2214 = vcmp.lt.s32.totalorder %v2082, 0
        %vm2215 = vcmp.lt.s32.totalorder %v2089, 0
        %vm2216 = vcmp.lt.s32.totalorder %v2096, 0
        %vm2217 = vcmp.lt.s32.totalorder %v2103, 0
        %vm2218 = vcmp.lt.s32.totalorder %v2110, 0
        %vm2219 = vcmp.lt.s32.totalorder %v2117, 0
        %vm2220 = vcmp.lt.s32.totalorder %v2124, 0
        %vm2221 = vcmp.lt.s32.totalorder %v2131, 0
        %vm2222 = vcmp.lt.s32.totalorder %v2138, 0
        %vm2223 = vcmp.lt.s32.totalorder %v2145, 0
        %vm2224 = vcmp.lt.s32.totalorder %v2152, 0
        %vm2225 = vmand %vm2189, %vm2153
        %vm2226 = vmand %vm2190, %vm2154
        %vm2227 = vmand %vm2191, %vm2155
        %vm2228 = vmand %vm2192, %vm2156
        %vm2229 = vmand %vm2193, %vm2157
        %vm2230 = vmand %vm2194, %vm2158
        %vm2231 = vmand %vm2195, %vm2159
        %vm2232 = vmand %vm2196, %vm2160
        %vm2233 = vmand %vm2197, %vm2161
        %vm2234 = vmand %vm2198, %vm2162
        %vm2235 = vmand %vm2199, %vm2163
        %vm2236 = vmand %vm2200, %vm2164
        %vm2237 = vmand %vm2201, %vm2165
        %vm2238 = vmand %vm2202, %vm2166
        %vm2239 = vmand %vm2203, %vm2167
        %vm2240 = vmand %vm2204, %vm2168
        %vm2241 = vmand %vm2205, %vm2169
        %vm2242 = vmand %vm2206, %vm2170
        %vm2243 = vmand %vm2207, %vm2171
        %vm2244 = vmand %vm2208, %vm2172
        %vm2245 = vmand %vm2209, %vm2173
        %vm2246 = vmand %vm2210, %vm2174
        %vm2247 = vmand %vm2211, %vm2175
        %vm2248 = vmand %vm2212, %vm2176
        %vm2249 = vmand %vm2213, %vm2177
        %vm2250 = vmand %vm2214, %vm2178
        %vm2251 = vmand %vm2215, %vm2179
        %vm2252 = vmand %vm2216, %vm2180
        %vm2253 = vmand %vm2217, %vm2181
        %vm2254 = vmand %vm2218, %vm2182
        %vm2255 = vmand %vm2219, %vm2183
        %vm2256 = vmand %vm2220, %vm2184
        %vm2257 = vmand %vm2221, %vm2185
        %vm2258 = vmand %vm2222, %vm2186
        %vm2259 = vmand %vm2223, %vm2187
        %vm2260 = vmand %vm2224, %vm2188
        %v2261 = vadd.s32 %v1907, 16
        %v2262 = vadd.s32 %v1914, 16
        %v2263 = vadd.s32 %v1921, 16
        %v2264 = vadd.s32 %v1928, 16
        %v2265 = vadd.s32 %v1935, 16
        %v2266 = vadd.s32 %v1942, 16
        %v2267 = vadd.s32 %v1949, 16
        %v2268 = vadd.s32 %v1956, 16
        %v2269 = vadd.s32 %v1963, 16
        %v2270 = vadd.s32 %v1970, 16
        %v2271 = vadd.s32 %v1977, 16
        %v2272 = vadd.s32 %v1984, 16
        %v2273 = vadd.s32 %v1991, 16
        %v2274 = vadd.s32 %v1998, 16
        %v2275 = vadd.s32 %v2005, 16
        %v2276 = vadd.s32 %v2012, 16
        %v2277 = vadd.s32 %v2019, 16
        %v2278 = vadd.s32 %v2026, 16
        %v2279 = vadd.s32 %v2033, 16
        %v2280 = vadd.s32 %v2040, 16
        %v2281 = vadd.s32 %v2047, 16
        %v2282 = vadd.s32 %v2054, 16
        %v2283 = vadd.s32 %v2061, 16
        %v2284 = vadd.s32 %v2068, 16
        %v2285 = vadd.s32 %v2075, 16
        %v2286 = vadd.s32 %v2082, 16
        %v2287 = vadd.s32 %v2089, 16
        %v2288 = vadd.s32 %v2096, 16
        %v2289 = vadd.s32 %v2103, 16
        %v2290 = vadd.s32 %v2110, 16
        %v2291 = vadd.s32 %v2117, 16
        %v2292 = vadd.s32 %v2124, 16
        %v2293 = vadd.s32 %v2131, 16
        %v2294 = vadd.s32 %v2138, 16
        %v2295 = vadd.s32 %v2145, 16
        %v2296 = vadd.s32 %v2152, 16
        %v2297 = vsel %vm2225, %v2261, %v1907
        %v2298 = vsel %vm2226, %v2262, %v1914
        %v2299 = vsel %vm2227, %v2263, %v1921
        %v2300 = vsel %vm2228, %v2264, %v1928
        %v2301 = vsel %vm2229, %v2265, %v1935
        %v2302 = vsel %vm2230, %v2266, %v1942
        %v2303 = vsel %vm2231, %v2267, %v1949
        %v2304 = vsel %vm2232, %v2268, %v1956
        %v2305 = vsel %vm2233, %v2269, %v1963
        %v2306 = vsel %vm2234, %v2270, %v1970
        %v2307 = vsel %vm2235, %v2271, %v1977
        %v2308 = vsel %vm2236, %v2272, %v1984
        %v2309 = vsel %vm2237, %v2273, %v1991
        %v2310 = vsel %vm2238, %v2274, %v1998
        %v2311 = vsel %vm2239, %v2275, %v2005
        %v2312 = vsel %vm2240, %v2276, %v2012
        %v2313 = vsel %vm2241, %v2277, %v2019
        %v2314 = vsel %vm2242, %v2278, %v2026
        %v2315 = vsel %vm2243, %v2279, %v2033
        %v2316 = vsel %vm2244, %v2280, %v2040
        %v2317 = vsel %vm2245, %v2281, %v2047
        %v2318 = vsel %vm2246, %v2282, %v2054
        %v2319 = vsel %vm2247, %v2283, %v2061
        %v2320 = vsel %vm2248, %v2284, %v2068
        %v2321 = vsel %vm2249, %v2285, %v2075
        %v2322 = vsel %vm2250, %v2286, %v2082
        %v2323 = vsel %vm2251, %v2287, %v2089
        %v2324 = vsel %vm2252, %v2288, %v2096
        %v2325 = vsel %vm2253, %v2289, %v2103
        %v2326 = vsel %vm2254, %v2290, %v2110
        %v2327 = vsel %vm2255, %v2291, %v2117
        %v2328 = vsel %vm2256, %v2292, %v2124
        %v2329 = vsel %vm2257, %v2293, %v2131
        %v2330 = vsel %vm2258, %v2294, %v2138
        %v2331 = vsel %vm2259, %v2295, %v2145
        %v2332 = vsel %vm2260, %v2296, %v2152
        %vm2333 = vcmp.ge.s32.totalorder %v2297, 1
        %vm2334 = vcmp.ge.s32.totalorder %v2298, 1
        %vm2335 = vcmp.ge.s32.totalorder %v2299, 1
        %vm2336 = vcmp.ge.s32.totalorder %v2300, 1
        %vm2337 = vcmp.ge.s32.totalorder %v2301, 1
        %vm2338 = vcmp.ge.s32.totalorder %v2302, 1
        %vm2339 = vcmp.ge.s32.totalorder %v2303, 1
        %vm2340 = vcmp.ge.s32.totalorder %v2304, 1
        %vm2341 = vcmp.ge.s32.totalorder %v2305, 1
        %vm2342 = vcmp.ge.s32.totalorder %v2306, 1
        %vm2343 = vcmp.ge.s32.totalorder %v2307, 1
        %vm2344 = vcmp.ge.s32.totalorder %v2308, 1
        %vm2345 = vcmp.ge.s32.totalorder %v2309, 1
        %vm2346 = vcmp.ge.s32.totalorder %v2310, 1
        %vm2347 = vcmp.ge.s32.totalorder %v2311, 1
        %vm2348 = vcmp.ge.s32.totalorder %v2312, 1
        %vm2349 = vcmp.ge.s32.totalorder %v2313, 1
        %vm2350 = vcmp.ge.s32.totalorder %v2314, 1
        %vm2351 = vcmp.ge.s32.totalorder %v2315, 1
        %vm2352 = vcmp.ge.s32.totalorder %v2316, 1
        %vm2353 = vcmp.ge.s32.totalorder %v2317, 1
        %vm2354 = vcmp.ge.s32.totalorder %v2318, 1
        %vm2355 = vcmp.ge.s32.totalorder %v2319, 1
        %vm2356 = vcmp.ge.s32.totalorder %v2320, 1
        %vm2357 = vcmp.ge.s32.totalorder %v2321, 1
        %vm2358 = vcmp.ge.s32.totalorder %v2322, 1
        %vm2359 = vcmp.ge.s32.totalorder %v2323, 1
        %vm2360 = vcmp.ge.s32.totalorder %v2324, 1
        %vm2361 = vcmp.ge.s32.totalorder %v2325, 1
        %vm2362 = vcmp.ge.s32.totalorder %v2326, 1
        %vm2363 = vcmp.ge.s32.totalorder %v2327, 1
        %vm2364 = vcmp.ge.s32.totalorder %v2328, 1
        %vm2365 = vcmp.ge.s32.totalorder %v2329, 1
        %vm2366 = vcmp.ge.s32.totalorder %v2330, 1
        %vm2367 = vcmp.ge.s32.totalorder %v2331, 1
        %vm2368 = vcmp.ge.s32.totalorder %v2332, 1
        %vm2369 = vcmp.le.s32.totalorder %v2297, 14
        %vm2370 = vcmp.le.s32.totalorder %v2298, 14
        %vm2371 = vcmp.le.s32.totalorder %v2299, 14
        %vm2372 = vcmp.le.s32.totalorder %v2300, 14
        %vm2373 = vcmp.le.s32.totalorder %v2301, 14
        %vm2374 = vcmp.le.s32.totalorder %v2302, 14
        %vm2375 = vcmp.le.s32.totalorder %v2303, 14
        %vm2376 = vcmp.le.s32.totalorder %v2304, 14
        %vm2377 = vcmp.le.s32.totalorder %v2305, 14
        %vm2378 = vcmp.le.s32.totalorder %v2306, 14
        %vm2379 = vcmp.le.s32.totalorder %v2307, 14
        %vm2380 = vcmp.le.s32.totalorder %v2308, 14
        %vm2381 = vcmp.le.s32.totalorder %v2309, 14
        %vm2382 = vcmp.le.s32.totalorder %v2310, 14
        %vm2383 = vcmp.le.s32.totalorder %v2311, 14
        %vm2384 = vcmp.le.s32.totalorder %v2312, 14
        %vm2385 = vcmp.le.s32.totalorder %v2313, 14
        %vm2386 = vcmp.le.s32.totalorder %v2314, 14
        %vm2387 = vcmp.le.s32.totalorder %v2315, 14
        %vm2388 = vcmp.le.s32.totalorder %v2316, 14
        %vm2389 = vcmp.le.s32.totalorder %v2317, 14
        %vm2390 = vcmp.le.s32.totalorder %v2318, 14
        %vm2391 = vcmp.le.s32.totalorder %v2319, 14
        %vm2392 = vcmp.le.s32.totalorder %v2320, 14
        %vm2393 = vcmp.le.s32.totalorder %v2321, 14
        %vm2394 = vcmp.le.s32.totalorder %v2322, 14
        %vm2395 = vcmp.le.s32.totalorder %v2323, 14
        %vm2396 = vcmp.le.s32.totalorder %v2324, 14
        %vm2397 = vcmp.le.s32.totalorder %v2325, 14
        %vm2398 = vcmp.le.s32.totalorder %v2326, 14
        %vm2399 = vcmp.le.s32.totalorder %v2327, 14
        %vm2400 = vcmp.le.s32.totalorder %v2328, 14
        %vm2401 = vcmp.le.s32.totalorder %v2329, 14
        %vm2402 = vcmp.le.s32.totalorder %v2330, 14
        %vm2403 = vcmp.le.s32.totalorder %v2331, 14
        %vm2404 = vcmp.le.s32.totalorder %v2332, 14
        %v2405 = vpack.c.bf16 %v1866, %v1865
        %v2406 = vpack.c.bf16 %v1868, %v1867
        %v2407 = vpack.c.bf16 %v1870, %v1869
        %v2408 = vpack.c.bf16 %v1872, %v1871
        %v2409 = vpack.c.bf16 %v1874, %v1873
        %v2410 = vpack.c.bf16 %v1876, %v1875
        %v2411 = vpack.c.bf16 %v1878, %v1877
        %v2412 = vpack.c.bf16 %v1880, %v1879
        %v2413 = vpack.c.bf16 %v1882, %v1881
        %v2414 = vpack.c.bf16 %v1884, %v1883
        %v2415 = vpack.c.bf16 %v1886, %v1885
        %v2416 = vpack.c.bf16 %v1888, %v1887
        %v2417 = vpack.c.bf16 %v1890, %v1889
        %v2418 = vpack.c.bf16 %v1892, %v1891
        %v2419 = vpack.c.bf16 %v1894, %v1893
        %v2420 = vpack.c.bf16 %v1896, %v1895
        %v2421 = vpack.c.bf16 %v1898, %v1897
        %v2422 = vpack.c.bf16 %v1900, %v1899
        %s2423 = scalar_lea.vmem %s7, 16
        %v2424 = vld [vmem:[%s2423] sm:$0xf]
        %v2425 = vld [vmem:[%s8] sm:$0x1]
        %v2427 = vlaneseq
        %v2428 = vshrl.u32 %v2427, 7
        %v2429 = vsub.s32 0, %v2428
        %v2430 = vrot.slane %v2425, %v2429
        %vm2432 = vcmask 64512
        %v2434 = vsel %vm2432, %v2405, 0
        %v2437 = vsel %vm2432, %v2406, 0
        %v2440 = vsel %vm2432, %v2407, 0
        %v2443 = vsel %vm2432, %v2408, 0
        %v2446 = vsel %vm2432, %v2409, 0
        %v2449 = vsel %vm2432, %v2410, 0
        %v2452 = vsel %vm2432, %v2411, 0
        %v2455 = vsel %vm2432, %v2412, 0
        %v2458 = vsel %vm2432, %v2413, 0
        %v2461 = vsel %vm2432, %v2414, 0
        %v2464 = vsel %vm2432, %v2415, 0
        %v2467 = vsel %vm2432, %v2416, 0
        %v2470 = vsel %vm2432, %v2417, 0
        %v2473 = vsel %vm2432, %v2418, 0
        %v2476 = vsel %vm2432, %v2419, 0
        %v2479 = vsel %vm2432, %v2420, 0
        %v2482 = vsel %vm2432, %v2421, 0
        %v2485 = vsel %vm2432, %v2422, 0
        %vm2487 = vcmask 1043456
        %v2489 = vsel %vm2487, %v2424, 0
        %2491 = vmatprep.subr.bf16.mxu0 0
        %2492 = vmatpush1.bf16.msra.mxu0 %v2489
        %2493 = vmatprep.subr.bf16.mxu0 0
        %2494 = vmatpush1.bf16.msra.mxu0 0
        %2495 = vmatprep.subr.bf16.mxu0 0
        %2496 = vmatpush1.bf16.msra.mxu0 0
        %2497 = vmatprep.subr.bf16.mxu0 0
        %2498 = vmatpush1.bf16.msra.mxu0 0
        %2499 = vmatprep.subr.bf16.mxu0 0
        %2500 = vmatpush1.bf16.msra.mxu0 0
        %2501 = vmatprep.subr.bf16.mxu0 0
        %2502 = vmatpush1.bf16.msra.mxu0 0
        %2503 = vmatprep.subr.bf16.mxu0 0
        %2504 = vmatpush1.bf16.msra.mxu0 0
        %2505 = vmatprep.subr.bf16.mxu0 0
        %2506 = vmatpush1.bf16.msra.mxu0 0
        %2507 = vmatprep.subr.bf16.mxu0 0
        %2508 = vmatpush1.bf16.msra.mxu0 0
        %2509 = vmatprep.subr.bf16.mxu0 0
        %2510 = vmatpush1.bf16.msra.mxu0 0
        %2511 = vmatprep.subr.bf16.mxu0 0
        %2512 = vmatpush1.bf16.msra.mxu0 0
        %2513 = vmatprep.subr.bf16.mxu0 0
        %2514 = vmatpush1.bf16.msra.mxu0 0
        %2515 = vmatprep.subr.bf16.mxu0 0
        %2516 = vmatpush1.bf16.msra.mxu0 0
        %2517 = vmatprep.subr.bf16.mxu0 0
        %2518 = vmatpush1.bf16.msra.mxu0 0
        %2519 = vmatprep.subr.bf16.mxu0 0
        %2520 = vmatpush1.bf16.msra.mxu0 0
        %2521 = vmatprep.subr.bf16.mxu0 0
        %2522 = vmatpush1.bf16.msra.mxu0 0
        %2523 = vmatprep.mubr.bf16.mxu0 0
        %2524 = vmatmul.mubr.bf16.gmra.mrb[0].mxu0 %v2434
        %v2525 = vpop.f32.mrb[0].mxu0
        %v2526 = vpop.f32.mrb[0].mxu0
        %v2527 = vpop.f32.mrb[0].mxu0
        %v2528 = vpop.f32.mrb[0].mxu0
        %2529 = vmatprep.mubr.bf16.mxu0 0
        %2530 = vmatmul.mubr.bf16.gmra.mrb[0].mxu0 %v2437
        %v2531 = vpop.f32.mrb[0].mxu0
        %v2532 = vadd.f32 %v2430, %v2531
        %v2533 = vpop.f32.mrb[0].mxu0
        %v2534 = vpop.f32.mrb[0].mxu0
        %v2535 = vadd.f32 %v2430, %v2534
        %v2536 = vpop.f32.mrb[0].mxu0
        %2537 = vmatprep.mubr.bf16.mxu0 0
        %2538 = vmatmul.mubr.bf16.gmra.mrb[0].mxu0 %v2440
        %v2539 = vpop.f32.mrb[0].mxu0
        %v2540 = vadd.f32 %v2430, %v2539
        %v2541 = vpop.f32.mrb[0].mxu0
        %v2542 = vpop.f32.mrb[0].mxu0
        %v2543 = vadd.f32 %v2430, %v2542
        %v2544 = vpop.f32.mrb[0].mxu0
        %2545 = vmatprep.mubr.bf16.mxu0 0
        %2546 = vmatmul.mubr.bf16.gmra.mrb[0].mxu0 %v2443
        %v2547 = vpop.f32.mrb[0].mxu0
        %v2548 = vadd.f32 %v2430, %v2547
        %v2549 = vpop.f32.mrb[0].mxu0
        %v2550 = vpop.f32.mrb[0].mxu0
        %v2551 = vadd.f32 %v2430, %v2550
        %v2552 = vpop.f32.mrb[0].mxu0
        %2553 = vmatprep.mubr.bf16.mxu0 0
        %2554 = vmatmul.mubr.bf16.gmra.mrb[0].mxu0 %v2446
        %v2555 = vpop.f32.mrb[0].mxu0
        %v2556 = vadd.f32 %v2430, %v2555
        %v2557 = vpop.f32.mrb[0].mxu0
        %v2558 = vpop.f32.mrb[0].mxu0
        %v2559 = vadd.f32 %v2430, %v2558
        %v2560 = vpop.f32.mrb[0].mxu0
        %2561 = vmatprep.mubr.bf16.mxu0 0
        %2562 = vmatmul.mubr.bf16.gmra.mrb[0].mxu0 %v2449
        %v2563 = vpop.f32.mrb[0].mxu0
        %v2564 = vadd.f32 %v2430, %v2563
        %v2565 = vpop.f32.mrb[0].mxu0
        %v2566 = vpop.f32.mrb[0].mxu0
        %v2567 = vadd.f32 %v2430, %v2566
        %v2568 = vpop.f32.mrb[0].mxu0
        %2569 = vmatprep.mubr.bf16.mxu0 0
        %2570 = vmatmul.mubr.bf16.gmra.mrb[0].mxu0 %v2452
        %v2571 = vpop.f32.mrb[0].mxu0
        %v2572 = vadd.f32 %v2430, %v2571
        %v2573 = vpop.f32.mrb[0].mxu0
        %v2574 = vpop.f32.mrb[0].mxu0
        %v2575 = vadd.f32 %v2430, %v2574
        %v2576 = vpop.f32.mrb[0].mxu0
        %2577 = vmatprep.mubr.bf16.mxu0 0
        %2578 = vmatmul.mubr.bf16.gmra.mrb[0].mxu0 %v2455
        %v2579 = vpop.f32.mrb[0].mxu0
        %v2580 = vadd.f32 %v2430, %v2579
        %v2581 = vpop.f32.mrb[0].mxu0
        %v2582 = vpop.f32.mrb[0].mxu0
        %v2583 = vadd.f32 %v2430, %v2582
        %v2584 = vpop.f32.mrb[0].mxu0
        %2585 = vmatprep.mubr.bf16.mxu0 0
        %2586 = vmatmul.mubr.bf16.gmra.mrb[0].mxu0 %v2458
        %v2587 = vpop.f32.mrb[0].mxu0
        %v2588 = vadd.f32 %v2430, %v2587
        %v2589 = vpop.f32.mrb[0].mxu0
        %v2590 = vpop.f32.mrb[0].mxu0
        %v2591 = vadd.f32 %v2430, %v2590
        %v2592 = vpop.f32.mrb[0].mxu0
        %2593 = vmatprep.mubr.bf16.mxu0 0
        %2594 = vmatmul.mubr.bf16.gmra.mrb[0].mxu0 %v2461
        %v2595 = vpop.f32.mrb[0].mxu0
        %v2596 = vadd.f32 %v2430, %v2595
        %v2597 = vpop.f32.mrb[0].mxu0
        %v2598 = vpop.f32.mrb[0].mxu0
        %v2599 = vadd.f32 %v2430, %v2598
        %v2600 = vpop.f32.mrb[0].mxu0
        %2601 = vmatprep.mubr.bf16.mxu0 0
        %2602 = vmatmul.mubr.bf16.gmra.mrb[0].mxu0 %v2464
        %v2603 = vpop.f32.mrb[0].mxu0
        %v2604 = vadd.f32 %v2430, %v2603
        %v2605 = vpop.f32.mrb[0].mxu0
        %v2606 = vpop.f32.mrb[0].mxu0
        %v2607 = vadd.f32 %v2430, %v2606
        %v2608 = vpop.f32.mrb[0].mxu0
        %2609 = vmatprep.mubr.bf16.mxu0 0
        %2610 = vmatmul.mubr.bf16.gmra.mrb[0].mxu0 %v2467
        %v2611 = vpop.f32.mrb[0].mxu0
        %v2612 = vadd.f32 %v2430, %v2611
        %v2613 = vpop.f32.mrb[0].mxu0
        %v2614 = vpop.f32.mrb[0].mxu0
        %v2615 = vadd.f32 %v2430, %v2614
        %v2616 = vpop.f32.mrb[0].mxu0
        %2617 = vmatprep.mubr.bf16.mxu0 0
        %2618 = vmatmul.mubr.bf16.gmra.mrb[0].mxu0 %v2470
        %v2619 = vpop.f32.mrb[0].mxu0
        %v2620 = vadd.f32 %v2430, %v2619
        %v2621 = vpop.f32.mrb[0].mxu0
        %v2622 = vpop.f32.mrb[0].mxu0
        %v2623 = vadd.f32 %v2430, %v2622
        %v2624 = vpop.f32.mrb[0].mxu0
        %2625 = vmatprep.mubr.bf16.mxu0 0
        %2626 = vmatmul.mubr.bf16.gmra.mrb[0].mxu0 %v2473
        %v2627 = vpop.f32.mrb[0].mxu0
        %v2628 = vadd.f32 %v2430, %v2627
        %v2629 = vpop.f32.mrb[0].mxu0
        %v2630 = vpop.f32.mrb[0].mxu0
        %v2631 = vadd.f32 %v2430, %v2630
        %v2632 = vpop.f32.mrb[0].mxu0
        %2633 = vmatprep.mubr.bf16.mxu0 0
        %2634 = vmatmul.mubr.bf16.gmra.mrb[0].mxu0 %v2476
        %v2635 = vpop.f32.mrb[0].mxu0
        %v2636 = vadd.f32 %v2430, %v2635
        %v2637 = vpop.f32.mrb[0].mxu0
        %v2638 = vpop.f32.mrb[0].mxu0
        %v2639 = vadd.f32 %v2430, %v2638
        %v2640 = vpop.f32.mrb[0].mxu0
        %2641 = vmatprep.mubr.bf16.mxu0 0
        %2642 = vmatmul.mubr.bf16.gmra.mrb[0].mxu0 %v2479
        %v2643 = vpop.f32.mrb[0].mxu0
        %v2644 = vadd.f32 %v2430, %v2643
        %v2645 = vpop.f32.mrb[0].mxu0
        %v2646 = vpop.f32.mrb[0].mxu0
        %v2647 = vadd.f32 %v2430, %v2646
        %v2648 = vpop.f32.mrb[0].mxu0
        %2649 = vmatprep.mubr.bf16.mxu0 0
        %2650 = vmatmul.mubr.bf16.gmra.mrb[0].mxu0 %v2482
        %v2651 = vpop.f32.mrb[0].mxu0
        %v2652 = vadd.f32 %v2430, %v2651
        %v2653 = vpop.f32.mrb[0].mxu0
        %v2654 = vpop.f32.mrb[0].mxu0
        %v2655 = vadd.f32 %v2430, %v2654
        %v2656 = vpop.f32.mrb[0].mxu0
        %2657 = vmatprep.mubr.bf16.mxu0 0
        %2658 = vmatmul.mubr.bf16.gmra.mrb[0].mxu0 %v2485
        %v2659 = vpop.f32.mrb[0].mxu0
        %v2660 = vpop.f32.mrb[0].mxu0
        %v2661 = vpop.f32.mrb[0].mxu0
        %v2662 = vpop.f32.mrb[0].mxu0
        %2663 = vdwg.mxu0
        %v2664 = vrot.slane %v1865, 7
        %v2665 = vrot.slane %v1866, 7
        %v2666 = vrot.slane %v1867, 7
        %v2667 = vrot.slane %v1868, 7
        %v2668 = vrot.slane %v1869, 7
        %v2669 = vrot.slane %v1870, 7
        %v2670 = vrot.slane %v1871, 7
        %v2671 = vrot.slane %v1872, 7
        %v2672 = vrot.slane %v1873, 7
        %v2673 = vrot.slane %v1874, 7
        %v2674 = vrot.slane %v1875, 7
        %v2675 = vrot.slane %v1876, 7
        %v2676 = vrot.slane %v1877, 7
        %v2677 = vrot.slane %v1878, 7
        %v2678 = vrot.slane %v1879, 7
        %v2679 = vrot.slane %v1880, 7
        %v2680 = vrot.slane %v1881, 7
        %v2681 = vrot.slane %v1882, 7
        %v2682 = vrot.slane %v1883, 7
        %v2683 = vrot.slane %v1884, 7
        %v2684 = vrot.slane %v1885, 7
        %v2685 = vrot.slane %v1886, 7
        %v2686 = vrot.slane %v1887, 7
        %v2687 = vrot.slane %v1888, 7
        %v2688 = vrot.slane %v1889, 7
        %v2689 = vrot.slane %v1890, 7
        %v2690 = vrot.slane %v1891, 7
        %v2691 = vrot.slane %v1892, 7
        %v2692 = vrot.slane %v1893, 7
        %v2693 = vrot.slane %v1894, 7
        %v2694 = vrot.slane %v1895, 7
        %v2695 = vrot.slane %v1896, 7
        %v2696 = vrot.slane %v1897, 7
        %v2697 = vrot.slane %v1898, 7
        %v2698 = vrot.slane %v1899, 7
        %v2699 = vrot.slane %v1900, 7
        %vm2700 = vcmp.lt.s32.totalorder %v1569, 1
        %v2701 = vsel %vm2700, %v2698, %v2699
        %v2702 = vsel %vm2700, %v2697, %v2698
        %v2703 = vsel %vm2700, %v2696, %v2697
        %v2704 = vsel %vm2700, %v2695, %v2696
        %v2705 = vsel %vm2700, %v2694, %v2695
        %v2706 = vsel %vm2700, %v2693, %v2694
        %v2707 = vsel %vm2700, %v2692, %v2693
        %v2708 = vsel %vm2700, %v2691, %v2692
        %v2709 = vsel %vm2700, %v2690, %v2691
        %v2710 = vsel %vm2700, %v2689, %v2690
        %v2711 = vsel %vm2700, %v2688, %v2689
        %v2712 = vsel %vm2700, %v2687, %v2688
        %v2713 = vsel %vm2700, %v2686, %v2687
        %v2714 = vsel %vm2700, %v2685, %v2686
        %v2715 = vsel %vm2700, %v2684, %v2685
        %v2716 = vsel %vm2700, %v2683, %v2684
        %v2717 = vsel %vm2700, %v2682, %v2683
        %v2718 = vsel %vm2700, %v2681, %v2682
        %v2719 = vsel %vm2700, %v2680, %v2681
        %v2720 = vsel %vm2700, %v2679, %v2680
        %v2721 = vsel %vm2700, %v2678, %v2679
        %v2722 = vsel %vm2700, %v2677, %v2678
        %v2723 = vsel %vm2700, %v2676, %v2677
        %v2724 = vsel %vm2700, %v2675, %v2676
        %v2725 = vsel %vm2700, %v2674, %v2675
        %v2726 = vsel %vm2700, %v2673, %v2674
        %v2727 = vsel %vm2700, %v2672, %v2673
        %v2728 = vsel %vm2700, %v2671, %v2672
        %v2729 = vsel %vm2700, %v2670, %v2671
        %v2730 = vsel %vm2700, %v2669, %v2670
        %v2731 = vsel %vm2700, %v2668, %v2669
        %v2732 = vsel %vm2700, %v2667, %v2668
        %v2733 = vsel %vm2700, %v2666, %v2667
        %v2734 = vsel %vm2700, %v2665, %v2666
        %v2735 = vsel %vm2700, %v2664, %v2665
        %v2736 = vsel %vm2700, %v2699, %v2664
        %v2737 = vsel %vm2333, 1, 0
        %v2738 = vsel %vm2334, 1, 0
        %v2739 = vsel %vm2335, 1, 0
        %v2740 = vsel %vm2336, 1, 0
        %v2741 = vsel %vm2337, 1, 0
        %v2742 = vsel %vm2338, 1, 0
        %v2743 = vsel %vm2339, 1, 0
        %v2744 = vsel %vm2340, 1, 0
        %v2745 = vsel %vm2341, 1, 0
        %v2746 = vsel %vm2342, 1, 0
        %v2747 = vsel %vm2343, 1, 0
        %v2748 = vsel %vm2344, 1, 0
        %v2749 = vsel %vm2345, 1, 0
        %v2750 = vsel %vm2346, 1, 0
        %v2751 = vsel %vm2347, 1, 0
        %v2752 = vsel %vm2348, 1, 0
        %v2753 = vsel %vm2349, 1, 0
        %v2754 = vsel %vm2350, 1, 0
        %v2755 = vsel %vm2351, 1, 0
        %v2756 = vsel %vm2352, 1, 0
        %v2757 = vsel %vm2353, 1, 0
        %v2758 = vsel %vm2354, 1, 0
        %v2759 = vsel %vm2355, 1, 0
        %v2760 = vsel %vm2356, 1, 0
        %v2761 = vsel %vm2357, 1, 0
        %v2762 = vsel %vm2358, 1, 0
        %v2763 = vsel %vm2359, 1, 0
        %v2764 = vsel %vm2360, 1, 0
        %v2765 = vsel %vm2361, 1, 0
        %v2766 = vsel %vm2362, 1, 0
        %v2767 = vsel %vm2363, 1, 0
        %v2768 = vsel %vm2364, 1, 0
        %v2769 = vsel %vm2365, 1, 0
        %v2770 = vsel %vm2366, 1, 0
        %v2771 = vsel %vm2367, 1, 0
        %v2772 = vsel %vm2368, 1, 0
        %vm2773 = vcmp.eq.s32.totalorder %v2737, 1
        %vm2774 = vcmp.eq.s32.totalorder %v2738, 1
        %vm2775 = vcmp.eq.s32.totalorder %v2739, 1
        %vm2776 = vcmp.eq.s32.totalorder %v2740, 1
        %vm2777 = vcmp.eq.s32.totalorder %v2741, 1
        %vm2778 = vcmp.eq.s32.totalorder %v2742, 1
        %vm2779 = vcmp.eq.s32.totalorder %v2743, 1
        %vm2780 = vcmp.eq.s32.totalorder %v2744, 1
        %vm2781 = vcmp.eq.s32.totalorder %v2745, 1
        %vm2782 = vcmp.eq.s32.totalorder %v2746, 1
        %vm2783 = vcmp.eq.s32.totalorder %v2747, 1
        %vm2784 = vcmp.eq.s32.totalorder %v2748, 1
        %vm2785 = vcmp.eq.s32.totalorder %v2749, 1
        %vm2786 = vcmp.eq.s32.totalorder %v2750, 1
        %vm2787 = vcmp.eq.s32.totalorder %v2751, 1
        %vm2788 = vcmp.eq.s32.totalorder %v2752, 1
        %vm2789 = vcmp.eq.s32.totalorder %v2753, 1
        %vm2790 = vcmp.eq.s32.totalorder %v2754, 1
        %vm2791 = vcmp.eq.s32.totalorder %v2755, 1
        %vm2792 = vcmp.eq.s32.totalorder %v2756, 1
        %vm2793 = vcmp.eq.s32.totalorder %v2757, 1
        %vm2794 = vcmp.eq.s32.totalorder %v2758, 1
        %vm2795 = vcmp.eq.s32.totalorder %v2759, 1
        %vm2796 = vcmp.eq.s32.totalorder %v2760, 1
        %vm2797 = vcmp.eq.s32.totalorder %v2761, 1
        %vm2798 = vcmp.eq.s32.totalorder %v2762, 1
        %vm2799 = vcmp.eq.s32.totalorder %v2763, 1
        %vm2800 = vcmp.eq.s32.totalorder %v2764, 1
        %vm2801 = vcmp.eq.s32.totalorder %v2765, 1
        %vm2802 = vcmp.eq.s32.totalorder %v2766, 1
        %vm2803 = vcmp.eq.s32.totalorder %v2767, 1
        %vm2804 = vcmp.eq.s32.totalorder %v2768, 1
        %vm2805 = vcmp.eq.s32.totalorder %v2769, 1
        %vm2806 = vcmp.eq.s32.totalorder %v2770, 1
        %vm2807 = vcmp.eq.s32.totalorder %v2771, 1
        %vm2808 = vcmp.eq.s32.totalorder %v2772, 1
        %v2809 = vsel %vm2773, %v2702, 0.0
        %v2810 = vsel %vm2774, %v2701, 0.0
        %v2811 = vsel %vm2775, %v2736, 0.0
        %v2812 = vsel %vm2776, %v2735, 0.0
        %v2813 = vsel %vm2777, %v2734, 0.0
        %v2814 = vsel %vm2778, %v2733, 0.0
        %v2815 = vsel %vm2779, %v2732, 0.0
        %v2816 = vsel %vm2780, %v2731, 0.0
        %v2817 = vsel %vm2781, %v2730, 0.0
        %v2818 = vsel %vm2782, %v2729, 0.0
        %v2819 = vsel %vm2783, %v2728, 0.0
        %v2820 = vsel %vm2784, %v2727, 0.0
        %v2821 = vsel %vm2785, %v2726, 0.0
        %v2822 = vsel %vm2786, %v2725, 0.0
        %v2823 = vsel %vm2787, %v2724, 0.0
        %v2824 = vsel %vm2788, %v2723, 0.0
        %v2825 = vsel %vm2789, %v2722, 0.0
        %v2826 = vsel %vm2790, %v2721, 0.0
        %v2827 = vsel %vm2791, %v2720, 0.0
        %v2828 = vsel %vm2792, %v2719, 0.0
        %v2829 = vsel %vm2793, %v2718, 0.0
        %v2830 = vsel %vm2794, %v2717, 0.0
        %v2831 = vsel %vm2795, %v2716, 0.0
        %v2832 = vsel %vm2796, %v2715, 0.0
        %v2833 = vsel %vm2797, %v2714, 0.0
        %v2834 = vsel %vm2798, %v2713, 0.0
        %v2835 = vsel %vm2799, %v2712, 0.0
        %v2836 = vsel %vm2800, %v2711, 0.0
        %v2837 = vsel %vm2801, %v2710, 0.0
        %v2838 = vsel %vm2802, %v2709, 0.0
        %v2839 = vsel %vm2803, %v2708, 0.0
        %v2840 = vsel %vm2804, %v2707, 0.0
        %v2841 = vsel %vm2805, %v2706, 0.0
        %v2842 = vsel %vm2806, %v2705, 0.0
        %v2843 = vsel %vm2807, %v2704, 0.0
        %v2844 = vsel %vm2808, %v2703, 0.0
        %v2845 = vpack.c.bf16 %v2810, %v2809
        %v2846 = vpack.c.bf16 %v2812, %v2811
        %v2847 = vpack.c.bf16 %v2814, %v2813
        %v2848 = vpack.c.bf16 %v2816, %v2815
        %v2849 = vpack.c.bf16 %v2818, %v2817
        %v2850 = vpack.c.bf16 %v2820, %v2819
        %v2851 = vpack.c.bf16 %v2822, %v2821
        %v2852 = vpack.c.bf16 %v2824, %v2823
        %v2853 = vpack.c.bf16 %v2826, %v2825
        %v2854 = vpack.c.bf16 %v2828, %v2827
        %v2855 = vpack.c.bf16 %v2830, %v2829
        %v2856 = vpack.c.bf16 %v2832, %v2831
        %v2857 = vpack.c.bf16 %v2834, %v2833
        %v2858 = vpack.c.bf16 %v2836, %v2835
        %v2859 = vpack.c.bf16 %v2838, %v2837
        %v2860 = vpack.c.bf16 %v2840, %v2839
        %v2861 = vpack.c.bf16 %v2842, %v2841
        %v2862 = vpack.c.bf16 %v2844, %v2843
        %v2863 = vld [vmem:[%s7] sm:$0xf]
        %v2865 = vsel %vm2432, %v2845, 0
        %v2868 = vsel %vm2432, %v2846, 0
        %v2871 = vsel %vm2432, %v2847, 0
        %v2874 = vsel %vm2432, %v2848, 0
        %v2877 = vsel %vm2432, %v2849, 0
        %v2880 = vsel %vm2432, %v2850, 0
        %v2883 = vsel %vm2432, %v2851, 0
        %v2886 = vsel %vm2432, %v2852, 0
        %v2889 = vsel %vm2432, %v2853, 0
        %v2892 = vsel %vm2432, %v2854, 0
        %v2895 = vsel %vm2432, %v2855, 0
        %v2898 = vsel %vm2432, %v2856, 0
        %v2901 = vsel %vm2432, %v2857, 0
        %v2904 = vsel %vm2432, %v2858, 0
        %v2907 = vsel %vm2432, %v2859, 0
        %v2910 = vsel %vm2432, %v2860, 0
        %v2913 = vsel %vm2432, %v2861, 0
        %v2916 = vsel %vm2432, %v2862, 0
        %v2919 = vsel %vm2487, %v2863, 0
        %2921 = vmatprep.subr.bf16.mxu0 0
        %2922 = vmatpush1.bf16.msra.mxu0 %v2919
        %2923 = vmatprep.subr.bf16.mxu0 0
        %2924 = vmatpush1.bf16.msra.mxu0 0
        %2925 = vmatprep.subr.bf16.mxu0 0
        %2926 = vmatpush1.bf16.msra.mxu0 0
        %2927 = vmatprep.subr.bf16.mxu0 0
        %2928 = vmatpush1.bf16.msra.mxu0 0
        %2929 = vmatprep.subr.bf16.mxu0 0
        %2930 = vmatpush1.bf16.msra.mxu0 0
        %2931 = vmatprep.subr.bf16.mxu0 0
        %2932 = vmatpush1.bf16.msra.mxu0 0
        %2933 = vmatprep.subr.bf16.mxu0 0
        %2934 = vmatpush1.bf16.msra.mxu0 0
        %2935 = vmatprep.subr.bf16.mxu0 0
        %2936 = vmatpush1.bf16.msra.mxu0 0
        %2937 = vmatprep.subr.bf16.mxu0 0
        %2938 = vmatpush1.bf16.msra.mxu0 0
        %2939 = vmatprep.subr.bf16.mxu0 0
        %2940 = vmatpush1.bf16.msra.mxu0 0
        %2941 = vmatprep.subr.bf16.mxu0 0
        %2942 = vmatpush1.bf16.msra.mxu0 0
        %2943 = vmatprep.subr.bf16.mxu0 0
        %2944 = vmatpush1.bf16.msra.mxu0 0
        %2945 = vmatprep.subr.bf16.mxu0 0
        %2946 = vmatpush1.bf16.msra.mxu0 0
        %2947 = vmatprep.subr.bf16.mxu0 0
        %2948 = vmatpush1.bf16.msra.mxu0 0
        %2949 = vmatprep.subr.bf16.mxu0 0
        %2950 = vmatpush1.bf16.msra.mxu0 0
        %2951 = vmatprep.subr.bf16.mxu0 0
        %2952 = vmatpush1.bf16.msra.mxu0 0
        %2953 = vmatprep.mubr.bf16.mxu0 0
        %2954 = vmatmul.mubr.bf16.gmra.mrb[0].mxu0 %v2865
        %v2955 = vpop.f32.mrb[0].mxu0
        %v2956 = vpop.f32.mrb[0].mxu0
        %v2957 = vpop.f32.mrb[0].mxu0
        %v2958 = vpop.f32.mrb[0].mxu0
        %2959 = vmatprep.mubr.bf16.mxu0 0
        %2960 = vmatmul.mubr.bf16.gmra.mrb[0].mxu0 %v2868
        %v2961 = vpop.f32.mrb[0].mxu0
        %v2962 = vadd.f32 0.0, %v2961
        %v2963 = vpop.f32.mrb[0].mxu0
        %v2964 = vpop.f32.mrb[0].mxu0
        %v2965 = vadd.f32 0.0, %v2964
        %v2966 = vpop.f32.mrb[0].mxu0
        %2967 = vmatprep.mubr.bf16.mxu0 0
        %2968 = vmatmul.mubr.bf16.gmra.mrb[0].mxu0 %v2871
        %v2969 = vpop.f32.mrb[0].mxu0
        %v2970 = vadd.f32 0.0, %v2969
        %v2971 = vpop.f32.mrb[0].mxu0
        %v2972 = vpop.f32.mrb[0].mxu0
        %v2973 = vadd.f32 0.0, %v2972
        %v2974 = vpop.f32.mrb[0].mxu0
        %2975 = vmatprep.mubr.bf16.mxu0 0
        %2976 = vmatmul.mubr.bf16.gmra.mrb[0].mxu0 %v2874
        %v2977 = vpop.f32.mrb[0].mxu0
        %v2978 = vadd.f32 0.0, %v2977
        %v2979 = vpop.f32.mrb[0].mxu0
        %v2980 = vpop.f32.mrb[0].mxu0
        %v2981 = vadd.f32 0.0, %v2980
        %v2982 = vpop.f32.mrb[0].mxu0
        %2983 = vmatprep.mubr.bf16.mxu0 0
        %2984 = vmatmul.mubr.bf16.gmra.mrb[0].mxu0 %v2877
        %v2985 = vpop.f32.mrb[0].mxu0
        %v2986 = vadd.f32 0.0, %v2985
        %v2987 = vpop.f32.mrb[0].mxu0
        %v2988 = vpop.f32.mrb[0].mxu0
        %v2989 = vadd.f32 0.0, %v2988
        %v2990 = vpop.f32.mrb[0].mxu0
        %2991 = vmatprep.mubr.bf16.mxu0 0
        %2992 = vmatmul.mubr.bf16.gmra.mrb[0].mxu0 %v2880
        %v2993 = vpop.f32.mrb[0].mxu0
        %v2994 = vadd.f32 0.0, %v2993
        %v2995 = vpop.f32.mrb[0].mxu0
        %v2996 = vpop.f32.mrb[0].mxu0
        %v2997 = vadd.f32 0.0, %v2996
        %v2998 = vpop.f32.mrb[0].mxu0
        %2999 = vmatprep.mubr.bf16.mxu0 0
        %3000 = vmatmul.mubr.bf16.gmra.mrb[0].mxu0 %v2883
        %v3001 = vpop.f32.mrb[0].mxu0
        %v3002 = vadd.f32 0.0, %v3001
        %v3003 = vpop.f32.mrb[0].mxu0
        %v3004 = vpop.f32.mrb[0].mxu0
        %v3005 = vadd.f32 0.0, %v3004
        %v3006 = vpop.f32.mrb[0].mxu0
        %3007 = vmatprep.mubr.bf16.mxu0 0
        %3008 = vmatmul.mubr.bf16.gmra.mrb[0].mxu0 %v2886
        %v3009 = vpop.f32.mrb[0].mxu0
        %v3010 = vadd.f32 0.0, %v3009
        %v3011 = vpop.f32.mrb[0].mxu0
        %v3012 = vpop.f32.mrb[0].mxu0
        %v3013 = vadd.f32 0.0, %v3012
        %v3014 = vpop.f32.mrb[0].mxu0
        %3015 = vmatprep.mubr.bf16.mxu0 0
        %3016 = vmatmul.mubr.bf16.gmra.mrb[0].mxu0 %v2889
        %v3017 = vpop.f32.mrb[0].mxu0
        %v3018 = vadd.f32 0.0, %v3017
        %v3019 = vpop.f32.mrb[0].mxu0
        %v3020 = vpop.f32.mrb[0].mxu0
        %v3021 = vadd.f32 0.0, %v3020
        %v3022 = vpop.f32.mrb[0].mxu0
        %3023 = vmatprep.mubr.bf16.mxu0 0
        %3024 = vmatmul.mubr.bf16.gmra.mrb[0].mxu0 %v2892
        %v3025 = vpop.f32.mrb[0].mxu0
        %v3026 = vadd.f32 0.0, %v3025
        %v3027 = vpop.f32.mrb[0].mxu0
        %v3028 = vpop.f32.mrb[0].mxu0
        %v3029 = vadd.f32 0.0, %v3028
        %v3030 = vpop.f32.mrb[0].mxu0
        %3031 = vmatprep.mubr.bf16.mxu0 0
        %3032 = vmatmul.mubr.bf16.gmra.mrb[0].mxu0 %v2895
        %v3033 = vpop.f32.mrb[0].mxu0
        %v3034 = vadd.f32 0.0, %v3033
        %v3035 = vpop.f32.mrb[0].mxu0
        %v3036 = vpop.f32.mrb[0].mxu0
        %v3037 = vadd.f32 0.0, %v3036
        %v3038 = vpop.f32.mrb[0].mxu0
        %3039 = vmatprep.mubr.bf16.mxu0 0
        %3040 = vmatmul.mubr.bf16.gmra.mrb[0].mxu0 %v2898
        %v3041 = vpop.f32.mrb[0].mxu0
        %v3042 = vadd.f32 0.0, %v3041
        %v3043 = vpop.f32.mrb[0].mxu0
        %v3044 = vpop.f32.mrb[0].mxu0
        %v3045 = vadd.f32 0.0, %v3044
        %v3046 = vpop.f32.mrb[0].mxu0
        %3047 = vmatprep.mubr.bf16.mxu0 0
        %3048 = vmatmul.mubr.bf16.gmra.mrb[0].mxu0 %v2901
        %v3049 = vpop.f32.mrb[0].mxu0
        %v3050 = vadd.f32 0.0, %v3049
        %v3051 = vpop.f32.mrb[0].mxu0
        %v3052 = vpop.f32.mrb[0].mxu0
        %v3053 = vadd.f32 0.0, %v3052
        %v3054 = vpop.f32.mrb[0].mxu0
        %3055 = vmatprep.mubr.bf16.mxu0 0
        %3056 = vmatmul.mubr.bf16.gmra.mrb[0].mxu0 %v2904
        %v3057 = vpop.f32.mrb[0].mxu0
        %v3058 = vadd.f32 0.0, %v3057
        %v3059 = vpop.f32.mrb[0].mxu0
        %v3060 = vpop.f32.mrb[0].mxu0
        %v3061 = vadd.f32 0.0, %v3060
        %v3062 = vpop.f32.mrb[0].mxu0
        %3063 = vmatprep.mubr.bf16.mxu0 0
        %3064 = vmatmul.mubr.bf16.gmra.mrb[0].mxu0 %v2907
        %v3065 = vpop.f32.mrb[0].mxu0
        %v3066 = vadd.f32 0.0, %v3065
        %v3067 = vpop.f32.mrb[0].mxu0
        %v3068 = vpop.f32.mrb[0].mxu0
        %v3069 = vadd.f32 0.0, %v3068
        %v3070 = vpop.f32.mrb[0].mxu0
        %3071 = vmatprep.mubr.bf16.mxu0 0
        %3072 = vmatmul.mubr.bf16.gmra.mrb[0].mxu0 %v2910
        %v3073 = vpop.f32.mrb[0].mxu0
        %v3074 = vadd.f32 0.0, %v3073
        %v3075 = vpop.f32.mrb[0].mxu0
        %v3076 = vpop.f32.mrb[0].mxu0
        %v3077 = vadd.f32 0.0, %v3076
        %v3078 = vpop.f32.mrb[0].mxu0
        %3079 = vmatprep.mubr.bf16.mxu0 0
        %3080 = vmatmul.mubr.bf16.gmra.mrb[0].mxu0 %v2913
        %v3081 = vpop.f32.mrb[0].mxu0
        %v3082 = vadd.f32 0.0, %v3081
        %v3083 = vpop.f32.mrb[0].mxu0
        %v3084 = vpop.f32.mrb[0].mxu0
        %v3085 = vadd.f32 0.0, %v3084
        %v3086 = vpop.f32.mrb[0].mxu0
        %3087 = vmatprep.mubr.bf16.mxu0 0
        %3088 = vmatmul.mubr.bf16.gmra.mrb[0].mxu0 %v2916
        %v3089 = vpop.f32.mrb[0].mxu0
        %v3090 = vpop.f32.mrb[0].mxu0
        %v3091 = vpop.f32.mrb[0].mxu0
        %v3092 = vpop.f32.mrb[0].mxu0
        %3093 = vdwg.mxu0
        %v3094 = vadd.f32 %v2532, %v2962
        %v3095 = vadd.f32 %v2535, %v2965
        %v3096 = vadd.f32 %v2540, %v2970
        %v3097 = vadd.f32 %v2543, %v2973
        %v3098 = vadd.f32 %v2548, %v2978
        %v3099 = vadd.f32 %v2551, %v2981
        %v3100 = vadd.f32 %v2556, %v2986
        %v3101 = vadd.f32 %v2559, %v2989
        %v3102 = vadd.f32 %v2564, %v2994
        %v3103 = vadd.f32 %v2567, %v2997
        %v3104 = vadd.f32 %v2572, %v3002
        %v3105 = vadd.f32 %v2575, %v3005
        %v3106 = vadd.f32 %v2580, %v3010
        %v3107 = vadd.f32 %v2583, %v3013
        %v3108 = vadd.f32 %v2588, %v3018
        %v3109 = vadd.f32 %v2591, %v3021
        %v3110 = vadd.f32 %v2596, %v3026
        %v3111 = vadd.f32 %v2599, %v3029
        %v3112 = vadd.f32 %v2604, %v3034
        %v3113 = vadd.f32 %v2607, %v3037
        %v3114 = vadd.f32 %v2612, %v3042
        %v3115 = vadd.f32 %v2615, %v3045
        %v3116 = vadd.f32 %v2620, %v3050
        %v3117 = vadd.f32 %v2623, %v3053
        %v3118 = vadd.f32 %v2628, %v3058
        %v3119 = vadd.f32 %v2631, %v3061
        %v3120 = vadd.f32 %v2636, %v3066
        %v3121 = vadd.f32 %v2639, %v3069
        %v3122 = vadd.f32 %v2644, %v3074
        %v3123 = vadd.f32 %v2647, %v3077
        %v3124 = vadd.f32 %v2652, %v3082
        %v3125 = vadd.f32 %v2655, %v3085
        %s3126 = scalar_lea.vmem %s7, 4
        %v3127 = vld [vmem:[%s3126] sm:$0xf]
        %v3129 = vsel %vm2487, %v3127, 0
        %3131 = vmatprep.subr.bf16.mxu0 0
        %3132 = vmatpush1.bf16.msra.mxu0 %v3129
        %3133 = vmatprep.subr.bf16.mxu0 0
        %3134 = vmatpush1.bf16.msra.mxu0 0
        %3135 = vmatprep.subr.bf16.mxu0 0
        %3136 = vmatpush1.bf16.msra.mxu0 0
        %3137 = vmatprep.subr.bf16.mxu0 0
        %3138 = vmatpush1.bf16.msra.mxu0 0
        %3139 = vmatprep.subr.bf16.mxu0 0
        %3140 = vmatpush1.bf16.msra.mxu0 0
        %3141 = vmatprep.subr.bf16.mxu0 0
        %3142 = vmatpush1.bf16.msra.mxu0 0
        %3143 = vmatprep.subr.bf16.mxu0 0
        %3144 = vmatpush1.bf16.msra.mxu0 0
        %3145 = vmatprep.subr.bf16.mxu0 0
        %3146 = vmatpush1.bf16.msra.mxu0 0
        %3147 = vmatprep.subr.bf16.mxu0 0
        %3148 = vmatpush1.bf16.msra.mxu0 0
        %3149 = vmatprep.subr.bf16.mxu0 0
        %3150 = vmatpush1.bf16.msra.mxu0 0
        %3151 = vmatprep.subr.bf16.mxu0 0
        %3152 = vmatpush1.bf16.msra.mxu0 0
        %3153 = vmatprep.subr.bf16.mxu0 0
        %3154 = vmatpush1.bf16.msra.mxu0 0
        %3155 = vmatprep.subr.bf16.mxu0 0
        %3156 = vmatpush1.bf16.msra.mxu0 0
        %3157 = vmatprep.subr.bf16.mxu0 0
        %3158 = vmatpush1.bf16.msra.mxu0 0
        %3159 = vmatprep.subr.bf16.mxu0 0
        %3160 = vmatpush1.bf16.msra.mxu0 0
        %3161 = vmatprep.subr.bf16.mxu0 0
        %3162 = vmatpush1.bf16.msra.mxu0 0
        %3163 = vmatprep.mubr.bf16.mxu0 0
        %3164 = vmatmul.mubr.bf16.gmra.mrb[0].mxu0 %v2485
        %v3165 = vpop.f32.mrb[0].mxu0
        %v3166 = vpop.f32.mrb[0].mxu0
        %v3167 = vpop.f32.mrb[0].mxu0
        %v3168 = vpop.f32.mrb[0].mxu0
        %3169 = vmatprep.mubr.bf16.mxu0 0
        %3170 = vmatmul.mubr.bf16.gmra.mrb[0].mxu0 %v2434
        %v3171 = vpop.f32.mrb[0].mxu0
        %v3172 = vadd.f32 0.0, %v3171
        %v3173 = vpop.f32.mrb[0].mxu0
        %v3174 = vpop.f32.mrb[0].mxu0
        %v3175 = vadd.f32 0.0, %v3174
        %v3176 = vpop.f32.mrb[0].mxu0
        %3177 = vmatprep.mubr.bf16.mxu0 0
        %3178 = vmatmul.mubr.bf16.gmra.mrb[0].mxu0 %v2437
        %v3179 = vpop.f32.mrb[0].mxu0
        %v3180 = vadd.f32 0.0, %v3179
        %v3181 = vpop.f32.mrb[0].mxu0
        %v3182 = vpop.f32.mrb[0].mxu0
        %v3183 = vadd.f32 0.0, %v3182
        %v3184 = vpop.f32.mrb[0].mxu0
        %3185 = vmatprep.mubr.bf16.mxu0 0
        %3186 = vmatmul.mubr.bf16.gmra.mrb[0].mxu0 %v2440
        %v3187 = vpop.f32.mrb[0].mxu0
        %v3188 = vadd.f32 0.0, %v3187
        %v3189 = vpop.f32.mrb[0].mxu0
        %v3190 = vpop.f32.mrb[0].mxu0
        %v3191 = vadd.f32 0.0, %v3190
        %v3192 = vpop.f32.mrb[0].mxu0
        %3193 = vmatprep.mubr.bf16.mxu0 0
        %3194 = vmatmul.mubr.bf16.gmra.mrb[0].mxu0 %v2443
        %v3195 = vpop.f32.mrb[0].mxu0
        %v3196 = vadd.f32 0.0, %v3195
        %v3197 = vpop.f32.mrb[0].mxu0
        %v3198 = vpop.f32.mrb[0].mxu0
        %v3199 = vadd.f32 0.0, %v3198
        %v3200 = vpop.f32.mrb[0].mxu0
        %3201 = vmatprep.mubr.bf16.mxu0 0
        %3202 = vmatmul.mubr.bf16.gmra.mrb[0].mxu0 %v2446
        %v3203 = vpop.f32.mrb[0].mxu0
        %v3204 = vadd.f32 0.0, %v3203
        %v3205 = vpop.f32.mrb[0].mxu0
        %v3206 = vpop.f32.mrb[0].mxu0
        %v3207 = vadd.f32 0.0, %v3206
        %v3208 = vpop.f32.mrb[0].mxu0
        %3209 = vmatprep.mubr.bf16.mxu0 0
        %3210 = vmatmul.mubr.bf16.gmra.mrb[0].mxu0 %v2449
        %v3211 = vpop.f32.mrb[0].mxu0
        %v3212 = vadd.f32 0.0, %v3211
        %v3213 = vpop.f32.mrb[0].mxu0
        %v3214 = vpop.f32.mrb[0].mxu0
        %v3215 = vadd.f32 0.0, %v3214
        %v3216 = vpop.f32.mrb[0].mxu0
        %3217 = vmatprep.mubr.bf16.mxu0 0
        %3218 = vmatmul.mubr.bf16.gmra.mrb[0].mxu0 %v2452
        %v3219 = vpop.f32.mrb[0].mxu0
        %v3220 = vadd.f32 0.0, %v3219
        %v3221 = vpop.f32.mrb[0].mxu0
        %v3222 = vpop.f32.mrb[0].mxu0
        %v3223 = vadd.f32 0.0, %v3222
        %v3224 = vpop.f32.mrb[0].mxu0
        %3225 = vmatprep.mubr.bf16.mxu0 0
        %3226 = vmatmul.mubr.bf16.gmra.mrb[0].mxu0 %v2455
        %v3227 = vpop.f32.mrb[0].mxu0
        %v3228 = vadd.f32 0.0, %v3227
        %v3229 = vpop.f32.mrb[0].mxu0
        %v3230 = vpop.f32.mrb[0].mxu0
        %v3231 = vadd.f32 0.0, %v3230
        %v3232 = vpop.f32.mrb[0].mxu0
        %3233 = vmatprep.mubr.bf16.mxu0 0
        %3234 = vmatmul.mubr.bf16.gmra.mrb[0].mxu0 %v2458
        %v3235 = vpop.f32.mrb[0].mxu0
        %v3236 = vadd.f32 0.0, %v3235
        %v3237 = vpop.f32.mrb[0].mxu0
        %v3238 = vpop.f32.mrb[0].mxu0
        %v3239 = vadd.f32 0.0, %v3238
        %v3240 = vpop.f32.mrb[0].mxu0
        %3241 = vmatprep.mubr.bf16.mxu0 0
        %3242 = vmatmul.mubr.bf16.gmra.mrb[0].mxu0 %v2461
        %v3243 = vpop.f32.mrb[0].mxu0
        %v3244 = vadd.f32 0.0, %v3243
        %v3245 = vpop.f32.mrb[0].mxu0
        %v3246 = vpop.f32.mrb[0].mxu0
        %v3247 = vadd.f32 0.0, %v3246
        %v3248 = vpop.f32.mrb[0].mxu0
        %3249 = vmatprep.mubr.bf16.mxu0 0
        %3250 = vmatmul.mubr.bf16.gmra.mrb[0].mxu0 %v2464
        %v3251 = vpop.f32.mrb[0].mxu0
        %v3252 = vadd.f32 0.0, %v3251
        %v3253 = vpop.f32.mrb[0].mxu0
        %v3254 = vpop.f32.mrb[0].mxu0
        %v3255 = vadd.f32 0.0, %v3254
        %v3256 = vpop.f32.mrb[0].mxu0
        %3257 = vmatprep.mubr.bf16.mxu0 0
        %3258 = vmatmul.mubr.bf16.gmra.mrb[0].mxu0 %v2467
        %v3259 = vpop.f32.mrb[0].mxu0
        %v3260 = vadd.f32 0.0, %v3259
        %v3261 = vpop.f32.mrb[0].mxu0
        %v3262 = vpop.f32.mrb[0].mxu0
        %v3263 = vadd.f32 0.0, %v3262
        %v3264 = vpop.f32.mrb[0].mxu0
        %3265 = vmatprep.mubr.bf16.mxu0 0
        %3266 = vmatmul.mubr.bf16.gmra.mrb[0].mxu0 %v2470
        %v3267 = vpop.f32.mrb[0].mxu0
        %v3268 = vadd.f32 0.0, %v3267
        %v3269 = vpop.f32.mrb[0].mxu0
        %v3270 = vpop.f32.mrb[0].mxu0
        %v3271 = vadd.f32 0.0, %v3270
        %v3272 = vpop.f32.mrb[0].mxu0
        %3273 = vmatprep.mubr.bf16.mxu0 0
        %3274 = vmatmul.mubr.bf16.gmra.mrb[0].mxu0 %v2473
        %v3275 = vpop.f32.mrb[0].mxu0
        %v3276 = vadd.f32 0.0, %v3275
        %v3277 = vpop.f32.mrb[0].mxu0
        %v3278 = vpop.f32.mrb[0].mxu0
        %v3279 = vadd.f32 0.0, %v3278
        %v3280 = vpop.f32.mrb[0].mxu0
        %3281 = vmatprep.mubr.bf16.mxu0 0
        %3282 = vmatmul.mubr.bf16.gmra.mrb[0].mxu0 %v2476
        %v3283 = vpop.f32.mrb[0].mxu0
        %v3284 = vadd.f32 0.0, %v3283
        %v3285 = vpop.f32.mrb[0].mxu0
        %v3286 = vpop.f32.mrb[0].mxu0
        %v3287 = vadd.f32 0.0, %v3286
        %v3288 = vpop.f32.mrb[0].mxu0
        %3289 = vmatprep.mubr.bf16.mxu0 0
        %3290 = vmatmul.mubr.bf16.gmra.mrb[0].mxu0 %v2479
        %v3291 = vpop.f32.mrb[0].mxu0
        %v3292 = vadd.f32 0.0, %v3291
        %v3293 = vpop.f32.mrb[0].mxu0
        %v3294 = vpop.f32.mrb[0].mxu0
        %v3295 = vadd.f32 0.0, %v3294
        %v3296 = vpop.f32.mrb[0].mxu0
        %3297 = vmatprep.mubr.bf16.mxu0 0
        %3298 = vmatmul.mubr.bf16.gmra.mrb[0].mxu0 %v2482
        %v3299 = vpop.f32.mrb[0].mxu0
        %v3300 = vpop.f32.mrb[0].mxu0
        %v3301 = vpop.f32.mrb[0].mxu0
        %v3302 = vpop.f32.mrb[0].mxu0
        %3303 = vdwg.mxu0
        %v3304 = vadd.f32 %v3094, %v3172
        %v3305 = vadd.f32 %v3095, %v3175
        %v3306 = vadd.f32 %v3096, %v3180
        %v3307 = vadd.f32 %v3097, %v3183
        %v3308 = vadd.f32 %v3098, %v3188
        %v3309 = vadd.f32 %v3099, %v3191
        %v3310 = vadd.f32 %v3100, %v3196
        %v3311 = vadd.f32 %v3101, %v3199
        %v3312 = vadd.f32 %v3102, %v3204
        %v3313 = vadd.f32 %v3103, %v3207
        %v3314 = vadd.f32 %v3104, %v3212
        %v3315 = vadd.f32 %v3105, %v3215
        %v3316 = vadd.f32 %v3106, %v3220
        %v3317 = vadd.f32 %v3107, %v3223
        %v3318 = vadd.f32 %v3108, %v3228
        %v3319 = vadd.f32 %v3109, %v3231
        %v3320 = vadd.f32 %v3110, %v3236
        %v3321 = vadd.f32 %v3111, %v3239
        %v3322 = vadd.f32 %v3112, %v3244
        %v3323 = vadd.f32 %v3113, %v3247
        %v3324 = vadd.f32 %v3114, %v3252
        %v3325 = vadd.f32 %v3115, %v3255
        %v3326 = vadd.f32 %v3116, %v3260
        %v3327 = vadd.f32 %v3117, %v3263
        %v3328 = vadd.f32 %v3118, %v3268
        %v3329 = vadd.f32 %v3119, %v3271
        %v3330 = vadd.f32 %v3120, %v3276
        %v3331 = vadd.f32 %v3121, %v3279
        %v3332 = vadd.f32 %v3122, %v3284
        %v3333 = vadd.f32 %v3123, %v3287
        %v3334 = vadd.f32 %v3124, %v3292
        %v3335 = vadd.f32 %v3125, %v3295
        %v3336 = vrot.slane %v1865, 1
        %v3337 = vrot.slane %v1866, 1
        %v3338 = vrot.slane %v1867, 1
        %v3339 = vrot.slane %v1868, 1
        %v3340 = vrot.slane %v1869, 1
        %v3341 = vrot.slane %v1870, 1
        %v3342 = vrot.slane %v1871, 1
        %v3343 = vrot.slane %v1872, 1
        %v3344 = vrot.slane %v1873, 1
        %v3345 = vrot.slane %v1874, 1
        %v3346 = vrot.slane %v1875, 1
        %v3347 = vrot.slane %v1876, 1
        %v3348 = vrot.slane %v1877, 1
        %v3349 = vrot.slane %v1878, 1
        %v3350 = vrot.slane %v1879, 1
        %v3351 = vrot.slane %v1880, 1
        %v3352 = vrot.slane %v1881, 1
        %v3353 = vrot.slane %v1882, 1
        %v3354 = vrot.slane %v1883, 1
        %v3355 = vrot.slane %v1884, 1
        %v3356 = vrot.slane %v1885, 1
        %v3357 = vrot.slane %v1886, 1
        %v3358 = vrot.slane %v1887, 1
        %v3359 = vrot.slane %v1888, 1
        %v3360 = vrot.slane %v1889, 1
        %v3361 = vrot.slane %v1890, 1
        %v3362 = vrot.slane %v1891, 1
        %v3363 = vrot.slane %v1892, 1
        %v3364 = vrot.slane %v1893, 1
        %v3365 = vrot.slane %v1894, 1
        %v3366 = vrot.slane %v1895, 1
        %v3367 = vrot.slane %v1896, 1
        %v3368 = vrot.slane %v1897, 1
        %v3369 = vrot.slane %v1898, 1
        %v3370 = vrot.slane %v1899, 1
        %v3371 = vrot.slane %v1900, 1
        %vm3372 = vcmp.lt.s32.totalorder %v1569, 7
        %v3373 = vsel %vm3372, %v3370, %v3371
        %v3374 = vsel %vm3372, %v3369, %v3370
        %v3375 = vsel %vm3372, %v3368, %v3369
        %v3376 = vsel %vm3372, %v3367, %v3368
        %v3377 = vsel %vm3372, %v3366, %v3367
        %v3378 = vsel %vm3372, %v3365, %v3366
        %v3379 = vsel %vm3372, %v3364, %v3365
        %v3380 = vsel %vm3372, %v3363, %v3364
        %v3381 = vsel %vm3372, %v3362, %v3363
        %v3382 = vsel %vm3372, %v3361, %v3362
        %v3383 = vsel %vm3372, %v3360, %v3361
        %v3384 = vsel %vm3372, %v3359, %v3360
        %v3385 = vsel %vm3372, %v3358, %v3359
        %v3386 = vsel %vm3372, %v3357, %v3358
        %v3387 = vsel %vm3372, %v3356, %v3357
        %v3388 = vsel %vm3372, %v3355, %v3356
        %v3389 = vsel %vm3372, %v3354, %v3355
        %v3390 = vsel %vm3372, %v3353, %v3354
        %v3391 = vsel %vm3372, %v3352, %v3353
        %v3392 = vsel %vm3372, %v3351, %v3352
        %v3393 = vsel %vm3372, %v3350, %v3351
        %v3394 = vsel %vm3372, %v3349, %v3350
        %v3395 = vsel %vm3372, %v3348, %v3349
        %v3396 = vsel %vm3372, %v3347, %v3348
        %v3397 = vsel %vm3372, %v3346, %v3347
        %v3398 = vsel %vm3372, %v3345, %v3346
        %v3399 = vsel %vm3372, %v3344, %v3345
        %v3400 = vsel %vm3372, %v3343, %v3344
        %v3401 = vsel %vm3372, %v3342, %v3343
        %v3402 = vsel %vm3372, %v3341, %v3342
        %v3403 = vsel %vm3372, %v3340, %v3341
        %v3404 = vsel %vm3372, %v3339, %v3340
        %v3405 = vsel %vm3372, %v3338, %v3339
        %v3406 = vsel %vm3372, %v3337, %v3338
        %v3407 = vsel %vm3372, %v3336, %v3337
        %v3408 = vsel %vm3372, %v3371, %v3336
        %v3409 = vsel %vm2369, 1, 0
        %v3410 = vsel %vm2370, 1, 0
        %v3411 = vsel %vm2371, 1, 0
        %v3412 = vsel %vm2372, 1, 0
        %v3413 = vsel %vm2373, 1, 0
        %v3414 = vsel %vm2374, 1, 0
        %v3415 = vsel %vm2375, 1, 0
        %v3416 = vsel %vm2376, 1, 0
        %v3417 = vsel %vm2377, 1, 0
        %v3418 = vsel %vm2378, 1, 0
        %v3419 = vsel %vm2379, 1, 0
        %v3420 = vsel %vm2380, 1, 0
        %v3421 = vsel %vm2381, 1, 0
        %v3422 = vsel %vm2382, 1, 0
        %v3423 = vsel %vm2383, 1, 0
        %v3424 = vsel %vm2384, 1, 0
        %v3425 = vsel %vm2385, 1, 0
        %v3426 = vsel %vm2386, 1, 0
        %v3427 = vsel %vm2387, 1, 0
        %v3428 = vsel %vm2388, 1, 0
        %v3429 = vsel %vm2389, 1, 0
        %v3430 = vsel %vm2390, 1, 0
        %v3431 = vsel %vm2391, 1, 0
        %v3432 = vsel %vm2392, 1, 0
        %v3433 = vsel %vm2393, 1, 0
        %v3434 = vsel %vm2394, 1, 0
        %v3435 = vsel %vm2395, 1, 0
        %v3436 = vsel %vm2396, 1, 0
        %v3437 = vsel %vm2397, 1, 0
        %v3438 = vsel %vm2398, 1, 0
        %v3439 = vsel %vm2399, 1, 0
        %v3440 = vsel %vm2400, 1, 0
        %v3441 = vsel %vm2401, 1, 0
        %v3442 = vsel %vm2402, 1, 0
        %v3443 = vsel %vm2403, 1, 0
        %v3444 = vsel %vm2404, 1, 0
        %vm3445 = vcmp.eq.s32.totalorder %v3409, 1
        %vm3446 = vcmp.eq.s32.totalorder %v3410, 1
        %vm3447 = vcmp.eq.s32.totalorder %v3411, 1
        %vm3448 = vcmp.eq.s32.totalorder %v3412, 1
        %vm3449 = vcmp.eq.s32.totalorder %v3413, 1
        %vm3450 = vcmp.eq.s32.totalorder %v3414, 1
        %vm3451 = vcmp.eq.s32.totalorder %v3415, 1
        %vm3452 = vcmp.eq.s32.totalorder %v3416, 1
        %vm3453 = vcmp.eq.s32.totalorder %v3417, 1
        %vm3454 = vcmp.eq.s32.totalorder %v3418, 1
        %vm3455 = vcmp.eq.s32.totalorder %v3419, 1
        %vm3456 = vcmp.eq.s32.totalorder %v3420, 1
        %vm3457 = vcmp.eq.s32.totalorder %v3421, 1
        %vm3458 = vcmp.eq.s32.totalorder %v3422, 1
        %vm3459 = vcmp.eq.s32.totalorder %v3423, 1
        %vm3460 = vcmp.eq.s32.totalorder %v3424, 1
        %vm3461 = vcmp.eq.s32.totalorder %v3425, 1
        %vm3462 = vcmp.eq.s32.totalorder %v3426, 1
        %vm3463 = vcmp.eq.s32.totalorder %v3427, 1
        %vm3464 = vcmp.eq.s32.totalorder %v3428, 1
        %vm3465 = vcmp.eq.s32.totalorder %v3429, 1
        %vm3466 = vcmp.eq.s32.totalorder %v3430, 1
        %vm3467 = vcmp.eq.s32.totalorder %v3431, 1
        %vm3468 = vcmp.eq.s32.totalorder %v3432, 1
        %vm3469 = vcmp.eq.s32.totalorder %v3433, 1
        %vm3470 = vcmp.eq.s32.totalorder %v3434, 1
        %vm3471 = vcmp.eq.s32.totalorder %v3435, 1
        %vm3472 = vcmp.eq.s32.totalorder %v3436, 1
        %vm3473 = vcmp.eq.s32.totalorder %v3437, 1
        %vm3474 = vcmp.eq.s32.totalorder %v3438, 1
        %vm3475 = vcmp.eq.s32.totalorder %v3439, 1
        %vm3476 = vcmp.eq.s32.totalorder %v3440, 1
        %vm3477 = vcmp.eq.s32.totalorder %v3441, 1
        %vm3478 = vcmp.eq.s32.totalorder %v3442, 1
        %vm3479 = vcmp.eq.s32.totalorder %v3443, 1
        %vm3480 = vcmp.eq.s32.totalorder %v3444, 1
        %v3481 = vsel %vm3445, %v3373, 0.0
        %v3482 = vsel %vm3446, %v3408, 0.0
        %v3483 = vsel %vm3447, %v3407, 0.0
        %v3484 = vsel %vm3448, %v3406, 0.0
        %v3485 = vsel %vm3449, %v3405, 0.0
        %v3486 = vsel %vm3450, %v3404, 0.0
        %v3487 = vsel %vm3451, %v3403, 0.0
        %v3488 = vsel %vm3452, %v3402, 0.0
        %v3489 = vsel %vm3453, %v3401, 0.0
        %v3490 = vsel %vm3454, %v3400, 0.0
        %v3491 = vsel %vm3455, %v3399, 0.0
        %v3492 = vsel %vm3456, %v3398, 0.0
        %v3493 = vsel %vm3457, %v3397, 0.0
        %v3494 = vsel %vm3458, %v3396, 0.0
        %v3495 = vsel %vm3459, %v3395, 0.0
        %v3496 = vsel %vm3460, %v3394, 0.0
        %v3497 = vsel %vm3461, %v3393, 0.0
        %v3498 = vsel %vm3462, %v3392, 0.0
        %v3499 = vsel %vm3463, %v3391, 0.0
        %v3500 = vsel %vm3464, %v3390, 0.0
        %v3501 = vsel %vm3465, %v3389, 0.0
        %v3502 = vsel %vm3466, %v3388, 0.0
        %v3503 = vsel %vm3467, %v3387, 0.0
        %v3504 = vsel %vm3468, %v3386, 0.0
        %v3505 = vsel %vm3469, %v3385, 0.0
        %v3506 = vsel %vm3470, %v3384, 0.0
        %v3507 = vsel %vm3471, %v3383, 0.0
        %v3508 = vsel %vm3472, %v3382, 0.0
        %v3509 = vsel %vm3473, %v3381, 0.0
        %v3510 = vsel %vm3474, %v3380, 0.0
        %v3511 = vsel %vm3475, %v3379, 0.0
        %v3512 = vsel %vm3476, %v3378, 0.0
        %v3513 = vsel %vm3477, %v3377, 0.0
        %v3514 = vsel %vm3478, %v3376, 0.0
        %v3515 = vsel %vm3479, %v3375, 0.0
        %v3516 = vsel %vm3480, %v3374, 0.0
        %v3517 = vpack.c.bf16 %v3482, %v3481
        %v3518 = vpack.c.bf16 %v3484, %v3483
        %v3519 = vpack.c.bf16 %v3486, %v3485
        %v3520 = vpack.c.bf16 %v3488, %v3487
        %v3521 = vpack.c.bf16 %v3490, %v3489
        %v3522 = vpack.c.bf16 %v3492, %v3491
        %v3523 = vpack.c.bf16 %v3494, %v3493
        %v3524 = vpack.c.bf16 %v3496, %v3495
        %v3525 = vpack.c.bf16 %v3498, %v3497
        %v3526 = vpack.c.bf16 %v3500, %v3499
        %v3527 = vpack.c.bf16 %v3502, %v3501
        %v3528 = vpack.c.bf16 %v3504, %v3503
        %v3529 = vpack.c.bf16 %v3506, %v3505
        %v3530 = vpack.c.bf16 %v3508, %v3507
        %v3531 = vpack.c.bf16 %v3510, %v3509
        %v3532 = vpack.c.bf16 %v3512, %v3511
        %v3533 = vpack.c.bf16 %v3514, %v3513
        %v3534 = vpack.c.bf16 %v3516, %v3515
        %s3535 = scalar_lea.vmem %s7, 8
        %v3536 = vld [vmem:[%s3535] sm:$0xf]
        %v3538 = vsel %vm2432, %v3517, 0
        %v3541 = vsel %vm2432, %v3518, 0
        %v3544 = vsel %vm2432, %v3519, 0
        %v3547 = vsel %vm2432, %v3520, 0
        %v3550 = vsel %vm2432, %v3521, 0
        %v3553 = vsel %vm2432, %v3522, 0
        %v3556 = vsel %vm2432, %v3523, 0
        %v3559 = vsel %vm2432, %v3524, 0
        %v3562 = vsel %vm2432, %v3525, 0
        %v3565 = vsel %vm2432, %v3526, 0
        %v3568 = vsel %vm2432, %v3527, 0
        %v3571 = vsel %vm2432, %v3528, 0
        %v3574 = vsel %vm2432, %v3529, 0
        %v3577 = vsel %vm2432, %v3530, 0
        %v3580 = vsel %vm2432, %v3531, 0
        %v3583 = vsel %vm2432, %v3532, 0
        %v3586 = vsel %vm2432, %v3533, 0
        %v3589 = vsel %vm2432, %v3534, 0
        %v3592 = vsel %vm2487, %v3536, 0
        %3594 = vmatprep.subr.bf16.mxu0 0
        %3595 = vmatpush1.bf16.msra.mxu0 %v3592
        %3596 = vmatprep.subr.bf16.mxu0 0
        %3597 = vmatpush1.bf16.msra.mxu0 0
        %3598 = vmatprep.subr.bf16.mxu0 0
        %3599 = vmatpush1.bf16.msra.mxu0 0
        %3600 = vmatprep.subr.bf16.mxu0 0
        %3601 = vmatpush1.bf16.msra.mxu0 0
        %3602 = vmatprep.subr.bf16.mxu0 0
        %3603 = vmatpush1.bf16.msra.mxu0 0
        %3604 = vmatprep.subr.bf16.mxu0 0
        %3605 = vmatpush1.bf16.msra.mxu0 0
        %3606 = vmatprep.subr.bf16.mxu0 0
        %3607 = vmatpush1.bf16.msra.mxu0 0
        %3608 = vmatprep.subr.bf16.mxu0 0
        %3609 = vmatpush1.bf16.msra.mxu0 0
        %3610 = vmatprep.subr.bf16.mxu0 0
        %3611 = vmatpush1.bf16.msra.mxu0 0
        %3612 = vmatprep.subr.bf16.mxu0 0
        %3613 = vmatpush1.bf16.msra.mxu0 0
        %3614 = vmatprep.subr.bf16.mxu0 0
        %3615 = vmatpush1.bf16.msra.mxu0 0
        %3616 = vmatprep.subr.bf16.mxu0 0
        %3617 = vmatpush1.bf16.msra.mxu0 0
        %3618 = vmatprep.subr.bf16.mxu0 0
        %3619 = vmatpush1.bf16.msra.mxu0 0
        %3620 = vmatprep.subr.bf16.mxu0 0
        %3621 = vmatpush1.bf16.msra.mxu0 0
        %3622 = vmatprep.subr.bf16.mxu0 0
        %3623 = vmatpush1.bf16.msra.mxu0 0
        %3624 = vmatprep.subr.bf16.mxu0 0
        %3625 = vmatpush1.bf16.msra.mxu0 0
        %3626 = vmatprep.mubr.bf16.mxu0 0
        %3627 = vmatmul.mubr.bf16.gmra.mrb[0].mxu0 %v3538
        %v3628 = vpop.f32.mrb[0].mxu0
        %v3629 = vpop.f32.mrb[0].mxu0
        %v3630 = vpop.f32.mrb[0].mxu0
        %v3631 = vpop.f32.mrb[0].mxu0
        %3632 = vmatprep.mubr.bf16.mxu0 0
        %3633 = vmatmul.mubr.bf16.gmra.mrb[0].mxu0 %v3541
        %v3634 = vpop.f32.mrb[0].mxu0
        %v3635 = vadd.f32 0.0, %v3634
        %v3636 = vpop.f32.mrb[0].mxu0
        %v3637 = vpop.f32.mrb[0].mxu0
        %v3638 = vadd.f32 0.0, %v3637
        %v3639 = vpop.f32.mrb[0].mxu0
        %3640 = vmatprep.mubr.bf16.mxu0 0
        %3641 = vmatmul.mubr.bf16.gmra.mrb[0].mxu0 %v3544
        %v3642 = vpop.f32.mrb[0].mxu0
        %v3643 = vadd.f32 0.0, %v3642
        %v3644 = vpop.f32.mrb[0].mxu0
        %v3645 = vpop.f32.mrb[0].mxu0
        %v3646 = vadd.f32 0.0, %v3645
        %v3647 = vpop.f32.mrb[0].mxu0
        %3648 = vmatprep.mubr.bf16.mxu0 0
        %3649 = vmatmul.mubr.bf16.gmra.mrb[0].mxu0 %v3547
        %v3650 = vpop.f32.mrb[0].mxu0
        %v3651 = vadd.f32 0.0, %v3650
        %v3652 = vpop.f32.mrb[0].mxu0
        %v3653 = vpop.f32.mrb[0].mxu0
        %v3654 = vadd.f32 0.0, %v3653
        %v3655 = vpop.f32.mrb[0].mxu0
        %3656 = vmatprep.mubr.bf16.mxu0 0
        %3657 = vmatmul.mubr.bf16.gmra.mrb[0].mxu0 %v3550
        %v3658 = vpop.f32.mrb[0].mxu0
        %v3659 = vadd.f32 0.0, %v3658
        %v3660 = vpop.f32.mrb[0].mxu0
        %v3661 = vpop.f32.mrb[0].mxu0
        %v3662 = vadd.f32 0.0, %v3661
        %v3663 = vpop.f32.mrb[0].mxu0
        %3664 = vmatprep.mubr.bf16.mxu0 0
        %3665 = vmatmul.mubr.bf16.gmra.mrb[0].mxu0 %v3553
        %v3666 = vpop.f32.mrb[0].mxu0
        %v3667 = vadd.f32 0.0, %v3666
        %v3668 = vpop.f32.mrb[0].mxu0
        %v3669 = vpop.f32.mrb[0].mxu0
        %v3670 = vadd.f32 0.0, %v3669
        %v3671 = vpop.f32.mrb[0].mxu0
        %3672 = vmatprep.mubr.bf16.mxu0 0
        %3673 = vmatmul.mubr.bf16.gmra.mrb[0].mxu0 %v3556
        %v3674 = vpop.f32.mrb[0].mxu0
        %v3675 = vadd.f32 0.0, %v3674
        %v3676 = vpop.f32.mrb[0].mxu0
        %v3677 = vpop.f32.mrb[0].mxu0
        %v3678 = vadd.f32 0.0, %v3677
        %v3679 = vpop.f32.mrb[0].mxu0
        %3680 = vmatprep.mubr.bf16.mxu0 0
        %3681 = vmatmul.mubr.bf16.gmra.mrb[0].mxu0 %v3559
        %v3682 = vpop.f32.mrb[0].mxu0
        %v3683 = vadd.f32 0.0, %v3682
        %v3684 = vpop.f32.mrb[0].mxu0
        %v3685 = vpop.f32.mrb[0].mxu0
        %v3686 = vadd.f32 0.0, %v3685
        %v3687 = vpop.f32.mrb[0].mxu0
        %3688 = vmatprep.mubr.bf16.mxu0 0
        %3689 = vmatmul.mubr.bf16.gmra.mrb[0].mxu0 %v3562
        %v3690 = vpop.f32.mrb[0].mxu0
        %v3691 = vadd.f32 0.0, %v3690
        %v3692 = vpop.f32.mrb[0].mxu0
        %v3693 = vpop.f32.mrb[0].mxu0
        %v3694 = vadd.f32 0.0, %v3693
        %v3695 = vpop.f32.mrb[0].mxu0
        %3696 = vmatprep.mubr.bf16.mxu0 0
        %3697 = vmatmul.mubr.bf16.gmra.mrb[0].mxu0 %v3565
        %v3698 = vpop.f32.mrb[0].mxu0
        %v3699 = vadd.f32 0.0, %v3698
        %v3700 = vpop.f32.mrb[0].mxu0
        %v3701 = vpop.f32.mrb[0].mxu0
        %v3702 = vadd.f32 0.0, %v3701
        %v3703 = vpop.f32.mrb[0].mxu0
        %3704 = vmatprep.mubr.bf16.mxu0 0
        %3705 = vmatmul.mubr.bf16.gmra.mrb[0].mxu0 %v3568
        %v3706 = vpop.f32.mrb[0].mxu0
        %v3707 = vadd.f32 0.0, %v3706
        %v3708 = vpop.f32.mrb[0].mxu0
        %v3709 = vpop.f32.mrb[0].mxu0
        %v3710 = vadd.f32 0.0, %v3709
        %v3711 = vpop.f32.mrb[0].mxu0
        %3712 = vmatprep.mubr.bf16.mxu0 0
        %3713 = vmatmul.mubr.bf16.gmra.mrb[0].mxu0 %v3571
        %v3714 = vpop.f32.mrb[0].mxu0
        %v3715 = vadd.f32 0.0, %v3714
        %v3716 = vpop.f32.mrb[0].mxu0
        %v3717 = vpop.f32.mrb[0].mxu0
        %v3718 = vadd.f32 0.0, %v3717
        %v3719 = vpop.f32.mrb[0].mxu0
        %3720 = vmatprep.mubr.bf16.mxu0 0
        %3721 = vmatmul.mubr.bf16.gmra.mrb[0].mxu0 %v3574
        %v3722 = vpop.f32.mrb[0].mxu0
        %v3723 = vadd.f32 0.0, %v3722
        %v3724 = vpop.f32.mrb[0].mxu0
        %v3725 = vpop.f32.mrb[0].mxu0
        %v3726 = vadd.f32 0.0, %v3725
        %v3727 = vpop.f32.mrb[0].mxu0
        %3728 = vmatprep.mubr.bf16.mxu0 0
        %3729 = vmatmul.mubr.bf16.gmra.mrb[0].mxu0 %v3577
        %v3730 = vpop.f32.mrb[0].mxu0
        %v3731 = vadd.f32 0.0, %v3730
        %v3732 = vpop.f32.mrb[0].mxu0
        %v3733 = vpop.f32.mrb[0].mxu0
        %v3734 = vadd.f32 0.0, %v3733
        %v3735 = vpop.f32.mrb[0].mxu0
        %3736 = vmatprep.mubr.bf16.mxu0 0
        %3737 = vmatmul.mubr.bf16.gmra.mrb[0].mxu0 %v3580
        %v3738 = vpop.f32.mrb[0].mxu0
        %v3739 = vadd.f32 0.0, %v3738
        %v3740 = vpop.f32.mrb[0].mxu0
        %v3741 = vpop.f32.mrb[0].mxu0
        %v3742 = vadd.f32 0.0, %v3741
        %v3743 = vpop.f32.mrb[0].mxu0
        %3744 = vmatprep.mubr.bf16.mxu0 0
        %3745 = vmatmul.mubr.bf16.gmra.mrb[0].mxu0 %v3583
        %v3746 = vpop.f32.mrb[0].mxu0
        %v3747 = vadd.f32 0.0, %v3746
        %v3748 = vpop.f32.mrb[0].mxu0
        %v3749 = vpop.f32.mrb[0].mxu0
        %v3750 = vadd.f32 0.0, %v3749
        %v3751 = vpop.f32.mrb[0].mxu0
        %3752 = vmatprep.mubr.bf16.mxu0 0
        %3753 = vmatmul.mubr.bf16.gmra.mrb[0].mxu0 %v3586
        %v3754 = vpop.f32.mrb[0].mxu0
        %v3755 = vadd.f32 0.0, %v3754
        %v3756 = vpop.f32.mrb[0].mxu0
        %v3757 = vpop.f32.mrb[0].mxu0
        %v3758 = vadd.f32 0.0, %v3757
        %v3759 = vpop.f32.mrb[0].mxu0
        %3760 = vmatprep.mubr.bf16.mxu0 0
        %3761 = vmatmul.mubr.bf16.gmra.mrb[0].mxu0 %v3589
        %v3762 = vpop.f32.mrb[0].mxu0
        %v3763 = vpop.f32.mrb[0].mxu0
        %v3764 = vpop.f32.mrb[0].mxu0
        %v3765 = vpop.f32.mrb[0].mxu0
        %3766 = vdwg.mxu0
        %v3767 = vadd.f32 %v3304, %v3635
        %v3768 = vadd.f32 %v3305, %v3638
        %v3769 = vadd.f32 %v3306, %v3643
        %v3770 = vadd.f32 %v3307, %v3646
        %v3771 = vadd.f32 %v3308, %v3651
        %v3772 = vadd.f32 %v3309, %v3654
        %v3773 = vadd.f32 %v3310, %v3659
        %v3774 = vadd.f32 %v3311, %v3662
        %v3775 = vadd.f32 %v3312, %v3667
        %v3776 = vadd.f32 %v3313, %v3670
        %v3777 = vadd.f32 %v3314, %v3675
        %v3778 = vadd.f32 %v3315, %v3678
        %v3779 = vadd.f32 %v3316, %v3683
        %v3780 = vadd.f32 %v3317, %v3686
        %v3781 = vadd.f32 %v3318, %v3691
        %v3782 = vadd.f32 %v3319, %v3694
        %v3783 = vadd.f32 %v3320, %v3699
        %v3784 = vadd.f32 %v3321, %v3702
        %v3785 = vadd.f32 %v3322, %v3707
        %v3786 = vadd.f32 %v3323, %v3710
        %v3787 = vadd.f32 %v3324, %v3715
        %v3788 = vadd.f32 %v3325, %v3718
        %v3789 = vadd.f32 %v3326, %v3723
        %v3790 = vadd.f32 %v3327, %v3726
        %v3791 = vadd.f32 %v3328, %v3731
        %v3792 = vadd.f32 %v3329, %v3734
        %v3793 = vadd.f32 %v3330, %v3739
        %v3794 = vadd.f32 %v3331, %v3742
        %v3795 = vadd.f32 %v3332, %v3747
        %v3796 = vadd.f32 %v3333, %v3750
        %v3797 = vadd.f32 %v3334, %v3755
        %v3798 = vadd.f32 %v3335, %v3758
        %v3799 = vsel %vm2773, %v2736, 0.0
        %v3800 = vsel %vm2774, %v2735, 0.0
        %v3801 = vsel %vm2775, %v2734, 0.0
        %v3802 = vsel %vm2776, %v2733, 0.0
        %v3803 = vsel %vm2777, %v2732, 0.0
        %v3804 = vsel %vm2778, %v2731, 0.0
        %v3805 = vsel %vm2779, %v2730, 0.0
        %v3806 = vsel %vm2780, %v2729, 0.0
        %v3807 = vsel %vm2781, %v2728, 0.0
        %v3808 = vsel %vm2782, %v2727, 0.0
        %v3809 = vsel %vm2783, %v2726, 0.0
        %v3810 = vsel %vm2784, %v2725, 0.0
        %v3811 = vsel %vm2785, %v2724, 0.0
        %v3812 = vsel %vm2786, %v2723, 0.0
        %v3813 = vsel %vm2787, %v2722, 0.0
        %v3814 = vsel %vm2788, %v2721, 0.0
        %v3815 = vsel %vm2789, %v2720, 0.0
        %v3816 = vsel %vm2790, %v2719, 0.0
        %v3817 = vsel %vm2791, %v2718, 0.0
        %v3818 = vsel %vm2792, %v2717, 0.0
        %v3819 = vsel %vm2793, %v2716, 0.0
        %v3820 = vsel %vm2794, %v2715, 0.0
        %v3821 = vsel %vm2795, %v2714, 0.0
        %v3822 = vsel %vm2796, %v2713, 0.0
        %v3823 = vsel %vm2797, %v2712, 0.0
        %v3824 = vsel %vm2798, %v2711, 0.0
        %v3825 = vsel %vm2799, %v2710, 0.0
        %v3826 = vsel %vm2800, %v2709, 0.0
        %v3827 = vsel %vm2801, %v2708, 0.0
        %v3828 = vsel %vm2802, %v2707, 0.0
        %v3829 = vsel %vm2803, %v2706, 0.0
        %v3830 = vsel %vm2804, %v2705, 0.0
        %v3831 = vsel %vm2805, %v2704, 0.0
        %v3832 = vsel %vm2806, %v2703, 0.0
        %v3833 = vsel %vm2807, %v2702, 0.0
        %v3834 = vsel %vm2808, %v2701, 0.0
        %v3835 = vpack.c.bf16 %v3800, %v3799
        %v3836 = vpack.c.bf16 %v3802, %v3801
        %v3837 = vpack.c.bf16 %v3804, %v3803
        %v3838 = vpack.c.bf16 %v3806, %v3805
        %v3839 = vpack.c.bf16 %v3808, %v3807
        %v3840 = vpack.c.bf16 %v3810, %v3809
        %v3841 = vpack.c.bf16 %v3812, %v3811
        %v3842 = vpack.c.bf16 %v3814, %v3813
        %v3843 = vpack.c.bf16 %v3816, %v3815
        %v3844 = vpack.c.bf16 %v3818, %v3817
        %v3845 = vpack.c.bf16 %v3820, %v3819
        %v3846 = vpack.c.bf16 %v3822, %v3821
        %v3847 = vpack.c.bf16 %v3824, %v3823
        %v3848 = vpack.c.bf16 %v3826, %v3825
        %v3849 = vpack.c.bf16 %v3828, %v3827
        %v3850 = vpack.c.bf16 %v3830, %v3829
        %v3851 = vpack.c.bf16 %v3832, %v3831
        %v3852 = vpack.c.bf16 %v3834, %v3833
        %s3853 = scalar_lea.vmem %s7, 12
        %v3854 = vld [vmem:[%s3853] sm:$0xf]
        %v3856 = vsel %vm2432, %v3835, 0
        %v3859 = vsel %vm2432, %v3836, 0
        %v3862 = vsel %vm2432, %v3837, 0
        %v3865 = vsel %vm2432, %v3838, 0
        %v3868 = vsel %vm2432, %v3839, 0
        %v3871 = vsel %vm2432, %v3840, 0
        %v3874 = vsel %vm2432, %v3841, 0
        %v3877 = vsel %vm2432, %v3842, 0
        %v3880 = vsel %vm2432, %v3843, 0
        %v3883 = vsel %vm2432, %v3844, 0
        %v3886 = vsel %vm2432, %v3845, 0
        %v3889 = vsel %vm2432, %v3846, 0
        %v3892 = vsel %vm2432, %v3847, 0
        %v3895 = vsel %vm2432, %v3848, 0
        %v3898 = vsel %vm2432, %v3849, 0
        %v3901 = vsel %vm2432, %v3850, 0
        %v3904 = vsel %vm2432, %v3851, 0
        %v3907 = vsel %vm2432, %v3852, 0
        %v3910 = vsel %vm2487, %v3854, 0
        %3912 = vmatprep.subr.bf16.mxu0 0
        %3913 = vmatpush1.bf16.msra.mxu0 %v3910
        %3914 = vmatprep.subr.bf16.mxu0 0
        %3915 = vmatpush1.bf16.msra.mxu0 0
        %3916 = vmatprep.subr.bf16.mxu0 0
        %3917 = vmatpush1.bf16.msra.mxu0 0
        %3918 = vmatprep.subr.bf16.mxu0 0
        %3919 = vmatpush1.bf16.msra.mxu0 0
        %3920 = vmatprep.subr.bf16.mxu0 0
        %3921 = vmatpush1.bf16.msra.mxu0 0
        %3922 = vmatprep.subr.bf16.mxu0 0
        %3923 = vmatpush1.bf16.msra.mxu0 0
        %3924 = vmatprep.subr.bf16.mxu0 0
        %3925 = vmatpush1.bf16.msra.mxu0 0
        %3926 = vmatprep.subr.bf16.mxu0 0
        %3927 = vmatpush1.bf16.msra.mxu0 0
        %3928 = vmatprep.subr.bf16.mxu0 0
        %3929 = vmatpush1.bf16.msra.mxu0 0
        %3930 = vmatprep.subr.bf16.mxu0 0
        %3931 = vmatpush1.bf16.msra.mxu0 0
        %3932 = vmatprep.subr.bf16.mxu0 0
        %3933 = vmatpush1.bf16.msra.mxu0 0
        %3934 = vmatprep.subr.bf16.mxu0 0
        %3935 = vmatpush1.bf16.msra.mxu0 0
        %3936 = vmatprep.subr.bf16.mxu0 0
        %3937 = vmatpush1.bf16.msra.mxu0 0
        %3938 = vmatprep.subr.bf16.mxu0 0
        %3939 = vmatpush1.bf16.msra.mxu0 0
        %3940 = vmatprep.subr.bf16.mxu0 0
        %3941 = vmatpush1.bf16.msra.mxu0 0
        %3942 = vmatprep.subr.bf16.mxu0 0
        %3943 = vmatpush1.bf16.msra.mxu0 0
        %3944 = vmatprep.mubr.bf16.mxu0 0
        %3945 = vmatmul.mubr.bf16.gmra.mrb[0].mxu0 %v3856
        %v3946 = vpop.f32.mrb[0].mxu0
        %v3947 = vpop.f32.mrb[0].mxu0
        %v3948 = vpop.f32.mrb[0].mxu0
        %v3949 = vpop.f32.mrb[0].mxu0
        %3950 = vmatprep.mubr.bf16.mxu0 0
        %3951 = vmatmul.mubr.bf16.gmra.mrb[0].mxu0 %v3859
        %v3952 = vpop.f32.mrb[0].mxu0
        %v3953 = vadd.f32 0.0, %v3952
        %v3954 = vpop.f32.mrb[0].mxu0
        %v3955 = vpop.f32.mrb[0].mxu0
        %v3956 = vadd.f32 0.0, %v3955
        %v3957 = vpop.f32.mrb[0].mxu0
        %3958 = vmatprep.mubr.bf16.mxu0 0
        %3959 = vmatmul.mubr.bf16.gmra.mrb[0].mxu0 %v3862
        %v3960 = vpop.f32.mrb[0].mxu0
        %v3961 = vadd.f32 0.0, %v3960
        %v3962 = vpop.f32.mrb[0].mxu0
        %v3963 = vpop.f32.mrb[0].mxu0
        %v3964 = vadd.f32 0.0, %v3963
        %v3965 = vpop.f32.mrb[0].mxu0
        %3966 = vmatprep.mubr.bf16.mxu0 0
        %3967 = vmatmul.mubr.bf16.gmra.mrb[0].mxu0 %v3865
        %v3968 = vpop.f32.mrb[0].mxu0
        %v3969 = vadd.f32 0.0, %v3968
        %v3970 = vpop.f32.mrb[0].mxu0
        %v3971 = vpop.f32.mrb[0].mxu0
        %v3972 = vadd.f32 0.0, %v3971
        %v3973 = vpop.f32.mrb[0].mxu0
        %3974 = vmatprep.mubr.bf16.mxu0 0
        %3975 = vmatmul.mubr.bf16.gmra.mrb[0].mxu0 %v3868
        %v3976 = vpop.f32.mrb[0].mxu0
        %v3977 = vadd.f32 0.0, %v3976
        %v3978 = vpop.f32.mrb[0].mxu0
        %v3979 = vpop.f32.mrb[0].mxu0
        %v3980 = vadd.f32 0.0, %v3979
        %v3981 = vpop.f32.mrb[0].mxu0
        %3982 = vmatprep.mubr.bf16.mxu0 0
        %3983 = vmatmul.mubr.bf16.gmra.mrb[0].mxu0 %v3871
        %v3984 = vpop.f32.mrb[0].mxu0
        %v3985 = vadd.f32 0.0, %v3984
        %v3986 = vpop.f32.mrb[0].mxu0
        %v3987 = vpop.f32.mrb[0].mxu0
        %v3988 = vadd.f32 0.0, %v3987
        %v3989 = vpop.f32.mrb[0].mxu0
        %3990 = vmatprep.mubr.bf16.mxu0 0
        %3991 = vmatmul.mubr.bf16.gmra.mrb[0].mxu0 %v3874
        %v3992 = vpop.f32.mrb[0].mxu0
        %v3993 = vadd.f32 0.0, %v3992
        %v3994 = vpop.f32.mrb[0].mxu0
        %v3995 = vpop.f32.mrb[0].mxu0
        %v3996 = vadd.f32 0.0, %v3995
        %v3997 = vpop.f32.mrb[0].mxu0
        %3998 = vmatprep.mubr.bf16.mxu0 0
        %3999 = vmatmul.mubr.bf16.gmra.mrb[0].mxu0 %v3877
        %v4000 = vpop.f32.mrb[0].mxu0
        %v4001 = vadd.f32 0.0, %v4000
        %v4002 = vpop.f32.mrb[0].mxu0
        %v4003 = vpop.f32.mrb[0].mxu0
        %v4004 = vadd.f32 0.0, %v4003
        %v4005 = vpop.f32.mrb[0].mxu0
        %4006 = vmatprep.mubr.bf16.mxu0 0
        %4007 = vmatmul.mubr.bf16.gmra.mrb[0].mxu0 %v3880
        %v4008 = vpop.f32.mrb[0].mxu0
        %v4009 = vadd.f32 0.0, %v4008
        %v4010 = vpop.f32.mrb[0].mxu0
        %v4011 = vpop.f32.mrb[0].mxu0
        %v4012 = vadd.f32 0.0, %v4011
        %v4013 = vpop.f32.mrb[0].mxu0
        %4014 = vmatprep.mubr.bf16.mxu0 0
        %4015 = vmatmul.mubr.bf16.gmra.mrb[0].mxu0 %v3883
        %v4016 = vpop.f32.mrb[0].mxu0
        %v4017 = vadd.f32 0.0, %v4016
        %v4018 = vpop.f32.mrb[0].mxu0
        %v4019 = vpop.f32.mrb[0].mxu0
        %v4020 = vadd.f32 0.0, %v4019
        %v4021 = vpop.f32.mrb[0].mxu0
        %4022 = vmatprep.mubr.bf16.mxu0 0
        %4023 = vmatmul.mubr.bf16.gmra.mrb[0].mxu0 %v3886
        %v4024 = vpop.f32.mrb[0].mxu0
        %v4025 = vadd.f32 0.0, %v4024
        %v4026 = vpop.f32.mrb[0].mxu0
        %v4027 = vpop.f32.mrb[0].mxu0
        %v4028 = vadd.f32 0.0, %v4027
        %v4029 = vpop.f32.mrb[0].mxu0
        %4030 = vmatprep.mubr.bf16.mxu0 0
        %4031 = vmatmul.mubr.bf16.gmra.mrb[0].mxu0 %v3889
        %v4032 = vpop.f32.mrb[0].mxu0
        %v4033 = vadd.f32 0.0, %v4032
        %v4034 = vpop.f32.mrb[0].mxu0
        %v4035 = vpop.f32.mrb[0].mxu0
        %v4036 = vadd.f32 0.0, %v4035
        %v4037 = vpop.f32.mrb[0].mxu0
        %4038 = vmatprep.mubr.bf16.mxu0 0
        %4039 = vmatmul.mubr.bf16.gmra.mrb[0].mxu0 %v3892
        %v4040 = vpop.f32.mrb[0].mxu0
        %v4041 = vadd.f32 0.0, %v4040
        %v4042 = vpop.f32.mrb[0].mxu0
        %v4043 = vpop.f32.mrb[0].mxu0
        %v4044 = vadd.f32 0.0, %v4043
        %v4045 = vpop.f32.mrb[0].mxu0
        %4046 = vmatprep.mubr.bf16.mxu0 0
        %4047 = vmatmul.mubr.bf16.gmra.mrb[0].mxu0 %v3895
        %v4048 = vpop.f32.mrb[0].mxu0
        %v4049 = vadd.f32 0.0, %v4048
        %v4050 = vpop.f32.mrb[0].mxu0
        %v4051 = vpop.f32.mrb[0].mxu0
        %v4052 = vadd.f32 0.0, %v4051
        %v4053 = vpop.f32.mrb[0].mxu0
        %4054 = vmatprep.mubr.bf16.mxu0 0
        %4055 = vmatmul.mubr.bf16.gmra.mrb[0].mxu0 %v3898
        %v4056 = vpop.f32.mrb[0].mxu0
        %v4057 = vadd.f32 0.0, %v4056
        %v4058 = vpop.f32.mrb[0].mxu0
        %v4059 = vpop.f32.mrb[0].mxu0
        %v4060 = vadd.f32 0.0, %v4059
        %v4061 = vpop.f32.mrb[0].mxu0
        %4062 = vmatprep.mubr.bf16.mxu0 0
        %4063 = vmatmul.mubr.bf16.gmra.mrb[0].mxu0 %v3901
        %v4064 = vpop.f32.mrb[0].mxu0
        %v4065 = vadd.f32 0.0, %v4064
        %v4066 = vpop.f32.mrb[0].mxu0
        %v4067 = vpop.f32.mrb[0].mxu0
        %v4068 = vadd.f32 0.0, %v4067
        %v4069 = vpop.f32.mrb[0].mxu0
        %4070 = vmatprep.mubr.bf16.mxu0 0
        %4071 = vmatmul.mubr.bf16.gmra.mrb[0].mxu0 %v3904
        %v4072 = vpop.f32.mrb[0].mxu0
        %v4073 = vadd.f32 0.0, %v4072
        %v4074 = vpop.f32.mrb[0].mxu0
        %v4075 = vpop.f32.mrb[0].mxu0
        %v4076 = vadd.f32 0.0, %v4075
        %v4077 = vpop.f32.mrb[0].mxu0
        %4078 = vmatprep.mubr.bf16.mxu0 0
        %4079 = vmatmul.mubr.bf16.gmra.mrb[0].mxu0 %v3907
        %v4080 = vpop.f32.mrb[0].mxu0
        %v4081 = vpop.f32.mrb[0].mxu0
        %v4082 = vpop.f32.mrb[0].mxu0
        %v4083 = vpop.f32.mrb[0].mxu0
        %4084 = vdwg.mxu0
        %v4085 = vadd.f32 %v3767, %v3953
        %v4086 = vadd.f32 %v3768, %v3956
        %v4087 = vadd.f32 %v3769, %v3961
        %v4088 = vadd.f32 %v3770, %v3964
        %v4089 = vadd.f32 %v3771, %v3969
        %v4090 = vadd.f32 %v3772, %v3972
        %v4091 = vadd.f32 %v3773, %v3977
        %v4092 = vadd.f32 %v3774, %v3980
        %v4093 = vadd.f32 %v3775, %v3985
        %v4094 = vadd.f32 %v3776, %v3988
        %v4095 = vadd.f32 %v3777, %v3993
        %v4096 = vadd.f32 %v3778, %v3996
        %v4097 = vadd.f32 %v3779, %v4001
        %v4098 = vadd.f32 %v3780, %v4004
        %v4099 = vadd.f32 %v3781, %v4009
        %v4100 = vadd.f32 %v3782, %v4012
        %v4101 = vadd.f32 %v3783, %v4017
        %v4102 = vadd.f32 %v3784, %v4020
        %v4103 = vadd.f32 %v3785, %v4025
        %v4104 = vadd.f32 %v3786, %v4028
        %v4105 = vadd.f32 %v3787, %v4033
        %v4106 = vadd.f32 %v3788, %v4036
        %v4107 = vadd.f32 %v3789, %v4041
        %v4108 = vadd.f32 %v3790, %v4044
        %v4109 = vadd.f32 %v3791, %v4049
        %v4110 = vadd.f32 %v3792, %v4052
        %v4111 = vadd.f32 %v3793, %v4057
        %v4112 = vadd.f32 %v3794, %v4060
        %v4113 = vadd.f32 %v3795, %v4065
        %v4114 = vadd.f32 %v3796, %v4068
        %v4115 = vadd.f32 %v3797, %v4073
        %v4116 = vadd.f32 %v3798, %v4076
        %v4117 = vsel %vm3445, %v3407, 0.0
        %v4118 = vsel %vm3446, %v3406, 0.0
        %v4119 = vsel %vm3447, %v3405, 0.0
        %v4120 = vsel %vm3448, %v3404, 0.0
        %v4121 = vsel %vm3449, %v3403, 0.0
        %v4122 = vsel %vm3450, %v3402, 0.0
        %v4123 = vsel %vm3451, %v3401, 0.0
        %v4124 = vsel %vm3452, %v3400, 0.0
        %v4125 = vsel %vm3453, %v3399, 0.0
        %v4126 = vsel %vm3454, %v3398, 0.0
        %v4127 = vsel %vm3455, %v3397, 0.0
        %v4128 = vsel %vm3456, %v3396, 0.0
        %v4129 = vsel %vm3457, %v3395, 0.0
        %v4130 = vsel %vm3458, %v3394, 0.0
        %v4131 = vsel %vm3459, %v3393, 0.0
        %v4132 = vsel %vm3460, %v3392, 0.0
        %v4133 = vsel %vm3461, %v3391, 0.0
        %v4134 = vsel %vm3462, %v3390, 0.0
        %v4135 = vsel %vm3463, %v3389, 0.0
        %v4136 = vsel %vm3464, %v3388, 0.0
        %v4137 = vsel %vm3465, %v3387, 0.0
        %v4138 = vsel %vm3466, %v3386, 0.0
        %v4139 = vsel %vm3467, %v3385, 0.0
        %v4140 = vsel %vm3468, %v3384, 0.0
        %v4141 = vsel %vm3469, %v3383, 0.0
        %v4142 = vsel %vm3470, %v3382, 0.0
        %v4143 = vsel %vm3471, %v3381, 0.0
        %v4144 = vsel %vm3472, %v3380, 0.0
        %v4145 = vsel %vm3473, %v3379, 0.0
        %v4146 = vsel %vm3474, %v3378, 0.0
        %v4147 = vsel %vm3475, %v3377, 0.0
        %v4148 = vsel %vm3476, %v3376, 0.0
        %v4149 = vsel %vm3477, %v3375, 0.0
        %v4150 = vsel %vm3478, %v3374, 0.0
        %v4151 = vsel %vm3479, %v3373, 0.0
        %v4152 = vsel %vm3480, %v3408, 0.0
        %v4153 = vpack.c.bf16 %v4118, %v4117
        %v4154 = vpack.c.bf16 %v4120, %v4119
        %v4155 = vpack.c.bf16 %v4122, %v4121
        %v4156 = vpack.c.bf16 %v4124, %v4123
        %v4157 = vpack.c.bf16 %v4126, %v4125
        %v4158 = vpack.c.bf16 %v4128, %v4127
        %v4159 = vpack.c.bf16 %v4130, %v4129
        %v4160 = vpack.c.bf16 %v4132, %v4131
        %v4161 = vpack.c.bf16 %v4134, %v4133
        %v4162 = vpack.c.bf16 %v4136, %v4135
        %v4163 = vpack.c.bf16 %v4138, %v4137
        %v4164 = vpack.c.bf16 %v4140, %v4139
        %v4165 = vpack.c.bf16 %v4142, %v4141
        %v4166 = vpack.c.bf16 %v4144, %v4143
        %v4167 = vpack.c.bf16 %v4146, %v4145
        %v4168 = vpack.c.bf16 %v4148, %v4147
        %v4169 = vpack.c.bf16 %v4150, %v4149
        %v4170 = vpack.c.bf16 %v4152, %v4151
        %s4171 = scalar_lea.vmem %s7, 20
        %v4172 = vld [vmem:[%s4171] sm:$0xf]
        %v4174 = vsel %vm2432, %v4153, 0
        %v4177 = vsel %vm2432, %v4154, 0
        %v4180 = vsel %vm2432, %v4155, 0
        %v4183 = vsel %vm2432, %v4156, 0
        %v4186 = vsel %vm2432, %v4157, 0
        %v4189 = vsel %vm2432, %v4158, 0
        %v4192 = vsel %vm2432, %v4159, 0
        %v4195 = vsel %vm2432, %v4160, 0
        %v4198 = vsel %vm2432, %v4161, 0
        %v4201 = vsel %vm2432, %v4162, 0
        %v4204 = vsel %vm2432, %v4163, 0
        %v4207 = vsel %vm2432, %v4164, 0
        %v4210 = vsel %vm2432, %v4165, 0
        %v4213 = vsel %vm2432, %v4166, 0
        %v4216 = vsel %vm2432, %v4167, 0
        %v4219 = vsel %vm2432, %v4168, 0
        %v4222 = vsel %vm2432, %v4169, 0
        %v4225 = vsel %vm2432, %v4170, 0
        %v4228 = vsel %vm2487, %v4172, 0
        %4230 = vmatprep.subr.bf16.mxu0 0
        %4231 = vmatpush1.bf16.msra.mxu0 %v4228
        %4232 = vmatprep.subr.bf16.mxu0 0
        %4233 = vmatpush1.bf16.msra.mxu0 0
        %4234 = vmatprep.subr.bf16.mxu0 0
        %4235 = vmatpush1.bf16.msra.mxu0 0
        %4236 = vmatprep.subr.bf16.mxu0 0
        %4237 = vmatpush1.bf16.msra.mxu0 0
        %4238 = vmatprep.subr.bf16.mxu0 0
        %4239 = vmatpush1.bf16.msra.mxu0 0
        %4240 = vmatprep.subr.bf16.mxu0 0
        %4241 = vmatpush1.bf16.msra.mxu0 0
        %4242 = vmatprep.subr.bf16.mxu0 0
        %4243 = vmatpush1.bf16.msra.mxu0 0
        %4244 = vmatprep.subr.bf16.mxu0 0
        %4245 = vmatpush1.bf16.msra.mxu0 0
        %4246 = vmatprep.subr.bf16.mxu0 0
        %4247 = vmatpush1.bf16.msra.mxu0 0
        %4248 = vmatprep.subr.bf16.mxu0 0
        %4249 = vmatpush1.bf16.msra.mxu0 0
        %4250 = vmatprep.subr.bf16.mxu0 0
        %4251 = vmatpush1.bf16.msra.mxu0 0
        %4252 = vmatprep.subr.bf16.mxu0 0
        %4253 = vmatpush1.bf16.msra.mxu0 0
        %4254 = vmatprep.subr.bf16.mxu0 0
        %4255 = vmatpush1.bf16.msra.mxu0 0
        %4256 = vmatprep.subr.bf16.mxu0 0
        %4257 = vmatpush1.bf16.msra.mxu0 0
        %4258 = vmatprep.subr.bf16.mxu0 0
        %4259 = vmatpush1.bf16.msra.mxu0 0
        %4260 = vmatprep.subr.bf16.mxu0 0
        %4261 = vmatpush1.bf16.msra.mxu0 0
        %4262 = vmatprep.mubr.bf16.mxu0 0
        %4263 = vmatmul.mubr.bf16.gmra.mrb[0].mxu0 %v4174
        %v4264 = vpop.f32.mrb[0].mxu0
        %v4265 = vpop.f32.mrb[0].mxu0
        %v4266 = vpop.f32.mrb[0].mxu0
        %v4267 = vpop.f32.mrb[0].mxu0
        %4268 = vmatprep.mubr.bf16.mxu0 0
        %4269 = vmatmul.mubr.bf16.gmra.mrb[0].mxu0 %v4177
        %v4270 = vpop.f32.mrb[0].mxu0
        %v4271 = vadd.f32 0.0, %v4270
        %v4272 = vpop.f32.mrb[0].mxu0
        %v4273 = vpop.f32.mrb[0].mxu0
        %v4274 = vadd.f32 0.0, %v4273
        %v4275 = vpop.f32.mrb[0].mxu0
        %4276 = vmatprep.mubr.bf16.mxu0 0
        %4277 = vmatmul.mubr.bf16.gmra.mrb[0].mxu0 %v4180
        %v4278 = vpop.f32.mrb[0].mxu0
        %v4279 = vadd.f32 0.0, %v4278
        %v4280 = vpop.f32.mrb[0].mxu0
        %v4281 = vpop.f32.mrb[0].mxu0
        %v4282 = vadd.f32 0.0, %v4281
        %v4283 = vpop.f32.mrb[0].mxu0
        %4284 = vmatprep.mubr.bf16.mxu0 0
        %4285 = vmatmul.mubr.bf16.gmra.mrb[0].mxu0 %v4183
        %v4286 = vpop.f32.mrb[0].mxu0
        %v4287 = vadd.f32 0.0, %v4286
        %v4288 = vpop.f32.mrb[0].mxu0
        %v4289 = vpop.f32.mrb[0].mxu0
        %v4290 = vadd.f32 0.0, %v4289
        %v4291 = vpop.f32.mrb[0].mxu0
        %4292 = vmatprep.mubr.bf16.mxu0 0
        %4293 = vmatmul.mubr.bf16.gmra.mrb[0].mxu0 %v4186
        %v4294 = vpop.f32.mrb[0].mxu0
        %v4295 = vadd.f32 0.0, %v4294
        %v4296 = vpop.f32.mrb[0].mxu0
        %v4297 = vpop.f32.mrb[0].mxu0
        %v4298 = vadd.f32 0.0, %v4297
        %v4299 = vpop.f32.mrb[0].mxu0
        %4300 = vmatprep.mubr.bf16.mxu0 0
        %4301 = vmatmul.mubr.bf16.gmra.mrb[0].mxu0 %v4189
        %v4302 = vpop.f32.mrb[0].mxu0
        %v4303 = vadd.f32 0.0, %v4302
        %v4304 = vpop.f32.mrb[0].mxu0
        %v4305 = vpop.f32.mrb[0].mxu0
        %v4306 = vadd.f32 0.0, %v4305
        %v4307 = vpop.f32.mrb[0].mxu0
        %4308 = vmatprep.mubr.bf16.mxu0 0
        %4309 = vmatmul.mubr.bf16.gmra.mrb[0].mxu0 %v4192
        %v4310 = vpop.f32.mrb[0].mxu0
        %v4311 = vadd.f32 0.0, %v4310
        %v4312 = vpop.f32.mrb[0].mxu0
        %v4313 = vpop.f32.mrb[0].mxu0
        %v4314 = vadd.f32 0.0, %v4313
        %v4315 = vpop.f32.mrb[0].mxu0
        %4316 = vmatprep.mubr.bf16.mxu0 0
        %4317 = vmatmul.mubr.bf16.gmra.mrb[0].mxu0 %v4195
        %v4318 = vpop.f32.mrb[0].mxu0
        %v4319 = vadd.f32 0.0, %v4318
        %v4320 = vpop.f32.mrb[0].mxu0
        %v4321 = vpop.f32.mrb[0].mxu0
        %v4322 = vadd.f32 0.0, %v4321
        %v4323 = vpop.f32.mrb[0].mxu0
        %4324 = vmatprep.mubr.bf16.mxu0 0
        %4325 = vmatmul.mubr.bf16.gmra.mrb[0].mxu0 %v4198
        %v4326 = vpop.f32.mrb[0].mxu0
        %v4327 = vadd.f32 0.0, %v4326
        %v4328 = vpop.f32.mrb[0].mxu0
        %v4329 = vpop.f32.mrb[0].mxu0
        %v4330 = vadd.f32 0.0, %v4329
        %v4331 = vpop.f32.mrb[0].mxu0
        %4332 = vmatprep.mubr.bf16.mxu0 0
        %4333 = vmatmul.mubr.bf16.gmra.mrb[0].mxu0 %v4201
        %v4334 = vpop.f32.mrb[0].mxu0
        %v4335 = vadd.f32 0.0, %v4334
        %v4336 = vpop.f32.mrb[0].mxu0
        %v4337 = vpop.f32.mrb[0].mxu0
        %v4338 = vadd.f32 0.0, %v4337
        %v4339 = vpop.f32.mrb[0].mxu0
        %4340 = vmatprep.mubr.bf16.mxu0 0
        %4341 = vmatmul.mubr.bf16.gmra.mrb[0].mxu0 %v4204
        %v4342 = vpop.f32.mrb[0].mxu0
        %v4343 = vadd.f32 0.0, %v4342
        %v4344 = vpop.f32.mrb[0].mxu0
        %v4345 = vpop.f32.mrb[0].mxu0
        %v4346 = vadd.f32 0.0, %v4345
        %v4347 = vpop.f32.mrb[0].mxu0
        %4348 = vmatprep.mubr.bf16.mxu0 0
        %4349 = vmatmul.mubr.bf16.gmra.mrb[0].mxu0 %v4207
        %v4350 = vpop.f32.mrb[0].mxu0
        %v4351 = vadd.f32 0.0, %v4350
        %v4352 = vpop.f32.mrb[0].mxu0
        %v4353 = vpop.f32.mrb[0].mxu0
        %v4354 = vadd.f32 0.0, %v4353
        %v4355 = vpop.f32.mrb[0].mxu0
        %4356 = vmatprep.mubr.bf16.mxu0 0
        %4357 = vmatmul.mubr.bf16.gmra.mrb[0].mxu0 %v4210
        %v4358 = vpop.f32.mrb[0].mxu0
        %v4359 = vadd.f32 0.0, %v4358
        %v4360 = vpop.f32.mrb[0].mxu0
        %v4361 = vpop.f32.mrb[0].mxu0
        %v4362 = vadd.f32 0.0, %v4361
        %v4363 = vpop.f32.mrb[0].mxu0
        %4364 = vmatprep.mubr.bf16.mxu0 0
        %4365 = vmatmul.mubr.bf16.gmra.mrb[0].mxu0 %v4213
        %v4366 = vpop.f32.mrb[0].mxu0
        %v4367 = vadd.f32 0.0, %v4366
        %v4368 = vpop.f32.mrb[0].mxu0
        %v4369 = vpop.f32.mrb[0].mxu0
        %v4370 = vadd.f32 0.0, %v4369
        %v4371 = vpop.f32.mrb[0].mxu0
        %4372 = vmatprep.mubr.bf16.mxu0 0
        %4373 = vmatmul.mubr.bf16.gmra.mrb[0].mxu0 %v4216
        %v4374 = vpop.f32.mrb[0].mxu0
        %v4375 = vadd.f32 0.0, %v4374
        %v4376 = vpop.f32.mrb[0].mxu0
        %v4377 = vpop.f32.mrb[0].mxu0
        %v4378 = vadd.f32 0.0, %v4377
        %v4379 = vpop.f32.mrb[0].mxu0
        %4380 = vmatprep.mubr.bf16.mxu0 0
        %4381 = vmatmul.mubr.bf16.gmra.mrb[0].mxu0 %v4219
        %v4382 = vpop.f32.mrb[0].mxu0
        %v4383 = vadd.f32 0.0, %v4382
        %v4384 = vpop.f32.mrb[0].mxu0
        %v4385 = vpop.f32.mrb[0].mxu0
        %v4386 = vadd.f32 0.0, %v4385
        %v4387 = vpop.f32.mrb[0].mxu0
        %4388 = vmatprep.mubr.bf16.mxu0 0
        %4389 = vmatmul.mubr.bf16.gmra.mrb[0].mxu0 %v4222
        %v4390 = vpop.f32.mrb[0].mxu0
        %v4391 = vadd.f32 0.0, %v4390
        %v4392 = vpop.f32.mrb[0].mxu0
        %v4393 = vpop.f32.mrb[0].mxu0
        %v4394 = vadd.f32 0.0, %v4393
        %v4395 = vpop.f32.mrb[0].mxu0
        %4396 = vmatprep.mubr.bf16.mxu0 0
        %4397 = vmatmul.mubr.bf16.gmra.mrb[0].mxu0 %v4225
        %v4398 = vpop.f32.mrb[0].mxu0
        %v4399 = vpop.f32.mrb[0].mxu0
        %v4400 = vpop.f32.mrb[0].mxu0
        %v4401 = vpop.f32.mrb[0].mxu0
        %4402 = vdwg.mxu0
        %v4403 = vadd.f32 %v4085, %v4271
        %v4404 = vadd.f32 %v4086, %v4274
        %v4405 = vadd.f32 %v4087, %v4279
        %v4406 = vadd.f32 %v4088, %v4282
        %v4407 = vadd.f32 %v4089, %v4287
        %v4408 = vadd.f32 %v4090, %v4290
        %v4409 = vadd.f32 %v4091, %v4295
        %v4410 = vadd.f32 %v4092, %v4298
        %v4411 = vadd.f32 %v4093, %v4303
        %v4412 = vadd.f32 %v4094, %v4306
        %v4413 = vadd.f32 %v4095, %v4311
        %v4414 = vadd.f32 %v4096, %v4314
        %v4415 = vadd.f32 %v4097, %v4319
        %v4416 = vadd.f32 %v4098, %v4322
        %v4417 = vadd.f32 %v4099, %v4327
        %v4418 = vadd.f32 %v4100, %v4330
        %v4419 = vadd.f32 %v4101, %v4335
        %v4420 = vadd.f32 %v4102, %v4338
        %v4421 = vadd.f32 %v4103, %v4343
        %v4422 = vadd.f32 %v4104, %v4346
        %v4423 = vadd.f32 %v4105, %v4351
        %v4424 = vadd.f32 %v4106, %v4354
        %v4425 = vadd.f32 %v4107, %v4359
        %v4426 = vadd.f32 %v4108, %v4362
        %v4427 = vadd.f32 %v4109, %v4367
        %v4428 = vadd.f32 %v4110, %v4370
        %v4429 = vadd.f32 %v4111, %v4375
        %v4430 = vadd.f32 %v4112, %v4378
        %v4431 = vadd.f32 %v4113, %v4383
        %v4432 = vadd.f32 %v4114, %v4386
        %v4433 = vadd.f32 %v4115, %v4391
        %v4434 = vadd.f32 %v4116, %v4394
        %v4435 = vsel %vm2773, %v2734, 0.0
        %v4436 = vsel %vm2774, %v2733, 0.0
        %v4437 = vsel %vm2775, %v2732, 0.0
        %v4438 = vsel %vm2776, %v2731, 0.0
        %v4439 = vsel %vm2777, %v2730, 0.0
        %v4440 = vsel %vm2778, %v2729, 0.0
        %v4441 = vsel %vm2779, %v2728, 0.0
        %v4442 = vsel %vm2780, %v2727, 0.0
        %v4443 = vsel %vm2781, %v2726, 0.0
        %v4444 = vsel %vm2782, %v2725, 0.0
        %v4445 = vsel %vm2783, %v2724, 0.0
        %v4446 = vsel %vm2784, %v2723, 0.0
        %v4447 = vsel %vm2785, %v2722, 0.0
        %v4448 = vsel %vm2786, %v2721, 0.0
        %v4449 = vsel %vm2787, %v2720, 0.0
        %v4450 = vsel %vm2788, %v2719, 0.0
        %v4451 = vsel %vm2789, %v2718, 0.0
        %v4452 = vsel %vm2790, %v2717, 0.0
        %v4453 = vsel %vm2791, %v2716, 0.0
        %v4454 = vsel %vm2792, %v2715, 0.0
        %v4455 = vsel %vm2793, %v2714, 0.0
        %v4456 = vsel %vm2794, %v2713, 0.0
        %v4457 = vsel %vm2795, %v2712, 0.0
        %v4458 = vsel %vm2796, %v2711, 0.0
        %v4459 = vsel %vm2797, %v2710, 0.0
        %v4460 = vsel %vm2798, %v2709, 0.0
        %v4461 = vsel %vm2799, %v2708, 0.0
        %v4462 = vsel %vm2800, %v2707, 0.0
        %v4463 = vsel %vm2801, %v2706, 0.0
        %v4464 = vsel %vm2802, %v2705, 0.0
        %v4465 = vsel %vm2803, %v2704, 0.0
        %v4466 = vsel %vm2804, %v2703, 0.0
        %v4467 = vsel %vm2805, %v2702, 0.0
        %v4468 = vsel %vm2806, %v2701, 0.0
        %v4469 = vsel %vm2807, %v2736, 0.0
        %v4470 = vsel %vm2808, %v2735, 0.0
        %v4471 = vpack.c.bf16 %v4436, %v4435
        %v4472 = vpack.c.bf16 %v4438, %v4437
        %v4473 = vpack.c.bf16 %v4440, %v4439
        %v4474 = vpack.c.bf16 %v4442, %v4441
        %v4475 = vpack.c.bf16 %v4444, %v4443
        %v4476 = vpack.c.bf16 %v4446, %v4445
        %v4477 = vpack.c.bf16 %v4448, %v4447
        %v4478 = vpack.c.bf16 %v4450, %v4449
        %v4479 = vpack.c.bf16 %v4452, %v4451
        %v4480 = vpack.c.bf16 %v4454, %v4453
        %v4481 = vpack.c.bf16 %v4456, %v4455
        %v4482 = vpack.c.bf16 %v4458, %v4457
        %v4483 = vpack.c.bf16 %v4460, %v4459
        %v4484 = vpack.c.bf16 %v4462, %v4461
        %v4485 = vpack.c.bf16 %v4464, %v4463
        %v4486 = vpack.c.bf16 %v4466, %v4465
        %v4487 = vpack.c.bf16 %v4468, %v4467
        %v4488 = vpack.c.bf16 %v4470, %v4469
        %s4489 = scalar_lea.vmem %s7, 24
        %v4490 = vld [vmem:[%s4489] sm:$0xf]
        %v4492 = vsel %vm2432, %v4471, 0
        %v4495 = vsel %vm2432, %v4472, 0
        %v4498 = vsel %vm2432, %v4473, 0
        %v4501 = vsel %vm2432, %v4474, 0
        %v4504 = vsel %vm2432, %v4475, 0
        %v4507 = vsel %vm2432, %v4476, 0
        %v4510 = vsel %vm2432, %v4477, 0
        %v4513 = vsel %vm2432, %v4478, 0
        %v4516 = vsel %vm2432, %v4479, 0
        %v4519 = vsel %vm2432, %v4480, 0
        %v4522 = vsel %vm2432, %v4481, 0
        %v4525 = vsel %vm2432, %v4482, 0
        %v4528 = vsel %vm2432, %v4483, 0
        %v4531 = vsel %vm2432, %v4484, 0
        %v4534 = vsel %vm2432, %v4485, 0
        %v4537 = vsel %vm2432, %v4486, 0
        %v4540 = vsel %vm2432, %v4487, 0
        %v4543 = vsel %vm2432, %v4488, 0
        %v4546 = vsel %vm2487, %v4490, 0
        %4548 = vmatprep.subr.bf16.mxu0 0
        %4549 = vmatpush1.bf16.msra.mxu0 %v4546
        %4550 = vmatprep.subr.bf16.mxu0 0
        %4551 = vmatpush1.bf16.msra.mxu0 0
        %4552 = vmatprep.subr.bf16.mxu0 0
        %4553 = vmatpush1.bf16.msra.mxu0 0
        %4554 = vmatprep.subr.bf16.mxu0 0
        %4555 = vmatpush1.bf16.msra.mxu0 0
        %4556 = vmatprep.subr.bf16.mxu0 0
        %4557 = vmatpush1.bf16.msra.mxu0 0
        %4558 = vmatprep.subr.bf16.mxu0 0
        %4559 = vmatpush1.bf16.msra.mxu0 0
        %4560 = vmatprep.subr.bf16.mxu0 0
        %4561 = vmatpush1.bf16.msra.mxu0 0
        %4562 = vmatprep.subr.bf16.mxu0 0
        %4563 = vmatpush1.bf16.msra.mxu0 0
        %4564 = vmatprep.subr.bf16.mxu0 0
        %4565 = vmatpush1.bf16.msra.mxu0 0
        %4566 = vmatprep.subr.bf16.mxu0 0
        %4567 = vmatpush1.bf16.msra.mxu0 0
        %4568 = vmatprep.subr.bf16.mxu0 0
        %4569 = vmatpush1.bf16.msra.mxu0 0
        %4570 = vmatprep.subr.bf16.mxu0 0
        %4571 = vmatpush1.bf16.msra.mxu0 0
        %4572 = vmatprep.subr.bf16.mxu0 0
        %4573 = vmatpush1.bf16.msra.mxu0 0
        %4574 = vmatprep.subr.bf16.mxu0 0
        %4575 = vmatpush1.bf16.msra.mxu0 0
        %4576 = vmatprep.subr.bf16.mxu0 0
        %4577 = vmatpush1.bf16.msra.mxu0 0
        %4578 = vmatprep.subr.bf16.mxu0 0
        %4579 = vmatpush1.bf16.msra.mxu0 0
        %4580 = vmatprep.mubr.bf16.mxu0 0
        %4581 = vmatmul.mubr.bf16.gmra.mrb[0].mxu0 %v4492
        %v4582 = vpop.f32.mrb[0].mxu0
        %v4583 = vpop.f32.mrb[0].mxu0
        %v4584 = vpop.f32.mrb[0].mxu0
        %v4585 = vpop.f32.mrb[0].mxu0
        %4586 = vmatprep.mubr.bf16.mxu0 0
        %4587 = vmatmul.mubr.bf16.gmra.mrb[0].mxu0 %v4495
        %v4588 = vpop.f32.mrb[0].mxu0
        %v4589 = vadd.f32 0.0, %v4588
        %v4590 = vpop.f32.mrb[0].mxu0
        %v4591 = vpop.f32.mrb[0].mxu0
        %v4592 = vadd.f32 0.0, %v4591
        %v4593 = vpop.f32.mrb[0].mxu0
        %4594 = vmatprep.mubr.bf16.mxu0 0
        %4595 = vmatmul.mubr.bf16.gmra.mrb[0].mxu0 %v4498
        %v4596 = vpop.f32.mrb[0].mxu0
        %v4597 = vadd.f32 0.0, %v4596
        %v4598 = vpop.f32.mrb[0].mxu0
        %v4599 = vpop.f32.mrb[0].mxu0
        %v4600 = vadd.f32 0.0, %v4599
        %v4601 = vpop.f32.mrb[0].mxu0
        %4602 = vmatprep.mubr.bf16.mxu0 0
        %4603 = vmatmul.mubr.bf16.gmra.mrb[0].mxu0 %v4501
        %v4604 = vpop.f32.mrb[0].mxu0
        %v4605 = vadd.f32 0.0, %v4604
        %v4606 = vpop.f32.mrb[0].mxu0
        %v4607 = vpop.f32.mrb[0].mxu0
        %v4608 = vadd.f32 0.0, %v4607
        %v4609 = vpop.f32.mrb[0].mxu0
        %4610 = vmatprep.mubr.bf16.mxu0 0
        %4611 = vmatmul.mubr.bf16.gmra.mrb[0].mxu0 %v4504
        %v4612 = vpop.f32.mrb[0].mxu0
        %v4613 = vadd.f32 0.0, %v4612
        %v4614 = vpop.f32.mrb[0].mxu0
        %v4615 = vpop.f32.mrb[0].mxu0
        %v4616 = vadd.f32 0.0, %v4615
        %v4617 = vpop.f32.mrb[0].mxu0
        %4618 = vmatprep.mubr.bf16.mxu0 0
        %4619 = vmatmul.mubr.bf16.gmra.mrb[0].mxu0 %v4507
        %v4620 = vpop.f32.mrb[0].mxu0
        %v4621 = vadd.f32 0.0, %v4620
        %v4622 = vpop.f32.mrb[0].mxu0
        %v4623 = vpop.f32.mrb[0].mxu0
        %v4624 = vadd.f32 0.0, %v4623
        %v4625 = vpop.f32.mrb[0].mxu0
        %4626 = vmatprep.mubr.bf16.mxu0 0
        %4627 = vmatmul.mubr.bf16.gmra.mrb[0].mxu0 %v4510
        %v4628 = vpop.f32.mrb[0].mxu0
        %v4629 = vadd.f32 0.0, %v4628
        %v4630 = vpop.f32.mrb[0].mxu0
        %v4631 = vpop.f32.mrb[0].mxu0
        %v4632 = vadd.f32 0.0, %v4631
        %v4633 = vpop.f32.mrb[0].mxu0
        %4634 = vmatprep.mubr.bf16.mxu0 0
        %4635 = vmatmul.mubr.bf16.gmra.mrb[0].mxu0 %v4513
        %v4636 = vpop.f32.mrb[0].mxu0
        %v4637 = vadd.f32 0.0, %v4636
        %v4638 = vpop.f32.mrb[0].mxu0
        %v4639 = vpop.f32.mrb[0].mxu0
        %v4640 = vadd.f32 0.0, %v4639
        %v4641 = vpop.f32.mrb[0].mxu0
        %4642 = vmatprep.mubr.bf16.mxu0 0
        %4643 = vmatmul.mubr.bf16.gmra.mrb[0].mxu0 %v4516
        %v4644 = vpop.f32.mrb[0].mxu0
        %v4645 = vadd.f32 0.0, %v4644
        %v4646 = vpop.f32.mrb[0].mxu0
        %v4647 = vpop.f32.mrb[0].mxu0
        %v4648 = vadd.f32 0.0, %v4647
        %v4649 = vpop.f32.mrb[0].mxu0
        %4650 = vmatprep.mubr.bf16.mxu0 0
        %4651 = vmatmul.mubr.bf16.gmra.mrb[0].mxu0 %v4519
        %v4652 = vpop.f32.mrb[0].mxu0
        %v4653 = vadd.f32 0.0, %v4652
        %v4654 = vpop.f32.mrb[0].mxu0
        %v4655 = vpop.f32.mrb[0].mxu0
        %v4656 = vadd.f32 0.0, %v4655
        %v4657 = vpop.f32.mrb[0].mxu0
        %4658 = vmatprep.mubr.bf16.mxu0 0
        %4659 = vmatmul.mubr.bf16.gmra.mrb[0].mxu0 %v4522
        %v4660 = vpop.f32.mrb[0].mxu0
        %v4661 = vadd.f32 0.0, %v4660
        %v4662 = vpop.f32.mrb[0].mxu0
        %v4663 = vpop.f32.mrb[0].mxu0
        %v4664 = vadd.f32 0.0, %v4663
        %v4665 = vpop.f32.mrb[0].mxu0
        %4666 = vmatprep.mubr.bf16.mxu0 0
        %4667 = vmatmul.mubr.bf16.gmra.mrb[0].mxu0 %v4525
        %v4668 = vpop.f32.mrb[0].mxu0
        %v4669 = vadd.f32 0.0, %v4668
        %v4670 = vpop.f32.mrb[0].mxu0
        %v4671 = vpop.f32.mrb[0].mxu0
        %v4672 = vadd.f32 0.0, %v4671
        %v4673 = vpop.f32.mrb[0].mxu0
        %4674 = vmatprep.mubr.bf16.mxu0 0
        %4675 = vmatmul.mubr.bf16.gmra.mrb[0].mxu0 %v4528
        %v4676 = vpop.f32.mrb[0].mxu0
        %v4677 = vadd.f32 0.0, %v4676
        %v4678 = vpop.f32.mrb[0].mxu0
        %v4679 = vpop.f32.mrb[0].mxu0
        %v4680 = vadd.f32 0.0, %v4679
        %v4681 = vpop.f32.mrb[0].mxu0
        %4682 = vmatprep.mubr.bf16.mxu0 0
        %4683 = vmatmul.mubr.bf16.gmra.mrb[0].mxu0 %v4531
        %v4684 = vpop.f32.mrb[0].mxu0
        %v4685 = vadd.f32 0.0, %v4684
        %v4686 = vpop.f32.mrb[0].mxu0
        %v4687 = vpop.f32.mrb[0].mxu0
        %v4688 = vadd.f32 0.0, %v4687
        %v4689 = vpop.f32.mrb[0].mxu0
        %4690 = vmatprep.mubr.bf16.mxu0 0
        %4691 = vmatmul.mubr.bf16.gmra.mrb[0].mxu0 %v4534
        %v4692 = vpop.f32.mrb[0].mxu0
        %v4693 = vadd.f32 0.0, %v4692
        %v4694 = vpop.f32.mrb[0].mxu0
        %v4695 = vpop.f32.mrb[0].mxu0
        %v4696 = vadd.f32 0.0, %v4695
        %v4697 = vpop.f32.mrb[0].mxu0
        %4698 = vmatprep.mubr.bf16.mxu0 0
        %4699 = vmatmul.mubr.bf16.gmra.mrb[0].mxu0 %v4537
        %v4700 = vpop.f32.mrb[0].mxu0
        %v4701 = vadd.f32 0.0, %v4700
        %v4702 = vpop.f32.mrb[0].mxu0
        %v4703 = vpop.f32.mrb[0].mxu0
        %v4704 = vadd.f32 0.0, %v4703
        %v4705 = vpop.f32.mrb[0].mxu0
        %4706 = vmatprep.mubr.bf16.mxu0 0
        %4707 = vmatmul.mubr.bf16.gmra.mrb[0].mxu0 %v4540
        %v4708 = vpop.f32.mrb[0].mxu0
        %v4709 = vadd.f32 0.0, %v4708
        %v4710 = vpop.f32.mrb[0].mxu0
        %v4711 = vpop.f32.mrb[0].mxu0
        %v4712 = vadd.f32 0.0, %v4711
        %v4713 = vpop.f32.mrb[0].mxu0
        %4714 = vmatprep.mubr.bf16.mxu0 0
        %4715 = vmatmul.mubr.bf16.gmra.mrb[0].mxu0 %v4543
        %v4716 = vpop.f32.mrb[0].mxu0
        %v4717 = vpop.f32.mrb[0].mxu0
        %v4718 = vpop.f32.mrb[0].mxu0
        %v4719 = vpop.f32.mrb[0].mxu0
        %4720 = vdwg.mxu0
        %v4721 = vadd.f32 %v4403, %v4589
        %v4722 = vadd.f32 %v4404, %v4592
        %v4723 = vadd.f32 %v4405, %v4597
        %v4724 = vadd.f32 %v4406, %v4600
        %v4725 = vadd.f32 %v4407, %v4605
        %v4726 = vadd.f32 %v4408, %v4608
        %v4727 = vadd.f32 %v4409, %v4613
        %v4728 = vadd.f32 %v4410, %v4616
        %v4729 = vadd.f32 %v4411, %v4621
        %v4730 = vadd.f32 %v4412, %v4624
        %v4731 = vadd.f32 %v4413, %v4629
        %v4732 = vadd.f32 %v4414, %v4632
        %v4733 = vadd.f32 %v4415, %v4637
        %v4734 = vadd.f32 %v4416, %v4640
        %v4735 = vadd.f32 %v4417, %v4645
        %v4736 = vadd.f32 %v4418, %v4648
        %v4737 = vadd.f32 %v4419, %v4653
        %v4738 = vadd.f32 %v4420, %v4656
        %v4739 = vadd.f32 %v4421, %v4661
        %v4740 = vadd.f32 %v4422, %v4664
        %v4741 = vadd.f32 %v4423, %v4669
        %v4742 = vadd.f32 %v4424, %v4672
        %v4743 = vadd.f32 %v4425, %v4677
        %v4744 = vadd.f32 %v4426, %v4680
        %v4745 = vadd.f32 %v4427, %v4685
        %v4746 = vadd.f32 %v4428, %v4688
        %v4747 = vadd.f32 %v4429, %v4693
        %v4748 = vadd.f32 %v4430, %v4696
        %v4749 = vadd.f32 %v4431, %v4701
        %v4750 = vadd.f32 %v4432, %v4704
        %v4751 = vadd.f32 %v4433, %v4709
        %v4752 = vadd.f32 %v4434, %v4712
        %s4753 = scalar_lea.vmem %s7, 28
        %v4754 = vld [vmem:[%s4753] sm:$0xf]
        %v4756 = vsel %vm2487, %v4754, 0
        %4758 = vmatprep.subr.bf16.mxu0 0
        %4759 = vmatpush1.bf16.msra.mxu0 %v4756
        %4760 = vmatprep.subr.bf16.mxu0 0
        %4761 = vmatpush1.bf16.msra.mxu0 0
        %4762 = vmatprep.subr.bf16.mxu0 0
        %4763 = vmatpush1.bf16.msra.mxu0 0
        %4764 = vmatprep.subr.bf16.mxu0 0
        %4765 = vmatpush1.bf16.msra.mxu0 0
        %4766 = vmatprep.subr.bf16.mxu0 0
        %4767 = vmatpush1.bf16.msra.mxu0 0
        %4768 = vmatprep.subr.bf16.mxu0 0
        %4769 = vmatpush1.bf16.msra.mxu0 0
        %4770 = vmatprep.subr.bf16.mxu0 0
        %4771 = vmatpush1.bf16.msra.mxu0 0
        %4772 = vmatprep.subr.bf16.mxu0 0
        %4773 = vmatpush1.bf16.msra.mxu0 0
        %4774 = vmatprep.subr.bf16.mxu0 0
        %4775 = vmatpush1.bf16.msra.mxu0 0
        %4776 = vmatprep.subr.bf16.mxu0 0
        %4777 = vmatpush1.bf16.msra.mxu0 0
        %4778 = vmatprep.subr.bf16.mxu0 0
        %4779 = vmatpush1.bf16.msra.mxu0 0
        %4780 = vmatprep.subr.bf16.mxu0 0
        %4781 = vmatpush1.bf16.msra.mxu0 0
        %4782 = vmatprep.subr.bf16.mxu0 0
        %4783 = vmatpush1.bf16.msra.mxu0 0
        %4784 = vmatprep.subr.bf16.mxu0 0
        %4785 = vmatpush1.bf16.msra.mxu0 0
        %4786 = vmatprep.subr.bf16.mxu0 0
        %4787 = vmatpush1.bf16.msra.mxu0 0
        %4788 = vmatprep.subr.bf16.mxu0 0
        %4789 = vmatpush1.bf16.msra.mxu0 0
        %4790 = vmatprep.mubr.bf16.mxu0 0
        %4791 = vmatmul.mubr.bf16.gmra.mrb[0].mxu0 %v2437
        %v4792 = vpop.f32.mrb[0].mxu0
        %v4793 = vpop.f32.mrb[0].mxu0
        %v4794 = vpop.f32.mrb[0].mxu0
        %v4795 = vpop.f32.mrb[0].mxu0
        %4796 = vmatprep.mubr.bf16.mxu0 0
        %4797 = vmatmul.mubr.bf16.gmra.mrb[0].mxu0 %v2440
        %v4798 = vpop.f32.mrb[0].mxu0
        %v4799 = vadd.f32 0.0, %v4798
        %v4800 = vpop.f32.mrb[0].mxu0
        %v4801 = vpop.f32.mrb[0].mxu0
        %v4802 = vadd.f32 0.0, %v4801
        %v4803 = vpop.f32.mrb[0].mxu0
        %4804 = vmatprep.mubr.bf16.mxu0 0
        %4805 = vmatmul.mubr.bf16.gmra.mrb[0].mxu0 %v2443
        %v4806 = vpop.f32.mrb[0].mxu0
        %v4807 = vadd.f32 0.0, %v4806
        %v4808 = vpop.f32.mrb[0].mxu0
        %v4809 = vpop.f32.mrb[0].mxu0
        %v4810 = vadd.f32 0.0, %v4809
        %v4811 = vpop.f32.mrb[0].mxu0
        %4812 = vmatprep.mubr.bf16.mxu0 0
        %4813 = vmatmul.mubr.bf16.gmra.mrb[0].mxu0 %v2446
        %v4814 = vpop.f32.mrb[0].mxu0
        %v4815 = vadd.f32 0.0, %v4814
        %v4816 = vpop.f32.mrb[0].mxu0
        %v4817 = vpop.f32.mrb[0].mxu0
        %v4818 = vadd.f32 0.0, %v4817
        %v4819 = vpop.f32.mrb[0].mxu0
        %4820 = vmatprep.mubr.bf16.mxu0 0
        %4821 = vmatmul.mubr.bf16.gmra.mrb[0].mxu0 %v2449
        %v4822 = vpop.f32.mrb[0].mxu0
        %v4823 = vadd.f32 0.0, %v4822
        %v4824 = vpop.f32.mrb[0].mxu0
        %v4825 = vpop.f32.mrb[0].mxu0
        %v4826 = vadd.f32 0.0, %v4825
        %v4827 = vpop.f32.mrb[0].mxu0
        %4828 = vmatprep.mubr.bf16.mxu0 0
        %4829 = vmatmul.mubr.bf16.gmra.mrb[0].mxu0 %v2452
        %v4830 = vpop.f32.mrb[0].mxu0
        %v4831 = vadd.f32 0.0, %v4830
        %v4832 = vpop.f32.mrb[0].mxu0
        %v4833 = vpop.f32.mrb[0].mxu0
        %v4834 = vadd.f32 0.0, %v4833
        %v4835 = vpop.f32.mrb[0].mxu0
        %4836 = vmatprep.mubr.bf16.mxu0 0
        %4837 = vmatmul.mubr.bf16.gmra.mrb[0].mxu0 %v2455
        %v4838 = vpop.f32.mrb[0].mxu0
        %v4839 = vadd.f32 0.0, %v4838
        %v4840 = vpop.f32.mrb[0].mxu0
        %v4841 = vpop.f32.mrb[0].mxu0
        %v4842 = vadd.f32 0.0, %v4841
        %v4843 = vpop.f32.mrb[0].mxu0
        %4844 = vmatprep.mubr.bf16.mxu0 0
        %4845 = vmatmul.mubr.bf16.gmra.mrb[0].mxu0 %v2458
        %v4846 = vpop.f32.mrb[0].mxu0
        %v4847 = vadd.f32 0.0, %v4846
        %v4848 = vpop.f32.mrb[0].mxu0
        %v4849 = vpop.f32.mrb[0].mxu0
        %v4850 = vadd.f32 0.0, %v4849
        %v4851 = vpop.f32.mrb[0].mxu0
        %4852 = vmatprep.mubr.bf16.mxu0 0
        %4853 = vmatmul.mubr.bf16.gmra.mrb[0].mxu0 %v2461
        %v4854 = vpop.f32.mrb[0].mxu0
        %v4855 = vadd.f32 0.0, %v4854
        %v4856 = vpop.f32.mrb[0].mxu0
        %v4857 = vpop.f32.mrb[0].mxu0
        %v4858 = vadd.f32 0.0, %v4857
        %v4859 = vpop.f32.mrb[0].mxu0
        %4860 = vmatprep.mubr.bf16.mxu0 0
        %4861 = vmatmul.mubr.bf16.gmra.mrb[0].mxu0 %v2464
        %v4862 = vpop.f32.mrb[0].mxu0
        %v4863 = vadd.f32 0.0, %v4862
        %v4864 = vpop.f32.mrb[0].mxu0
        %v4865 = vpop.f32.mrb[0].mxu0
        %v4866 = vadd.f32 0.0, %v4865
        %v4867 = vpop.f32.mrb[0].mxu0
        %4868 = vmatprep.mubr.bf16.mxu0 0
        %4869 = vmatmul.mubr.bf16.gmra.mrb[0].mxu0 %v2467
        %v4870 = vpop.f32.mrb[0].mxu0
        %v4871 = vadd.f32 0.0, %v4870
        %v4872 = vpop.f32.mrb[0].mxu0
        %v4873 = vpop.f32.mrb[0].mxu0
        %v4874 = vadd.f32 0.0, %v4873
        %v4875 = vpop.f32.mrb[0].mxu0
        %4876 = vmatprep.mubr.bf16.mxu0 0
        %4877 = vmatmul.mubr.bf16.gmra.mrb[0].mxu0 %v2470
        %v4878 = vpop.f32.mrb[0].mxu0
        %v4879 = vadd.f32 0.0, %v4878
        %v4880 = vpop.f32.mrb[0].mxu0
        %v4881 = vpop.f32.mrb[0].mxu0
        %v4882 = vadd.f32 0.0, %v4881
        %v4883 = vpop.f32.mrb[0].mxu0
        %4884 = vmatprep.mubr.bf16.mxu0 0
        %4885 = vmatmul.mubr.bf16.gmra.mrb[0].mxu0 %v2473
        %v4886 = vpop.f32.mrb[0].mxu0
        %v4887 = vadd.f32 0.0, %v4886
        %v4888 = vpop.f32.mrb[0].mxu0
        %v4889 = vpop.f32.mrb[0].mxu0
        %v4890 = vadd.f32 0.0, %v4889
        %v4891 = vpop.f32.mrb[0].mxu0
        %4892 = vmatprep.mubr.bf16.mxu0 0
        %4893 = vmatmul.mubr.bf16.gmra.mrb[0].mxu0 %v2476
        %v4894 = vpop.f32.mrb[0].mxu0
        %v4895 = vadd.f32 0.0, %v4894
        %v4896 = vpop.f32.mrb[0].mxu0
        %v4897 = vpop.f32.mrb[0].mxu0
        %v4898 = vadd.f32 0.0, %v4897
        %v4899 = vpop.f32.mrb[0].mxu0
        %4900 = vmatprep.mubr.bf16.mxu0 0
        %4901 = vmatmul.mubr.bf16.gmra.mrb[0].mxu0 %v2479
        %v4902 = vpop.f32.mrb[0].mxu0
        %v4903 = vadd.f32 0.0, %v4902
        %v4904 = vpop.f32.mrb[0].mxu0
        %v4905 = vpop.f32.mrb[0].mxu0
        %v4906 = vadd.f32 0.0, %v4905
        %v4907 = vpop.f32.mrb[0].mxu0
        %4908 = vmatprep.mubr.bf16.mxu0 0
        %4909 = vmatmul.mubr.bf16.gmra.mrb[0].mxu0 %v2482
        %v4910 = vpop.f32.mrb[0].mxu0
        %v4911 = vadd.f32 0.0, %v4910
        %v4912 = vpop.f32.mrb[0].mxu0
        %v4913 = vpop.f32.mrb[0].mxu0
        %v4914 = vadd.f32 0.0, %v4913
        %v4915 = vpop.f32.mrb[0].mxu0
        %4916 = vmatprep.mubr.bf16.mxu0 0
        %4917 = vmatmul.mubr.bf16.gmra.mrb[0].mxu0 %v2485
        %v4918 = vpop.f32.mrb[0].mxu0
        %v4919 = vadd.f32 0.0, %v4918
        %v4920 = vpop.f32.mrb[0].mxu0
        %v4921 = vpop.f32.mrb[0].mxu0
        %v4922 = vadd.f32 0.0, %v4921
        %v4923 = vpop.f32.mrb[0].mxu0
        %4924 = vmatprep.mubr.bf16.mxu0 0
        %4925 = vmatmul.mubr.bf16.gmra.mrb[0].mxu0 %v2434
        %v4926 = vpop.f32.mrb[0].mxu0
        %v4927 = vpop.f32.mrb[0].mxu0
        %v4928 = vpop.f32.mrb[0].mxu0
        %v4929 = vpop.f32.mrb[0].mxu0
        %4930 = vdwg.mxu0
        %v4931 = vadd.f32 %v4721, %v4799
        %v4932 = vadd.f32 %v4722, %v4802
        %v4933 = vadd.f32 %v4723, %v4807
        %v4934 = vadd.f32 %v4724, %v4810
        %v4935 = vadd.f32 %v4725, %v4815
        %v4936 = vadd.f32 %v4726, %v4818
        %v4937 = vadd.f32 %v4727, %v4823
        %v4938 = vadd.f32 %v4728, %v4826
        %v4939 = vadd.f32 %v4729, %v4831
        %v4940 = vadd.f32 %v4730, %v4834
        %v4941 = vadd.f32 %v4731, %v4839
        %v4942 = vadd.f32 %v4732, %v4842
        %v4943 = vadd.f32 %v4733, %v4847
        %v4944 = vadd.f32 %v4734, %v4850
        %v4945 = vadd.f32 %v4735, %v4855
        %v4946 = vadd.f32 %v4736, %v4858
        %v4947 = vadd.f32 %v4737, %v4863
        %v4948 = vadd.f32 %v4738, %v4866
        %v4949 = vadd.f32 %v4739, %v4871
        %v4950 = vadd.f32 %v4740, %v4874
        %v4951 = vadd.f32 %v4741, %v4879
        %v4952 = vadd.f32 %v4742, %v4882
        %v4953 = vadd.f32 %v4743, %v4887
        %v4954 = vadd.f32 %v4744, %v4890
        %v4955 = vadd.f32 %v4745, %v4895
        %v4956 = vadd.f32 %v4746, %v4898
        %v4957 = vadd.f32 %v4747, %v4903
        %v4958 = vadd.f32 %v4748, %v4906
        %v4959 = vadd.f32 %v4749, %v4911
        %v4960 = vadd.f32 %v4750, %v4914
        %v4961 = vadd.f32 %v4751, %v4919
        %v4962 = vadd.f32 %v4752, %v4922
        %v4963 = vsel %vm3445, %v3405, 0.0
        %v4964 = vsel %vm3446, %v3404, 0.0
        %v4965 = vsel %vm3447, %v3403, 0.0
        %v4966 = vsel %vm3448, %v3402, 0.0
        %v4967 = vsel %vm3449, %v3401, 0.0
        %v4968 = vsel %vm3450, %v3400, 0.0
        %v4969 = vsel %vm3451, %v3399, 0.0
        %v4970 = vsel %vm3452, %v3398, 0.0
        %v4971 = vsel %vm3453, %v3397, 0.0
        %v4972 = vsel %vm3454, %v3396, 0.0
        %v4973 = vsel %vm3455, %v3395, 0.0
        %v4974 = vsel %vm3456, %v3394, 0.0
        %v4975 = vsel %vm3457, %v3393, 0.0
        %v4976 = vsel %vm3458, %v3392, 0.0
        %v4977 = vsel %vm3459, %v3391, 0.0
        %v4978 = vsel %vm3460, %v3390, 0.0
        %v4979 = vsel %vm3461, %v3389, 0.0
        %v4980 = vsel %vm3462, %v3388, 0.0
        %v4981 = vsel %vm3463, %v3387, 0.0
        %v4982 = vsel %vm3464, %v3386, 0.0
        %v4983 = vsel %vm3465, %v3385, 0.0
        %v4984 = vsel %vm3466, %v3384, 0.0
        %v4985 = vsel %vm3467, %v3383, 0.0
        %v4986 = vsel %vm3468, %v3382, 0.0
        %v4987 = vsel %vm3469, %v3381, 0.0
        %v4988 = vsel %vm3470, %v3380, 0.0
        %v4989 = vsel %vm3471, %v3379, 0.0
        %v4990 = vsel %vm3472, %v3378, 0.0
        %v4991 = vsel %vm3473, %v3377, 0.0
        %v4992 = vsel %vm3474, %v3376, 0.0
        %v4993 = vsel %vm3475, %v3375, 0.0
        %v4994 = vsel %vm3476, %v3374, 0.0
        %v4995 = vsel %vm3477, %v3373, 0.0
        %v4996 = vsel %vm3478, %v3408, 0.0
        %v4997 = vsel %vm3479, %v3407, 0.0
        %v4998 = vsel %vm3480, %v3406, 0.0
        %v4999 = vpack.c.bf16 %v4964, %v4963
        %v5000 = vpack.c.bf16 %v4966, %v4965
        %v5001 = vpack.c.bf16 %v4968, %v4967
        %v5002 = vpack.c.bf16 %v4970, %v4969
        %v5003 = vpack.c.bf16 %v4972, %v4971
        %v5004 = vpack.c.bf16 %v4974, %v4973
        %v5005 = vpack.c.bf16 %v4976, %v4975
        %v5006 = vpack.c.bf16 %v4978, %v4977
        %v5007 = vpack.c.bf16 %v4980, %v4979
        %v5008 = vpack.c.bf16 %v4982, %v4981
        %v5009 = vpack.c.bf16 %v4984, %v4983
        %v5010 = vpack.c.bf16 %v4986, %v4985
        %v5011 = vpack.c.bf16 %v4988, %v4987
        %v5012 = vpack.c.bf16 %v4990, %v4989
        %v5013 = vpack.c.bf16 %v4992, %v4991
        %v5014 = vpack.c.bf16 %v4994, %v4993
        %v5015 = vpack.c.bf16 %v4996, %v4995
        %v5016 = vpack.c.bf16 %v4998, %v4997
        %s5017 = scalar_lea.vmem %s7, 32
        %v5018 = vld [vmem:[%s5017] sm:$0xf]
        %v5020 = vsel %vm2432, %v4999, 0
        %v5023 = vsel %vm2432, %v5000, 0
        %v5026 = vsel %vm2432, %v5001, 0
        %v5029 = vsel %vm2432, %v5002, 0
        %v5032 = vsel %vm2432, %v5003, 0
        %v5035 = vsel %vm2432, %v5004, 0
        %v5038 = vsel %vm2432, %v5005, 0
        %v5041 = vsel %vm2432, %v5006, 0
        %v5044 = vsel %vm2432, %v5007, 0
        %v5047 = vsel %vm2432, %v5008, 0
        %v5050 = vsel %vm2432, %v5009, 0
        %v5053 = vsel %vm2432, %v5010, 0
        %v5056 = vsel %vm2432, %v5011, 0
        %v5059 = vsel %vm2432, %v5012, 0
        %v5062 = vsel %vm2432, %v5013, 0
        %v5065 = vsel %vm2432, %v5014, 0
        %v5068 = vsel %vm2432, %v5015, 0
        %v5071 = vsel %vm2432, %v5016, 0
        %v5074 = vsel %vm2487, %v5018, 0
        %5076 = vmatprep.subr.bf16.mxu0 0
        %5077 = vmatpush1.bf16.msra.mxu0 %v5074
        %5078 = vmatprep.subr.bf16.mxu0 0
        %5079 = vmatpush1.bf16.msra.mxu0 0
        %5080 = vmatprep.subr.bf16.mxu0 0
        %5081 = vmatpush1.bf16.msra.mxu0 0
        %5082 = vmatprep.subr.bf16.mxu0 0
        %5083 = vmatpush1.bf16.msra.mxu0 0
        %5084 = vmatprep.subr.bf16.mxu0 0
        %5085 = vmatpush1.bf16.msra.mxu0 0
        %5086 = vmatprep.subr.bf16.mxu0 0
        %5087 = vmatpush1.bf16.msra.mxu0 0
        %5088 = vmatprep.subr.bf16.mxu0 0
        %5089 = vmatpush1.bf16.msra.mxu0 0
        %5090 = vmatprep.subr.bf16.mxu0 0
        %5091 = vmatpush1.bf16.msra.mxu0 0
        %5092 = vmatprep.subr.bf16.mxu0 0
        %5093 = vmatpush1.bf16.msra.mxu0 0
        %5094 = vmatprep.subr.bf16.mxu0 0
        %5095 = vmatpush1.bf16.msra.mxu0 0
        %5096 = vmatprep.subr.bf16.mxu0 0
        %5097 = vmatpush1.bf16.msra.mxu0 0
        %5098 = vmatprep.subr.bf16.mxu0 0
        %5099 = vmatpush1.bf16.msra.mxu0 0
        %5100 = vmatprep.subr.bf16.mxu0 0
        %5101 = vmatpush1.bf16.msra.mxu0 0
        %5102 = vmatprep.subr.bf16.mxu0 0
        %5103 = vmatpush1.bf16.msra.mxu0 0
        %5104 = vmatprep.subr.bf16.mxu0 0
        %5105 = vmatpush1.bf16.msra.mxu0 0
        %5106 = vmatprep.subr.bf16.mxu0 0
        %5107 = vmatpush1.bf16.msra.mxu0 0
        %5108 = vmatprep.mubr.bf16.mxu0 0
        %5109 = vmatmul.mubr.bf16.gmra.mrb[0].mxu0 %v5020
        %v5110 = vpop.f32.mrb[0].mxu0
        %v5111 = vpop.f32.mrb[0].mxu0
        %v5112 = vpop.f32.mrb[0].mxu0
        %v5113 = vpop.f32.mrb[0].mxu0
        %5114 = vmatprep.mubr.bf16.mxu0 0
        %5115 = vmatmul.mubr.bf16.gmra.mrb[0].mxu0 %v5023
        %v5116 = vpop.f32.mrb[0].mxu0
        %v5117 = vadd.f32 0.0, %v5116
        %v5118 = vpop.f32.mrb[0].mxu0
        %v5119 = vpop.f32.mrb[0].mxu0
        %v5120 = vadd.f32 0.0, %v5119
        %v5121 = vpop.f32.mrb[0].mxu0
        %5122 = vmatprep.mubr.bf16.mxu0 0
        %5123 = vmatmul.mubr.bf16.gmra.mrb[0].mxu0 %v5026
        %v5124 = vpop.f32.mrb[0].mxu0
        %v5125 = vadd.f32 0.0, %v5124
        %v5126 = vpop.f32.mrb[0].mxu0
        %v5127 = vpop.f32.mrb[0].mxu0
        %v5128 = vadd.f32 0.0, %v5127
        %v5129 = vpop.f32.mrb[0].mxu0
        %5130 = vmatprep.mubr.bf16.mxu0 0
        %5131 = vmatmul.mubr.bf16.gmra.mrb[0].mxu0 %v5029
        %v5132 = vpop.f32.mrb[0].mxu0
        %v5133 = vadd.f32 0.0, %v5132
        %v5134 = vpop.f32.mrb[0].mxu0
        %v5135 = vpop.f32.mrb[0].mxu0
        %v5136 = vadd.f32 0.0, %v5135
        %v5137 = vpop.f32.mrb[0].mxu0
        %5138 = vmatprep.mubr.bf16.mxu0 0
        %5139 = vmatmul.mubr.bf16.gmra.mrb[0].mxu0 %v5032
        %v5140 = vpop.f32.mrb[0].mxu0
        %v5141 = vadd.f32 0.0, %v5140
        %v5142 = vpop.f32.mrb[0].mxu0
        %v5143 = vpop.f32.mrb[0].mxu0
        %v5144 = vadd.f32 0.0, %v5143
        %v5145 = vpop.f32.mrb[0].mxu0
        %5146 = vmatprep.mubr.bf16.mxu0 0
        %5147 = vmatmul.mubr.bf16.gmra.mrb[0].mxu0 %v5035
        %v5148 = vpop.f32.mrb[0].mxu0
        %v5149 = vadd.f32 0.0, %v5148
        %v5150 = vpop.f32.mrb[0].mxu0
        %v5151 = vpop.f32.mrb[0].mxu0
        %v5152 = vadd.f32 0.0, %v5151
        %v5153 = vpop.f32.mrb[0].mxu0
        %5154 = vmatprep.mubr.bf16.mxu0 0
        %5155 = vmatmul.mubr.bf16.gmra.mrb[0].mxu0 %v5038
        %v5156 = vpop.f32.mrb[0].mxu0
        %v5157 = vadd.f32 0.0, %v5156
        %v5158 = vpop.f32.mrb[0].mxu0
        %v5159 = vpop.f32.mrb[0].mxu0
        %v5160 = vadd.f32 0.0, %v5159
        %v5161 = vpop.f32.mrb[0].mxu0
        %5162 = vmatprep.mubr.bf16.mxu0 0
        %5163 = vmatmul.mubr.bf16.gmra.mrb[0].mxu0 %v5041
        %v5164 = vpop.f32.mrb[0].mxu0
        %v5165 = vadd.f32 0.0, %v5164
        %v5166 = vpop.f32.mrb[0].mxu0
        %v5167 = vpop.f32.mrb[0].mxu0
        %v5168 = vadd.f32 0.0, %v5167
        %v5169 = vpop.f32.mrb[0].mxu0
        %5170 = vmatprep.mubr.bf16.mxu0 0
        %5171 = vmatmul.mubr.bf16.gmra.mrb[0].mxu0 %v5044
        %v5172 = vpop.f32.mrb[0].mxu0
        %v5173 = vadd.f32 0.0, %v5172
        %v5174 = vpop.f32.mrb[0].mxu0
        %v5175 = vpop.f32.mrb[0].mxu0
        %v5176 = vadd.f32 0.0, %v5175
        %v5177 = vpop.f32.mrb[0].mxu0
        %5178 = vmatprep.mubr.bf16.mxu0 0
        %5179 = vmatmul.mubr.bf16.gmra.mrb[0].mxu0 %v5047
        %v5180 = vpop.f32.mrb[0].mxu0
        %v5181 = vadd.f32 0.0, %v5180
        %v5182 = vpop.f32.mrb[0].mxu0
        %v5183 = vpop.f32.mrb[0].mxu0
        %v5184 = vadd.f32 0.0, %v5183
        %v5185 = vpop.f32.mrb[0].mxu0
        %5186 = vmatprep.mubr.bf16.mxu0 0
        %5187 = vmatmul.mubr.bf16.gmra.mrb[0].mxu0 %v5050
        %v5188 = vpop.f32.mrb[0].mxu0
        %v5189 = vadd.f32 0.0, %v5188
        %v5190 = vpop.f32.mrb[0].mxu0
        %v5191 = vpop.f32.mrb[0].mxu0
        %v5192 = vadd.f32 0.0, %v5191
        %v5193 = vpop.f32.mrb[0].mxu0
        %5194 = vmatprep.mubr.bf16.mxu0 0
        %5195 = vmatmul.mubr.bf16.gmra.mrb[0].mxu0 %v5053
        %v5196 = vpop.f32.mrb[0].mxu0
        %v5197 = vadd.f32 0.0, %v5196
        %v5198 = vpop.f32.mrb[0].mxu0
        %v5199 = vpop.f32.mrb[0].mxu0
        %v5200 = vadd.f32 0.0, %v5199
        %v5201 = vpop.f32.mrb[0].mxu0
        %5202 = vmatprep.mubr.bf16.mxu0 0
        %5203 = vmatmul.mubr.bf16.gmra.mrb[0].mxu0 %v5056
        %v5204 = vpop.f32.mrb[0].mxu0
        %v5205 = vadd.f32 0.0, %v5204
        %v5206 = vpop.f32.mrb[0].mxu0
        %v5207 = vpop.f32.mrb[0].mxu0
        %v5208 = vadd.f32 0.0, %v5207
        %v5209 = vpop.f32.mrb[0].mxu0
        %5210 = vmatprep.mubr.bf16.mxu0 0
        %5211 = vmatmul.mubr.bf16.gmra.mrb[0].mxu0 %v5059
        %v5212 = vpop.f32.mrb[0].mxu0
        %v5213 = vadd.f32 0.0, %v5212
        %v5214 = vpop.f32.mrb[0].mxu0
        %v5215 = vpop.f32.mrb[0].mxu0
        %v5216 = vadd.f32 0.0, %v5215
        %v5217 = vpop.f32.mrb[0].mxu0
        %5218 = vmatprep.mubr.bf16.mxu0 0
        %5219 = vmatmul.mubr.bf16.gmra.mrb[0].mxu0 %v5062
        %v5220 = vpop.f32.mrb[0].mxu0
        %v5221 = vadd.f32 0.0, %v5220
        %v5222 = vpop.f32.mrb[0].mxu0
        %v5223 = vpop.f32.mrb[0].mxu0
        %v5224 = vadd.f32 0.0, %v5223
        %v5225 = vpop.f32.mrb[0].mxu0
        %5226 = vmatprep.mubr.bf16.mxu0 0
        %5227 = vmatmul.mubr.bf16.gmra.mrb[0].mxu0 %v5065
        %v5228 = vpop.f32.mrb[0].mxu0
        %v5229 = vadd.f32 0.0, %v5228
        %v5230 = vpop.f32.mrb[0].mxu0
        %v5231 = vpop.f32.mrb[0].mxu0
        %v5232 = vadd.f32 0.0, %v5231
        %v5233 = vpop.f32.mrb[0].mxu0
        %5234 = vmatprep.mubr.bf16.mxu0 0
        %5235 = vmatmul.mubr.bf16.gmra.mrb[0].mxu0 %v5068
        %v5236 = vpop.f32.mrb[0].mxu0
        %v5237 = vadd.f32 0.0, %v5236
        %v5238 = vpop.f32.mrb[0].mxu0
        %v5239 = vpop.f32.mrb[0].mxu0
        %v5240 = vadd.f32 0.0, %v5239
        %v5241 = vpop.f32.mrb[0].mxu0
        %5242 = vmatprep.mubr.bf16.mxu0 0
        %5243 = vmatmul.mubr.bf16.gmra.mrb[0].mxu0 %v5071
        %v5244 = vpop.f32.mrb[0].mxu0
        %v5245 = vpop.f32.mrb[0].mxu0
        %v5246 = vpop.f32.mrb[0].mxu0
        %v5247 = vpop.f32.mrb[0].mxu0
        %5248 = vdwg.mxu0
        %v5249 = vadd.f32 %v4931, %v5117
        %v5250 = vadd.f32 %v4932, %v5120
        %v5251 = vadd.f32 %v4933, %v5125
        %v5252 = vadd.f32 %v4934, %v5128
        %v5253 = vadd.f32 %v4935, %v5133
        %v5254 = vadd.f32 %v4936, %v5136
        %v5255 = vadd.f32 %v4937, %v5141
        %v5256 = vadd.f32 %v4938, %v5144
        %v5257 = vadd.f32 %v4939, %v5149
        %v5258 = vadd.f32 %v4940, %v5152
        %v5259 = vadd.f32 %v4941, %v5157
        %v5260 = vadd.f32 %v4942, %v5160
        %v5261 = vadd.f32 %v4943, %v5165
        %v5262 = vadd.f32 %v4944, %v5168
        %v5263 = vadd.f32 %v4945, %v5173
        %v5264 = vadd.f32 %v4946, %v5176
        %v5265 = vadd.f32 %v4947, %v5181
        %v5266 = vadd.f32 %v4948, %v5184
        %v5267 = vadd.f32 %v4949, %v5189
        %v5268 = vadd.f32 %v4950, %v5192
        %v5269 = vadd.f32 %v4951, %v5197
        %v5270 = vadd.f32 %v4952, %v5200
        %v5271 = vadd.f32 %v4953, %v5205
        %v5272 = vadd.f32 %v4954, %v5208
        %v5273 = vadd.f32 %v4955, %v5213
        %v5274 = vadd.f32 %v4956, %v5216
        %v5275 = vadd.f32 %v4957, %v5221
        %v5276 = vadd.f32 %v4958, %v5224
        %v5277 = vadd.f32 %v4959, %v5229
        %v5278 = vadd.f32 %v4960, %v5232
        %v5279 = vadd.f32 %v4961, %v5237
        %v5280 = vadd.f32 %v4962, %v5240
        %v5281 = vsub.f32 0.0, %v5249
        %v5282 = vsub.f32 0.0, %v5250
        %v5283 = vsub.f32 0.0, %v5251
        %v5284 = vsub.f32 0.0, %v5252
        %v5285 = vsub.f32 0.0, %v5253
        %v5286 = vsub.f32 0.0, %v5254
        %v5287 = vsub.f32 0.0, %v5255
        %v5288 = vsub.f32 0.0, %v5256
        %v5289 = vsub.f32 0.0, %v5257
        %v5290 = vsub.f32 0.0, %v5258
        %v5291 = vsub.f32 0.0, %v5259
        %v5292 = vsub.f32 0.0, %v5260
        %v5293 = vsub.f32 0.0, %v5261
        %v5294 = vsub.f32 0.0, %v5262
        %v5295 = vsub.f32 0.0, %v5263
        %v5296 = vsub.f32 0.0, %v5264
        %v5297 = vsub.f32 0.0, %v5265
        %v5298 = vsub.f32 0.0, %v5266
        %v5299 = vsub.f32 0.0, %v5267
        %v5300 = vsub.f32 0.0, %v5268
        %v5301 = vsub.f32 0.0, %v5269
        %v5302 = vsub.f32 0.0, %v5270
        %v5303 = vsub.f32 0.0, %v5271
        %v5304 = vsub.f32 0.0, %v5272
        %v5305 = vsub.f32 0.0, %v5273
        %v5306 = vsub.f32 0.0, %v5274
        %v5307 = vsub.f32 0.0, %v5275
        %v5308 = vsub.f32 0.0, %v5276
        %v5309 = vsub.f32 0.0, %v5277
        %v5310 = vsub.f32 0.0, %v5278
        %v5311 = vsub.f32 0.0, %v5279
        %v5312 = vsub.f32 0.0, %v5280
        %v5313 = vmul.f32 %v5281, 1.442695
        %v5314 = vpow.pop %v5313
        %v5315 = vmul.f32 %v5282, 1.442695
        %v5316 = vpow.pop %v5315
        %v5317 = vmul.f32 %v5283, 1.442695
        %v5318 = vpow.pop %v5317
        %v5319 = vmul.f32 %v5284, 1.442695
        %v5320 = vpow.pop %v5319
        %v5321 = vmul.f32 %v5285, 1.442695
        %v5322 = vpow.pop %v5321
        %v5323 = vmul.f32 %v5286, 1.442695
        %v5324 = vpow.pop %v5323
        %v5325 = vmul.f32 %v5287, 1.442695
        %v5326 = vpow.pop %v5325
        %v5327 = vmul.f32 %v5288, 1.442695
        %v5328 = vpow.pop %v5327
        %v5329 = vmul.f32 %v5289, 1.442695
        %v5330 = vpow.pop %v5329
        %v5331 = vmul.f32 %v5290, 1.442695
        %v5332 = vpow.pop %v5331
        %v5333 = vmul.f32 %v5291, 1.442695
        %v5334 = vpow.pop %v5333
        %v5335 = vmul.f32 %v5292, 1.442695
        %v5336 = vpow.pop %v5335
        %v5337 = vmul.f32 %v5293, 1.442695
        %v5338 = vpow.pop %v5337
        %v5339 = vmul.f32 %v5294, 1.442695
        %v5340 = vpow.pop %v5339
        %v5341 = vmul.f32 %v5295, 1.442695
        %v5342 = vpow.pop %v5341
        %v5343 = vmul.f32 %v5296, 1.442695
        %v5344 = vpow.pop %v5343
        %v5345 = vmul.f32 %v5297, 1.442695
        %v5346 = vpow.pop %v5345
        %v5347 = vmul.f32 %v5298, 1.442695
        %v5348 = vpow.pop %v5347
        %v5349 = vmul.f32 %v5299, 1.442695
        %v5350 = vpow.pop %v5349
        %v5351 = vmul.f32 %v5300, 1.442695
        %v5352 = vpow.pop %v5351
        %v5353 = vmul.f32 %v5301, 1.442695
        %v5354 = vpow.pop %v5353
        %v5355 = vmul.f32 %v5302, 1.442695
        %v5356 = vpow.pop %v5355
        %v5357 = vmul.f32 %v5303, 1.442695
        %v5358 = vpow.pop %v5357
        %v5359 = vmul.f32 %v5304, 1.442695
        %v5360 = vpow.pop %v5359
        %v5361 = vmul.f32 %v5305, 1.442695
        %v5362 = vpow.pop %v5361
        %v5363 = vmul.f32 %v5306, 1.442695
        %v5364 = vpow.pop %v5363
        %v5365 = vmul.f32 %v5307, 1.442695
        %v5366 = vpow.pop %v5365
        %v5367 = vmul.f32 %v5308, 1.442695
        %v5368 = vpow.pop %v5367
        %v5369 = vmul.f32 %v5309, 1.442695
        %v5370 = vpow.pop %v5369
        %v5371 = vmul.f32 %v5310, 1.442695
        %v5372 = vpow.pop %v5371
        %v5373 = vmul.f32 %v5311, 1.442695
        %v5374 = vpow.pop %v5373
        %v5375 = vmul.f32 %v5312, 1.442695
        %v5376 = vpow.pop %v5375
        %v5377 = vadd.f32 %v5314, 1.0
        %v5378 = vadd.f32 %v5316, 1.0
        %v5379 = vadd.f32 %v5318, 1.0
        %v5380 = vadd.f32 %v5320, 1.0
        %v5381 = vadd.f32 %v5322, 1.0
        %v5382 = vadd.f32 %v5324, 1.0
        %v5383 = vadd.f32 %v5326, 1.0
        %v5384 = vadd.f32 %v5328, 1.0
        %v5385 = vadd.f32 %v5330, 1.0
        %v5386 = vadd.f32 %v5332, 1.0
        %v5387 = vadd.f32 %v5334, 1.0
        %v5388 = vadd.f32 %v5336, 1.0
        %v5389 = vadd.f32 %v5338, 1.0
        %v5390 = vadd.f32 %v5340, 1.0
        %v5391 = vadd.f32 %v5342, 1.0
        %v5392 = vadd.f32 %v5344, 1.0
        %v5393 = vadd.f32 %v5346, 1.0
        %v5394 = vadd.f32 %v5348, 1.0
        %v5395 = vadd.f32 %v5350, 1.0
        %v5396 = vadd.f32 %v5352, 1.0
        %v5397 = vadd.f32 %v5354, 1.0
        %v5398 = vadd.f32 %v5356, 1.0
        %v5399 = vadd.f32 %v5358, 1.0
        %v5400 = vadd.f32 %v5360, 1.0
        %v5401 = vadd.f32 %v5362, 1.0
        %v5402 = vadd.f32 %v5364, 1.0
        %v5403 = vadd.f32 %v5366, 1.0
        %v5404 = vadd.f32 %v5368, 1.0
        %v5405 = vadd.f32 %v5370, 1.0
        %v5406 = vadd.f32 %v5372, 1.0
        %v5407 = vadd.f32 %v5374, 1.0
        %v5408 = vadd.f32 %v5376, 1.0
        %v5409 = vrcp.pop %v5377
        %v5410 = vrcp.pop %v5378
        %v5411 = vrcp.pop %v5379
        %v5412 = vrcp.pop %v5380
        %v5413 = vrcp.pop %v5381
        %v5414 = vrcp.pop %v5382
        %v5415 = vrcp.pop %v5383
        %v5416 = vrcp.pop %v5384
        %v5417 = vrcp.pop %v5385
        %v5418 = vrcp.pop %v5386
        %v5419 = vrcp.pop %v5387
        %v5420 = vrcp.pop %v5388
        %v5421 = vrcp.pop %v5389
        %v5422 = vrcp.pop %v5390
        %v5423 = vrcp.pop %v5391
        %v5424 = vrcp.pop %v5392
        %v5425 = vrcp.pop %v5393
        %v5426 = vrcp.pop %v5394
        %v5427 = vrcp.pop %v5395
        %v5428 = vrcp.pop %v5396
        %v5429 = vrcp.pop %v5397
        %v5430 = vrcp.pop %v5398
        %v5431 = vrcp.pop %v5399
        %v5432 = vrcp.pop %v5400
        %v5433 = vrcp.pop %v5401
        %v5434 = vrcp.pop %v5402
        %v5435 = vrcp.pop %v5403
        %v5436 = vrcp.pop %v5404
        %v5437 = vrcp.pop %v5405
        %v5438 = vrcp.pop %v5406
        %v5439 = vrcp.pop %v5407
        %v5440 = vrcp.pop %v5408
        %v5441 = vmul.f32 %v5249, %v5409
        %v5442 = vmul.f32 %v5250, %v5410
        %v5443 = vmul.f32 %v5251, %v5411
        %v5444 = vmul.f32 %v5252, %v5412
        %v5445 = vmul.f32 %v5253, %v5413
        %v5446 = vmul.f32 %v5254, %v5414
        %v5447 = vmul.f32 %v5255, %v5415
        %v5448 = vmul.f32 %v5256, %v5416
        %v5449 = vmul.f32 %v5257, %v5417
        %v5450 = vmul.f32 %v5258, %v5418
        %v5451 = vmul.f32 %v5259, %v5419
        %v5452 = vmul.f32 %v5260, %v5420
        %v5453 = vmul.f32 %v5261, %v5421
        %v5454 = vmul.f32 %v5262, %v5422
        %v5455 = vmul.f32 %v5263, %v5423
        %v5456 = vmul.f32 %v5264, %v5424
        %v5457 = vmul.f32 %v5265, %v5425
        %v5458 = vmul.f32 %v5266, %v5426
        %v5459 = vmul.f32 %v5267, %v5427
        %v5460 = vmul.f32 %v5268, %v5428
        %v5461 = vmul.f32 %v5269, %v5429
        %v5462 = vmul.f32 %v5270, %v5430
        %v5463 = vmul.f32 %v5271, %v5431
        %v5464 = vmul.f32 %v5272, %v5432
        %v5465 = vmul.f32 %v5273, %v5433
        %v5466 = vmul.f32 %v5274, %v5434
        %v5467 = vmul.f32 %v5275, %v5435
        %v5468 = vmul.f32 %v5276, %v5436
        %v5469 = vmul.f32 %v5277, %v5437
        %v5470 = vmul.f32 %v5278, %v5438
        %v5471 = vmul.f32 %v5279, %v5439
        %v5472 = vmul.f32 %v5280, %v5440
        %v5473 = vpack.c.bf16 %v5442, %v5441
        %v5474 = vpack.c.bf16 %v5444, %v5443
        %v5475 = vpack.c.bf16 %v5446, %v5445
        %v5476 = vpack.c.bf16 %v5448, %v5447
        %v5477 = vpack.c.bf16 %v5450, %v5449
        %v5478 = vpack.c.bf16 %v5452, %v5451
        %v5479 = vpack.c.bf16 %v5454, %v5453
        %v5480 = vpack.c.bf16 %v5456, %v5455
        %v5481 = vpack.c.bf16 %v5458, %v5457
        %v5482 = vpack.c.bf16 %v5460, %v5459
        %v5483 = vpack.c.bf16 %v5462, %v5461
        %v5484 = vpack.c.bf16 %v5464, %v5463
        %v5485 = vpack.c.bf16 %v5466, %v5465
        %v5486 = vpack.c.bf16 %v5468, %v5467
        %v5487 = vpack.c.bf16 %v5470, %v5469
        %v5488 = vpack.c.bf16 %v5472, %v5471
        %v5489 = vld [vmem:[%s10] sm:$0xf]
        %v5490 = vld [vmem:[%s9] sm:$0xf]
        %v5491 = vld [vmem:[%s9 + $0x4] sm:$0xf]
        %v5494 = vunpack.c.l.b16 %v5490
        %v5495 = vunpack.c.l.b16 %v5491
        %v5496 = vpack.c.b16 %v5495, %v5494
        %5498 = vmatprep.subr.bf16.mxu0 0
        %5499 = vmatpush1.bf16.msra.mxu0 %v5496
        %5500 = vmatprep.subr.bf16.mxu0 0
        %5501 = vmatpush1.bf16.msra.mxu0 0
        %5502 = vmatprep.subr.bf16.mxu0 0
        %5503 = vmatpush1.bf16.msra.mxu0 0
        %5504 = vmatprep.subr.bf16.mxu0 0
        %5505 = vmatpush1.bf16.msra.mxu0 0
        %5506 = vmatprep.subr.bf16.mxu0 0
        %5507 = vmatpush1.bf16.msra.mxu0 0
        %5508 = vmatprep.subr.bf16.mxu0 0
        %5509 = vmatpush1.bf16.msra.mxu0 0
        %5510 = vmatprep.subr.bf16.mxu0 0
        %5511 = vmatpush1.bf16.msra.mxu0 0
        %5512 = vmatprep.subr.bf16.mxu0 0
        %5513 = vmatpush1.bf16.msra.mxu0 0
        %5514 = vmatprep.subr.bf16.mxu0 0
        %5515 = vmatpush1.bf16.msra.mxu0 0
        %5516 = vmatprep.subr.bf16.mxu0 0
        %5517 = vmatpush1.bf16.msra.mxu0 0
        %5518 = vmatprep.subr.bf16.mxu0 0
        %5519 = vmatpush1.bf16.msra.mxu0 0
        %5520 = vmatprep.subr.bf16.mxu0 0
        %5521 = vmatpush1.bf16.msra.mxu0 0
        %5522 = vmatprep.subr.bf16.mxu0 0
        %5523 = vmatpush1.bf16.msra.mxu0 0
        %5524 = vmatprep.subr.bf16.mxu0 0
        %5525 = vmatpush1.bf16.msra.mxu0 0
        %5526 = vmatprep.subr.bf16.mxu0 0
        %5527 = vmatpush1.bf16.msra.mxu0 0
        %5528 = vmatprep.subr.bf16.mxu0 0
        %5529 = vmatpush1.bf16.msra.mxu0 0
        %5530 = vmatprep.mubr.bf16.mxu0 0
        %5531 = vmatmul.mubr.bf16.gmra.mrb[0].mxu0 %v1125
        %v5532 = vpop.f32.mrb[0].mxu0
        %v5533 = vadd.f32 0.0, %v5532
        %v5534 = vpop.f32.mrb[0].mxu0
        %v5535 = vpop.f32.mrb[0].mxu0
        %v5536 = vadd.f32 0.0, %v5535
        %v5537 = vpop.f32.mrb[0].mxu0
        %5538 = vmatprep.mubr.bf16.mxu0 0
        %5539 = vmatmul.mubr.bf16.gmra.mrb[0].mxu0 %v1128
        %v5540 = vpop.f32.mrb[0].mxu0
        %v5541 = vadd.f32 0.0, %v5540
        %v5542 = vpop.f32.mrb[0].mxu0
        %v5543 = vpop.f32.mrb[0].mxu0
        %v5544 = vadd.f32 0.0, %v5543
        %v5545 = vpop.f32.mrb[0].mxu0
        %5546 = vmatprep.mubr.bf16.mxu0 0
        %5547 = vmatmul.mubr.bf16.gmra.mrb[0].mxu0 %v1131
        %v5548 = vpop.f32.mrb[0].mxu0
        %v5549 = vadd.f32 0.0, %v5548
        %v5550 = vpop.f32.mrb[0].mxu0
        %v5551 = vpop.f32.mrb[0].mxu0
        %v5552 = vadd.f32 0.0, %v5551
        %v5553 = vpop.f32.mrb[0].mxu0
        %5554 = vmatprep.mubr.bf16.mxu0 0
        %5555 = vmatmul.mubr.bf16.gmra.mrb[0].mxu0 %v1134
        %v5556 = vpop.f32.mrb[0].mxu0
        %v5557 = vadd.f32 0.0, %v5556
        %v5558 = vpop.f32.mrb[0].mxu0
        %v5559 = vpop.f32.mrb[0].mxu0
        %v5560 = vadd.f32 0.0, %v5559
        %v5561 = vpop.f32.mrb[0].mxu0
        %5562 = vmatprep.mubr.bf16.mxu0 0
        %5563 = vmatmul.mubr.bf16.gmra.mrb[0].mxu0 %v1137
        %v5564 = vpop.f32.mrb[0].mxu0
        %v5565 = vadd.f32 0.0, %v5564
        %v5566 = vpop.f32.mrb[0].mxu0
        %v5567 = vpop.f32.mrb[0].mxu0
        %v5568 = vadd.f32 0.0, %v5567
        %v5569 = vpop.f32.mrb[0].mxu0
        %5570 = vmatprep.mubr.bf16.mxu0 0
        %5571 = vmatmul.mubr.bf16.gmra.mrb[0].mxu0 %v1140
        %v5572 = vpop.f32.mrb[0].mxu0
        %v5573 = vadd.f32 0.0, %v5572
        %v5574 = vpop.f32.mrb[0].mxu0
        %v5575 = vpop.f32.mrb[0].mxu0
        %v5576 = vadd.f32 0.0, %v5575
        %v5577 = vpop.f32.mrb[0].mxu0
        %5578 = vmatprep.mubr.bf16.mxu0 0
        %5579 = vmatmul.mubr.bf16.gmra.mrb[0].mxu0 %v1143
        %v5580 = vpop.f32.mrb[0].mxu0
        %v5581 = vadd.f32 0.0, %v5580
        %v5582 = vpop.f32.mrb[0].mxu0
        %v5583 = vpop.f32.mrb[0].mxu0
        %v5584 = vadd.f32 0.0, %v5583
        %v5585 = vpop.f32.mrb[0].mxu0
        %5586 = vmatprep.mubr.bf16.mxu0 0
        %5587 = vmatmul.mubr.bf16.gmra.mrb[0].mxu0 %v1146
        %v5588 = vpop.f32.mrb[0].mxu0
        %v5589 = vadd.f32 0.0, %v5588
        %v5590 = vpop.f32.mrb[0].mxu0
        %v5591 = vpop.f32.mrb[0].mxu0
        %v5592 = vadd.f32 0.0, %v5591
        %v5593 = vpop.f32.mrb[0].mxu0
        %5594 = vmatprep.mubr.bf16.mxu0 0
        %5595 = vmatmul.mubr.bf16.gmra.mrb[0].mxu0 %v1149
        %v5596 = vpop.f32.mrb[0].mxu0
        %v5597 = vadd.f32 0.0, %v5596
        %v5598 = vpop.f32.mrb[0].mxu0
        %v5599 = vpop.f32.mrb[0].mxu0
        %v5600 = vadd.f32 0.0, %v5599
        %v5601 = vpop.f32.mrb[0].mxu0
        %5602 = vmatprep.mubr.bf16.mxu0 0
        %5603 = vmatmul.mubr.bf16.gmra.mrb[0].mxu0 %v1152
        %v5604 = vpop.f32.mrb[0].mxu0
        %v5605 = vadd.f32 0.0, %v5604
        %v5606 = vpop.f32.mrb[0].mxu0
        %v5607 = vpop.f32.mrb[0].mxu0
        %v5608 = vadd.f32 0.0, %v5607
        %v5609 = vpop.f32.mrb[0].mxu0
        %5610 = vmatprep.mubr.bf16.mxu0 0
        %5611 = vmatmul.mubr.bf16.gmra.mrb[0].mxu0 %v1155
        %v5612 = vpop.f32.mrb[0].mxu0
        %v5613 = vadd.f32 0.0, %v5612
        %v5614 = vpop.f32.mrb[0].mxu0
        %v5615 = vpop.f32.mrb[0].mxu0
        %v5616 = vadd.f32 0.0, %v5615
        %v5617 = vpop.f32.mrb[0].mxu0
        %5618 = vmatprep.mubr.bf16.mxu0 0
        %5619 = vmatmul.mubr.bf16.gmra.mrb[0].mxu0 %v1158
        %v5620 = vpop.f32.mrb[0].mxu0
        %v5621 = vadd.f32 0.0, %v5620
        %v5622 = vpop.f32.mrb[0].mxu0
        %v5623 = vpop.f32.mrb[0].mxu0
        %v5624 = vadd.f32 0.0, %v5623
        %v5625 = vpop.f32.mrb[0].mxu0
        %5626 = vmatprep.mubr.bf16.mxu0 0
        %5627 = vmatmul.mubr.bf16.gmra.mrb[0].mxu0 %v1161
        %v5628 = vpop.f32.mrb[0].mxu0
        %v5629 = vadd.f32 0.0, %v5628
        %v5630 = vpop.f32.mrb[0].mxu0
        %v5631 = vpop.f32.mrb[0].mxu0
        %v5632 = vadd.f32 0.0, %v5631
        %v5633 = vpop.f32.mrb[0].mxu0
        %5634 = vmatprep.mubr.bf16.mxu0 0
        %5635 = vmatmul.mubr.bf16.gmra.mrb[0].mxu0 %v1164
        %v5636 = vpop.f32.mrb[0].mxu0
        %v5637 = vadd.f32 0.0, %v5636
        %v5638 = vpop.f32.mrb[0].mxu0
        %v5639 = vpop.f32.mrb[0].mxu0
        %v5640 = vadd.f32 0.0, %v5639
        %v5641 = vpop.f32.mrb[0].mxu0
        %5642 = vmatprep.mubr.bf16.mxu0 0
        %5643 = vmatmul.mubr.bf16.gmra.mrb[0].mxu0 %v1167
        %v5644 = vpop.f32.mrb[0].mxu0
        %v5645 = vadd.f32 0.0, %v5644
        %v5646 = vpop.f32.mrb[0].mxu0
        %v5647 = vpop.f32.mrb[0].mxu0
        %v5648 = vadd.f32 0.0, %v5647
        %v5649 = vpop.f32.mrb[0].mxu0
        %5650 = vmatprep.mubr.bf16.mxu0 0
        %5651 = vmatmul.mubr.bf16.gmra.mrb[0].mxu0 %v1170
        %v5652 = vpop.f32.mrb[0].mxu0
        %v5653 = vadd.f32 0.0, %v5652
        %v5654 = vpop.f32.mrb[0].mxu0
        %v5655 = vpop.f32.mrb[0].mxu0
        %v5656 = vadd.f32 0.0, %v5655
        %v5657 = vpop.f32.mrb[0].mxu0
        %5658 = vdwg.mxu0
        %v5660 = vsel %vm2432, %v5473, 0
        %v5663 = vsel %vm2432, %v5474, 0
        %v5666 = vsel %vm2432, %v5475, 0
        %v5669 = vsel %vm2432, %v5476, 0
        %v5672 = vsel %vm2432, %v5477, 0
        %v5675 = vsel %vm2432, %v5478, 0
        %v5678 = vsel %vm2432, %v5479, 0
        %v5681 = vsel %vm2432, %v5480, 0
        %v5684 = vsel %vm2432, %v5481, 0
        %v5687 = vsel %vm2432, %v5482, 0
        %v5690 = vsel %vm2432, %v5483, 0
        %v5693 = vsel %vm2432, %v5484, 0
        %v5696 = vsel %vm2432, %v5485, 0
        %v5699 = vsel %vm2432, %v5486, 0
        %v5702 = vsel %vm2432, %v5487, 0
        %v5705 = vsel %vm2432, %v5488, 0
        %v5708 = vsel %vm2487, %v5489, 0
        %5710 = vmatprep.subr.bf16.mxu0 0
        %5711 = vmatpush1.bf16.msra.mxu0 %v5708
        %5712 = vmatprep.subr.bf16.mxu0 0
        %5713 = vmatpush1.bf16.msra.mxu0 0
        %5714 = vmatprep.subr.bf16.mxu0 0
        %5715 = vmatpush1.bf16.msra.mxu0 0
        %5716 = vmatprep.subr.bf16.mxu0 0
        %5717 = vmatpush1.bf16.msra.mxu0 0
        %5718 = vmatprep.subr.bf16.mxu0 0
        %5719 = vmatpush1.bf16.msra.mxu0 0
        %5720 = vmatprep.subr.bf16.mxu0 0
        %5721 = vmatpush1.bf16.msra.mxu0 0
        %5722 = vmatprep.subr.bf16.mxu0 0
        %5723 = vmatpush1.bf16.msra.mxu0 0
        %5724 = vmatprep.subr.bf16.mxu0 0
        %5725 = vmatpush1.bf16.msra.mxu0 0
        %5726 = vmatprep.subr.bf16.mxu0 0
        %5727 = vmatpush1.bf16.msra.mxu0 0
        %5728 = vmatprep.subr.bf16.mxu0 0
        %5729 = vmatpush1.bf16.msra.mxu0 0
        %5730 = vmatprep.subr.bf16.mxu0 0
        %5731 = vmatpush1.bf16.msra.mxu0 0
        %5732 = vmatprep.subr.bf16.mxu0 0
        %5733 = vmatpush1.bf16.msra.mxu0 0
        %5734 = vmatprep.subr.bf16.mxu0 0
        %5735 = vmatpush1.bf16.msra.mxu0 0
        %5736 = vmatprep.subr.bf16.mxu0 0
        %5737 = vmatpush1.bf16.msra.mxu0 0
        %5738 = vmatprep.subr.bf16.mxu0 0
        %5739 = vmatpush1.bf16.msra.mxu0 0
        %5740 = vmatprep.subr.bf16.mxu0 0
        %5741 = vmatpush1.bf16.msra.mxu0 0
        %5742 = vmatprep.mubr.bf16.mxu0 0
        %5743 = vmatmul.mubr.bf16.gmra.mrb[0].mxu0 %v5660
        %v5744 = vpop.f32.mrb[0].mxu0
        %v5745 = vadd.f32 %v5533, %v5744
        %v5746 = vpop.f32.mrb[0].mxu0
        %v5747 = vpop.f32.mrb[0].mxu0
        %v5748 = vadd.f32 %v5536, %v5747
        %v5749 = vpop.f32.mrb[0].mxu0
        %5750 = vmatprep.mubr.bf16.mxu0 0
        %5751 = vmatmul.mubr.bf16.gmra.mrb[0].mxu0 %v5663
        %v5752 = vpop.f32.mrb[0].mxu0
        %v5753 = vadd.f32 %v5541, %v5752
        %v5754 = vpop.f32.mrb[0].mxu0
        %v5755 = vpop.f32.mrb[0].mxu0
        %v5756 = vadd.f32 %v5544, %v5755
        %v5757 = vpop.f32.mrb[0].mxu0
        %5758 = vmatprep.mubr.bf16.mxu0 0
        %5759 = vmatmul.mubr.bf16.gmra.mrb[0].mxu0 %v5666
        %v5760 = vpop.f32.mrb[0].mxu0
        %v5761 = vadd.f32 %v5549, %v5760
        %v5762 = vpop.f32.mrb[0].mxu0
        %v5763 = vpop.f32.mrb[0].mxu0
        %v5764 = vadd.f32 %v5552, %v5763
        %v5765 = vpop.f32.mrb[0].mxu0
        %5766 = vmatprep.mubr.bf16.mxu0 0
        %5767 = vmatmul.mubr.bf16.gmra.mrb[0].mxu0 %v5669
        %v5768 = vpop.f32.mrb[0].mxu0
        %v5769 = vadd.f32 %v5557, %v5768
        %v5770 = vpop.f32.mrb[0].mxu0
        %v5771 = vpop.f32.mrb[0].mxu0
        %v5772 = vadd.f32 %v5560, %v5771
        %v5773 = vpop.f32.mrb[0].mxu0
        %5774 = vmatprep.mubr.bf16.mxu0 0
        %5775 = vmatmul.mubr.bf16.gmra.mrb[0].mxu0 %v5672
        %v5776 = vpop.f32.mrb[0].mxu0
        %v5777 = vadd.f32 %v5565, %v5776
        %v5778 = vpop.f32.mrb[0].mxu0
        %v5779 = vpop.f32.mrb[0].mxu0
        %v5780 = vadd.f32 %v5568, %v5779
        %v5781 = vpop.f32.mrb[0].mxu0
        %5782 = vmatprep.mubr.bf16.mxu0 0
        %5783 = vmatmul.mubr.bf16.gmra.mrb[0].mxu0 %v5675
        %v5784 = vpop.f32.mrb[0].mxu0
        %v5785 = vadd.f32 %v5573, %v5784
        %v5786 = vpop.f32.mrb[0].mxu0
        %v5787 = vpop.f32.mrb[0].mxu0
        %v5788 = vadd.f32 %v5576, %v5787
        %v5789 = vpop.f32.mrb[0].mxu0
        %5790 = vmatprep.mubr.bf16.mxu0 0
        %5791 = vmatmul.mubr.bf16.gmra.mrb[0].mxu0 %v5678
        %v5792 = vpop.f32.mrb[0].mxu0
        %v5793 = vadd.f32 %v5581, %v5792
        %v5794 = vpop.f32.mrb[0].mxu0
        %v5795 = vpop.f32.mrb[0].mxu0
        %v5796 = vadd.f32 %v5584, %v5795
        %v5797 = vpop.f32.mrb[0].mxu0
        %5798 = vmatprep.mubr.bf16.mxu0 0
        %5799 = vmatmul.mubr.bf16.gmra.mrb[0].mxu0 %v5681
        %v5800 = vpop.f32.mrb[0].mxu0
        %v5801 = vadd.f32 %v5589, %v5800
        %v5802 = vpop.f32.mrb[0].mxu0
        %v5803 = vpop.f32.mrb[0].mxu0
        %v5804 = vadd.f32 %v5592, %v5803
        %v5805 = vpop.f32.mrb[0].mxu0
        %5806 = vmatprep.mubr.bf16.mxu0 0
        %5807 = vmatmul.mubr.bf16.gmra.mrb[0].mxu0 %v5684
        %v5808 = vpop.f32.mrb[0].mxu0
        %v5809 = vadd.f32 %v5597, %v5808
        %v5810 = vpop.f32.mrb[0].mxu0
        %v5811 = vpop.f32.mrb[0].mxu0
        %v5812 = vadd.f32 %v5600, %v5811
        %v5813 = vpop.f32.mrb[0].mxu0
        %5814 = vmatprep.mubr.bf16.mxu0 0
        %5815 = vmatmul.mubr.bf16.gmra.mrb[0].mxu0 %v5687
        %v5816 = vpop.f32.mrb[0].mxu0
        %v5817 = vadd.f32 %v5605, %v5816
        %v5818 = vpop.f32.mrb[0].mxu0
        %v5819 = vpop.f32.mrb[0].mxu0
        %v5820 = vadd.f32 %v5608, %v5819
        %v5821 = vpop.f32.mrb[0].mxu0
        %5822 = vmatprep.mubr.bf16.mxu0 0
        %5823 = vmatmul.mubr.bf16.gmra.mrb[0].mxu0 %v5690
        %v5824 = vpop.f32.mrb[0].mxu0
        %v5825 = vadd.f32 %v5613, %v5824
        %v5826 = vpop.f32.mrb[0].mxu0
        %v5827 = vpop.f32.mrb[0].mxu0
        %v5828 = vadd.f32 %v5616, %v5827
        %v5829 = vpop.f32.mrb[0].mxu0
        %5830 = vmatprep.mubr.bf16.mxu0 0
        %5831 = vmatmul.mubr.bf16.gmra.mrb[0].mxu0 %v5693
        %v5832 = vpop.f32.mrb[0].mxu0
        %v5833 = vadd.f32 %v5621, %v5832
        %v5834 = vpop.f32.mrb[0].mxu0
        %v5835 = vpop.f32.mrb[0].mxu0
        %v5836 = vadd.f32 %v5624, %v5835
        %v5837 = vpop.f32.mrb[0].mxu0
        %5838 = vmatprep.mubr.bf16.mxu0 0
        %5839 = vmatmul.mubr.bf16.gmra.mrb[0].mxu0 %v5696
        %v5840 = vpop.f32.mrb[0].mxu0
        %v5841 = vadd.f32 %v5629, %v5840
        %v5842 = vpop.f32.mrb[0].mxu0
        %v5843 = vpop.f32.mrb[0].mxu0
        %v5844 = vadd.f32 %v5632, %v5843
        %v5845 = vpop.f32.mrb[0].mxu0
        %5846 = vmatprep.mubr.bf16.mxu0 0
        %5847 = vmatmul.mubr.bf16.gmra.mrb[0].mxu0 %v5699
        %v5848 = vpop.f32.mrb[0].mxu0
        %v5849 = vadd.f32 %v5637, %v5848
        %v5850 = vpop.f32.mrb[0].mxu0
        %v5851 = vpop.f32.mrb[0].mxu0
        %v5852 = vadd.f32 %v5640, %v5851
        %v5853 = vpop.f32.mrb[0].mxu0
        %5854 = vmatprep.mubr.bf16.mxu0 0
        %5855 = vmatmul.mubr.bf16.gmra.mrb[0].mxu0 %v5702
        %v5856 = vpop.f32.mrb[0].mxu0
        %v5857 = vadd.f32 %v5645, %v5856
        %v5858 = vpop.f32.mrb[0].mxu0
        %v5859 = vpop.f32.mrb[0].mxu0
        %v5860 = vadd.f32 %v5648, %v5859
        %v5861 = vpop.f32.mrb[0].mxu0
        %5862 = vmatprep.mubr.bf16.mxu0 0
        %5863 = vmatmul.mubr.bf16.gmra.mrb[0].mxu0 %v5705
        %v5864 = vpop.f32.mrb[0].mxu0
        %v5865 = vadd.f32 %v5653, %v5864
        %v5866 = vpop.f32.mrb[0].mxu0
        %v5867 = vpop.f32.mrb[0].mxu0
        %v5868 = vadd.f32 %v5656, %v5867
        %v5869 = vpop.f32.mrb[0].mxu0
        %5870 = vdwg.mxu0
        %v5871 = vld [vmem:[%s11] sm:$0x1]
        %v5873 = vlaneseq
        %v5874 = vshrl.u32 %v5873, 7
        %v5875 = vsub.s32 0, %v5874
        %v5876 = vrot.slane %v5871, %v5875
        %v5878 = vadd.f32 %v5745, %v5876
        %v5879 = vadd.f32 %v5748, %v5876
        %v5880 = vadd.f32 %v5753, %v5876
        %v5881 = vadd.f32 %v5756, %v5876
        %v5882 = vadd.f32 %v5761, %v5876
        %v5883 = vadd.f32 %v5764, %v5876
        %v5884 = vadd.f32 %v5769, %v5876
        %v5885 = vadd.f32 %v5772, %v5876
        %v5886 = vadd.f32 %v5777, %v5876
        %v5887 = vadd.f32 %v5780, %v5876
        %v5888 = vadd.f32 %v5785, %v5876
        %v5889 = vadd.f32 %v5788, %v5876
        %v5890 = vadd.f32 %v5793, %v5876
        %v5891 = vadd.f32 %v5796, %v5876
        %v5892 = vadd.f32 %v5801, %v5876
        %v5893 = vadd.f32 %v5804, %v5876
        %v5894 = vadd.f32 %v5809, %v5876
        %v5895 = vadd.f32 %v5812, %v5876
        %v5896 = vadd.f32 %v5817, %v5876
        %v5897 = vadd.f32 %v5820, %v5876
        %v5898 = vadd.f32 %v5825, %v5876
        %v5899 = vadd.f32 %v5828, %v5876
        %v5900 = vadd.f32 %v5833, %v5876
        %v5901 = vadd.f32 %v5836, %v5876
        %v5902 = vadd.f32 %v5841, %v5876
        %v5903 = vadd.f32 %v5844, %v5876
        %v5904 = vadd.f32 %v5849, %v5876
        %v5905 = vadd.f32 %v5852, %v5876
        %v5906 = vadd.f32 %v5857, %v5876
        %v5907 = vadd.f32 %v5860, %v5876
        %v5908 = vadd.f32 %v5865, %v5876
        %v5909 = vadd.f32 %v5868, %v5876
        %v5910 = vsub.f32 0.0, %v5878
        %v5911 = vsub.f32 0.0, %v5879
        %v5912 = vsub.f32 0.0, %v5880
        %v5913 = vsub.f32 0.0, %v5881
        %v5914 = vsub.f32 0.0, %v5882
        %v5915 = vsub.f32 0.0, %v5883
        %v5916 = vsub.f32 0.0, %v5884
        %v5917 = vsub.f32 0.0, %v5885
        %v5918 = vsub.f32 0.0, %v5886
        %v5919 = vsub.f32 0.0, %v5887
        %v5920 = vsub.f32 0.0, %v5888
        %v5921 = vsub.f32 0.0, %v5889
        %v5922 = vsub.f32 0.0, %v5890
        %v5923 = vsub.f32 0.0, %v5891
        %v5924 = vsub.f32 0.0, %v5892
        %v5925 = vsub.f32 0.0, %v5893
        %v5926 = vsub.f32 0.0, %v5894
        %v5927 = vsub.f32 0.0, %v5895
        %v5928 = vsub.f32 0.0, %v5896
        %v5929 = vsub.f32 0.0, %v5897
        %v5930 = vsub.f32 0.0, %v5898
        %v5931 = vsub.f32 0.0, %v5899
        %v5932 = vsub.f32 0.0, %v5900
        %v5933 = vsub.f32 0.0, %v5901
        %v5934 = vsub.f32 0.0, %v5902
        %v5935 = vsub.f32 0.0, %v5903
        %v5936 = vsub.f32 0.0, %v5904
        %v5937 = vsub.f32 0.0, %v5905
        %v5938 = vsub.f32 0.0, %v5906
        %v5939 = vsub.f32 0.0, %v5907
        %v5940 = vsub.f32 0.0, %v5908
        %v5941 = vsub.f32 0.0, %v5909
        %v5942 = vmul.f32 %v5910, 1.442695
        %v5943 = vpow.pop %v5942
        %v5944 = vmul.f32 %v5911, 1.442695
        %v5945 = vpow.pop %v5944
        %v5946 = vmul.f32 %v5912, 1.442695
        %v5947 = vpow.pop %v5946
        %v5948 = vmul.f32 %v5913, 1.442695
        %v5949 = vpow.pop %v5948
        %v5950 = vmul.f32 %v5914, 1.442695
        %v5951 = vpow.pop %v5950
        %v5952 = vmul.f32 %v5915, 1.442695
        %v5953 = vpow.pop %v5952
        %v5954 = vmul.f32 %v5916, 1.442695
        %v5955 = vpow.pop %v5954
        %v5956 = vmul.f32 %v5917, 1.442695
        %v5957 = vpow.pop %v5956
        %v5958 = vmul.f32 %v5918, 1.442695
        %v5959 = vpow.pop %v5958
        %v5960 = vmul.f32 %v5919, 1.442695
        %v5961 = vpow.pop %v5960
        %v5962 = vmul.f32 %v5920, 1.442695
        %v5963 = vpow.pop %v5962
        %v5964 = vmul.f32 %v5921, 1.442695
        %v5965 = vpow.pop %v5964
        %v5966 = vmul.f32 %v5922, 1.442695
        %v5967 = vpow.pop %v5966
        %v5968 = vmul.f32 %v5923, 1.442695
        %v5969 = vpow.pop %v5968
        %v5970 = vmul.f32 %v5924, 1.442695
        %v5971 = vpow.pop %v5970
        %v5972 = vmul.f32 %v5925, 1.442695
        %v5973 = vpow.pop %v5972
        %v5974 = vmul.f32 %v5926, 1.442695
        %v5975 = vpow.pop %v5974
        %v5976 = vmul.f32 %v5927, 1.442695
        %v5977 = vpow.pop %v5976
        %v5978 = vmul.f32 %v5928, 1.442695
        %v5979 = vpow.pop %v5978
        %v5980 = vmul.f32 %v5929, 1.442695
        %v5981 = vpow.pop %v5980
        %v5982 = vmul.f32 %v5930, 1.442695
        %v5983 = vpow.pop %v5982
        %v5984 = vmul.f32 %v5931, 1.442695
        %v5985 = vpow.pop %v5984
        %v5986 = vmul.f32 %v5932, 1.442695
        %v5987 = vpow.pop %v5986
        %v5988 = vmul.f32 %v5933, 1.442695
        %v5989 = vpow.pop %v5988
        %v5990 = vmul.f32 %v5934, 1.442695
        %v5991 = vpow.pop %v5990
        %v5992 = vmul.f32 %v5935, 1.442695
        %v5993 = vpow.pop %v5992
        %v5994 = vmul.f32 %v5936, 1.442695
        %v5995 = vpow.pop %v5994
        %v5996 = vmul.f32 %v5937, 1.442695
        %v5997 = vpow.pop %v5996
        %v5998 = vmul.f32 %v5938, 1.442695
        %v5999 = vpow.pop %v5998
        %v6000 = vmul.f32 %v5939, 1.442695
        %v6001 = vpow.pop %v6000
        %v6002 = vmul.f32 %v5940, 1.442695
        %v6003 = vpow.pop %v6002
        %v6004 = vmul.f32 %v5941, 1.442695
        %v6005 = vpow.pop %v6004
        %v6006 = vadd.f32 %v5943, 1.0
        %v6007 = vadd.f32 %v5945, 1.0
        %v6008 = vadd.f32 %v5947, 1.0
        %v6009 = vadd.f32 %v5949, 1.0
        %v6010 = vadd.f32 %v5951, 1.0
        %v6011 = vadd.f32 %v5953, 1.0
        %v6012 = vadd.f32 %v5955, 1.0
        %v6013 = vadd.f32 %v5957, 1.0
        %v6014 = vadd.f32 %v5959, 1.0
        %v6015 = vadd.f32 %v5961, 1.0
        %v6016 = vadd.f32 %v5963, 1.0
        %v6017 = vadd.f32 %v5965, 1.0
        %v6018 = vadd.f32 %v5967, 1.0
        %v6019 = vadd.f32 %v5969, 1.0
        %v6020 = vadd.f32 %v5971, 1.0
        %v6021 = vadd.f32 %v5973, 1.0
        %v6022 = vadd.f32 %v5975, 1.0
        %v6023 = vadd.f32 %v5977, 1.0
        %v6024 = vadd.f32 %v5979, 1.0
        %v6025 = vadd.f32 %v5981, 1.0
        %v6026 = vadd.f32 %v5983, 1.0
        %v6027 = vadd.f32 %v5985, 1.0
        %v6028 = vadd.f32 %v5987, 1.0
        %v6029 = vadd.f32 %v5989, 1.0
        %v6030 = vadd.f32 %v5991, 1.0
        %v6031 = vadd.f32 %v5993, 1.0
        %v6032 = vadd.f32 %v5995, 1.0
        %v6033 = vadd.f32 %v5997, 1.0
        %v6034 = vadd.f32 %v5999, 1.0
        %v6035 = vadd.f32 %v6001, 1.0
        %v6036 = vadd.f32 %v6003, 1.0
        %v6037 = vadd.f32 %v6005, 1.0
        %v6038 = vrcp.pop %v6006
        %v6039 = vrcp.pop %v6007
        %v6040 = vrcp.pop %v6008
        %v6041 = vrcp.pop %v6009
        %v6042 = vrcp.pop %v6010
        %v6043 = vrcp.pop %v6011
        %v6044 = vrcp.pop %v6012
        %v6045 = vrcp.pop %v6013
        %v6046 = vrcp.pop %v6014
        %v6047 = vrcp.pop %v6015
        %v6048 = vrcp.pop %v6016
        %v6049 = vrcp.pop %v6017
        %v6050 = vrcp.pop %v6018
        %v6051 = vrcp.pop %v6019
        %v6052 = vrcp.pop %v6020
        %v6053 = vrcp.pop %v6021
        %v6054 = vrcp.pop %v6022
        %v6055 = vrcp.pop %v6023
        %v6056 = vrcp.pop %v6024
        %v6057 = vrcp.pop %v6025
        %v6058 = vrcp.pop %v6026
        %v6059 = vrcp.pop %v6027
        %v6060 = vrcp.pop %v6028
        %v6061 = vrcp.pop %v6029
        %v6062 = vrcp.pop %v6030
        %v6063 = vrcp.pop %v6031
        %v6064 = vrcp.pop %v6032
        %v6065 = vrcp.pop %v6033
        %v6066 = vrcp.pop %v6034
        %v6067 = vrcp.pop %v6035
        %v6068 = vrcp.pop %v6036
        %v6069 = vrcp.pop %v6037
        %v6070 = vmul.f32 %v5878, %v6038
        %v6071 = vmul.f32 %v5879, %v6039
        %v6072 = vmul.f32 %v5880, %v6040
        %v6073 = vmul.f32 %v5881, %v6041
        %v6074 = vmul.f32 %v5882, %v6042
        %v6075 = vmul.f32 %v5883, %v6043
        %v6076 = vmul.f32 %v5884, %v6044
        %v6077 = vmul.f32 %v5885, %v6045
        %v6078 = vmul.f32 %v5886, %v6046
        %v6079 = vmul.f32 %v5887, %v6047
        %v6080 = vmul.f32 %v5888, %v6048
        %v6081 = vmul.f32 %v5889, %v6049
        %v6082 = vmul.f32 %v5890, %v6050
        %v6083 = vmul.f32 %v5891, %v6051
        %v6084 = vmul.f32 %v5892, %v6052
        %v6085 = vmul.f32 %v5893, %v6053
        %v6086 = vmul.f32 %v5894, %v6054
        %v6087 = vmul.f32 %v5895, %v6055
        %v6088 = vmul.f32 %v5896, %v6056
        %v6089 = vmul.f32 %v5897, %v6057
        %v6090 = vmul.f32 %v5898, %v6058
        %v6091 = vmul.f32 %v5899, %v6059
        %v6092 = vmul.f32 %v5900, %v6060
        %v6093 = vmul.f32 %v5901, %v6061
        %v6094 = vmul.f32 %v5902, %v6062
        %v6095 = vmul.f32 %v5903, %v6063
        %v6096 = vmul.f32 %v5904, %v6064
        %v6097 = vmul.f32 %v5905, %v6065
        %v6098 = vmul.f32 %v5906, %v6066
        %v6099 = vmul.f32 %v5907, %v6067
        %v6100 = vmul.f32 %v5908, %v6068
        %v6101 = vmul.f32 %v5909, %v6069
        %6102 = vst.msk [vmem:[%s559] sm:$0xff] %vm640, %v6070
        %6103 = vst.msk [vmem:[%s559 + $0x8] sm:$0xff] %vm640, %v6071
        %6104 = vst.msk [vmem:[%s559 + $0x10] sm:$0xff] %vm640, %v6072
        %6105 = vst.msk [vmem:[%s559 + $0x18] sm:$0xff] %vm640, %v6073
        %6106 = vst.msk [vmem:[%s559 + $0x20] sm:$0xff] %vm640, %v6074
        %6107 = vst.msk [vmem:[%s559 + $0x28] sm:$0xff] %vm640, %v6075
        %6108 = vst.msk [vmem:[%s559 + $0x30] sm:$0xff] %vm640, %v6076
        %6109 = vst.msk [vmem:[%s559 + $0x38] sm:$0xff] %vm640, %v6077
        %6110 = vst.msk [vmem:[%s559 + $0x40] sm:$0xff] %vm640, %v6078
        %6111 = vst.msk [vmem:[%s559 + $0x48] sm:$0xff] %vm640, %v6079
        %6112 = vst.msk [vmem:[%s559 + $0x50] sm:$0xff] %vm640, %v6080
        %6113 = vst.msk [vmem:[%s559 + $0x58] sm:$0xff] %vm640, %v6081
        %6114 = vst.msk [vmem:[%s559 + $0x60] sm:$0xff] %vm640, %v6082
        %6115 = vst.msk [vmem:[%s559 + $0x68] sm:$0xff] %vm640, %v6083
        %6116 = vst.msk [vmem:[%s559 + $0x70] sm:$0xff] %vm640, %v6084
        %6117 = vst.msk [vmem:[%s559 + $0x78] sm:$0xff] %vm640, %v6085
        %6118 = vst.msk [vmem:[%s559 + $0x80] sm:$0xff] %vm640, %v6086
        %6119 = vst.msk [vmem:[%s559 + $0x88] sm:$0xff] %vm640, %v6087
        %6120 = vst.msk [vmem:[%s559 + $0x90] sm:$0xff] %vm640, %v6088
        %6121 = vst.msk [vmem:[%s559 + $0x98] sm:$0xff] %vm640, %v6089
        %6122 = vst.msk [vmem:[%s559 + $0xa0] sm:$0xff] %vm640, %v6090
        %6123 = vst.msk [vmem:[%s559 + $0xa8] sm:$0xff] %vm640, %v6091
        %6124 = vst.msk [vmem:[%s559 + $0xb0] sm:$0xff] %vm640, %v6092
        %6125 = vst.msk [vmem:[%s559 + $0xb8] sm:$0xff] %vm640, %v6093
        %6126 = vst.msk [vmem:[%s559 + $0xc0] sm:$0xff] %vm640, %v6094
        %6127 = vst.msk [vmem:[%s559 + $0xc8] sm:$0xff] %vm640, %v6095
        %6128 = vst.msk [vmem:[%s559 + $0xd0] sm:$0xff] %vm640, %v6096
        %6129 = vst.msk [vmem:[%s559 + $0xd8] sm:$0xff] %vm640, %v6097
        %6130 = vst.msk [vmem:[%s559 + $0xe0] sm:$0xff] %vm640, %v6098
        %6131 = vst.msk [vmem:[%s559 + $0xe8] sm:$0xff] %vm640, %v6099
        %6132 = vst.msk [vmem:[%s559 + $0xf0] sm:$0xff] %vm640, %v6100
        %6133 = vst.msk [vmem:[%s559 + $0xf8] sm:$0xff] %vm640, %v6101
        %s6134 = sand.u32 %s343, 1
        %s6135 = scalar_lea.sflag [#allocation4], %s6134
        %s6136 = sand.u32 %s343, 1
        %s6137 = smul.addr %s6136, 256
        %s6138 = scalar_lea.vmem [#allocation8], %s6137
        // Predicated region
        $region81: #{tpu_custom_call.1} parent=67 // pred_check
          %p6139 = pneg %p353
        $region82: #{tpu_custom_call.1} parent=67 // pred_check_branch
          %6141 = sbr.rel (%p6139) target = $region84
        $region83: #{tpu_custom_call.1} parent=67 // pred_region
          %s6142 = smul.u32 16, %s37
          %s6144 = ssub.s32 4096, 4096
          %6145 = vsyncadd %s6135, %s6144
          %s6146 = smul.addr %s6142, 2
          %s6147 = smul.addr %s36, 32
          %s6148 = sadd.s32 %s6146, %s6147
          %s6149 = smul.addr %s6148, 128
          %s6150 = scalar_lea.hbm %s12, %s6149
          %s6151 = sshll.u32 %s6138, 4
          %s6152 = int_to_ptr.vmem [resolvable:$true] %s6151
          %6157 = dma.vmem_to_hbm [thread:$0]  %s6152, 4096, %s6150, %s6135, 128, 128, 8
        $region84: #{tpu_custom_call.1} parent=67 // pred_fallthru
          _
      $region68: #{tpu_custom_call.1} parent=5 // pred_fallthru
        _
      %p6158 = scmp.le.s32.totalorder 2, %s27
      // Predicated region
      $region85: #{tpu_custom_call.1} parent=5 // pred_check
        %p6159 = pneg %p6158
      $region86: #{tpu_custom_call.1} parent=5 // pred_check_branch
        %6161 = sbr.rel (%p6159) target = $region88
      $region87: #{tpu_custom_call.1} parent=5 // pred_region
        %s6162 = ssub.s32 %s27, 2
        // Predicated region
        $region89: #{tpu_custom_call.1} parent=87 // pred_check
          %p6163 = pneg %p359
        $region90: #{tpu_custom_call.1} parent=87 // pred_check_branch
          %6165 = sbr.rel (%p6163) target = $region92
        $region91: #{tpu_custom_call.1} parent=87 // pred_region
          %s6166 = sand.u32 %s344, 1
          %s6167 = scalar_lea.sflag [#allocation4], %s6166
          %s6168 = sand.u32 %s344, 1
          %s6169 = smul.addr %s6168, 256
          %s6170 = scalar_lea.vmem [#allocation8], %s6169
          %6171 = dma.done %s6167, 4096
        $region92: #{tpu_custom_call.1} parent=87 // pred_fallthru
          _
      $region88: #{tpu_custom_call.1} parent=5 // pred_fallthru
        _
    $region6: #{tpu_custom_call.1} parent=1 // loop_footer
      %s31 = sadd.s32 1, %s27
    $region7: #{tpu_custom_call.1} parent=1 // loop_footer_branch
      %26 = sbr.rel target = $region3
    $region8: #{tpu_custom_call.1} parent=1 // loop_exit
      _
    %6172 = vsyncpa [#allocation3], 1
    %s6173 = scalar_lea.sflag [#allocation3], 1
    %6174 = vsyncpa %s6173, 1
    %6175 = vsyncpa [#allocation6], 1
    %s6176 = scalar_lea.sflag [#allocation6], 1
    %6177 = vsyncpa %s6176, 1
    %6178 = vsyncpa [#allocation4], 1
    %s6179 = scalar_lea.sflag [#allocation4], 1
    %6180 = vsyncpa %s6179, 1

</llo_original>
